<compile_context>
chip_gen: v7x
topology: tpu7x:2x2x1
jax: 0.10.0
libtpu: 0.0.40
codegen_flags: <defaults>
</compile_context>

<pallas_src>
import functools

import jax
import jax.numpy as jnp
from jax.experimental import pallas as pl
from jax.experimental.pallas import tpu as pltpu

# Conservative scoped-VMEM budget: fits v5e/v6e (128 MiB physical) and v7x (64 MiB).
_VMEM_LIMIT = 32 * 1024 * 1024


def _round_up(x, m):
    return ((x + m - 1) // m) * m


def _pick_tile(dim, candidates):
    """Largest candidate tile that evenly divides `dim`, else the full dim."""
    for c in candidates:
        if dim % c == 0:
            return c
    return dim


# ----------------------- tiled matmul (+bias, +activation) -------------------

def _matmul_bias_act_kernel(x_ref, w_ref, b_ref, o_ref, acc_ref, *, activation):
    @pl.when(pl.program_id(2) == 0)
    def _():
        acc_ref[...] = jnp.zeros_like(acc_ref)

    acc_ref[...] += jnp.dot(x_ref[...], w_ref[...],
                            preferred_element_type=jnp.float32)

    @pl.when(pl.program_id(2) == pl.num_programs(2) - 1)
    def _():
        y = acc_ref[...] + b_ref[...]
        if activation == "relu":
            y = jnp.maximum(y, 0.0)
        elif activation == "sigmoid":
            y = jax.nn.sigmoid(y)
        o_ref[...] = y.astype(o_ref.dtype)


def matmul_bias_act(x, w, b, activation="none"):
    """y = act(x @ w + b), tiled over (M, N, K) with a VMEM f32 accumulator."""
    M, K = x.shape
    K2, N = w.shape
    assert K == K2
    tm = _pick_tile(M, (512, 256, 128))
    tn = _pick_tile(N, (512, 256, 128))
    tk = _pick_tile(K, (2048, 1024, 512, 256))
    grid = (M // tm, N // tn, K // tk)
    return pl.pallas_call(
        functools.partial(_matmul_bias_act_kernel, activation=activation),
        out_shape=jax.ShapeDtypeStruct((M, N), jnp.float32),
        grid_spec=pltpu.PrefetchScalarGridSpec(
            num_scalar_prefetch=0,
            grid=grid,
            in_specs=[
                pl.BlockSpec((tm, tk), lambda i, j, k: (i, k)),
                pl.BlockSpec((tk, tn), lambda i, j, k: (k, j)),
                pl.BlockSpec((1, tn), lambda i, j, k: (0, j)),
            ],
            out_specs=pl.BlockSpec((tm, tn), lambda i, j, k: (i, j)),
            scratch_shapes=[pltpu.VMEM((tm, tn), jnp.float32)],
        ),
        compiler_params=pltpu.CompilerParams(
            dimension_semantics=("parallel", "parallel", "arbitrary"),
            vmem_limit_bytes=_VMEM_LIMIT,
        ),
    )(x, w, b.reshape(1, N))


# --------------------- fused seq2seq LSTM (enc + dec + fc) -------------------

def _seq2seq_lstm_kernel(z_flat_ref, z_last_ref, ewih_ref, ewhh_ref, eb_ref,
                         dwcat_ref, db_ref, fcw_ref, fcb_ref,
                         out_ref, gx_sc, xh_sc, *, hidden_dim):
    B, Z = z_last_ref.shape
    H = hidden_dim
    T = z_flat_ref.shape[0] // B
    T_out = out_ref.shape[0] // B

    def gate_update(gates, c):
        # PyTorch gate order i, f, g, o.
        # NOTE: with H=32 these are 32-lane sub-slices of one 128-lane vreg; pad H
        # to a multiple of 128 for realistic sizes to keep gate boundaries aligned.
        i = jax.nn.sigmoid(gates[:, 0:H])
        f = jax.nn.sigmoid(gates[:, H:2 * H])
        g = jnp.tanh(gates[:, 2 * H:3 * H])
        o = jax.nn.sigmoid(gates[:, 3 * H:4 * H])
        c_new = f * c + i * g
        h_new = o * jnp.tanh(c_new)
        return h_new, c_new

    # ---- encoder LSTM: hoisted input projection -----------------------------
    # All T steps' x @ W_ih computed as ONE batched MXU matmul (T*B rows); only the
    # h @ W_hh recurrence stays inside the (fully unrolled) time loop.
    gx_sc[...] = jnp.dot(z_flat_ref[...], ewih_ref[...],
                         preferred_element_type=jnp.float32) + eb_ref[...]
    ewhh = ewhh_ref[...]

    h = jnp.zeros((B, H), jnp.float32)
    c = jnp.zeros((B, H), jnp.float32)
    for t in range(T):  # static trip count -> fully unrolled for LLO visibility
        gates = gx_sc[t * B:(t + 1) * B, :] + jnp.dot(
            h, ewhh, preferred_element_type=jnp.float32)
        h, c = gate_update(gates, c)

    # ---- decoder LSTM + fc head ---------------------------------------------
    # Fused gate matmul: one [x, h] @ [W_ih; W_hh] per step (assembled in a tiny
    # VMEM scratch) instead of two separate dots.
    dwcat = dwcat_ref[...]
    db = db_ref[...]
    fcw = fcw_ref[...]
    fcb = fcb_ref[...]

    z = z_last_ref[...]
    for t in range(T_out):  # static trip count -> fully unrolled; feed prediction back
        xh_sc[:, 0:Z] = z
        xh_sc[:, Z:Z + H] = h
        gates = jnp.dot(xh_sc[...], dwcat, preferred_element_type=jnp.float32) + db
        h, c = gate_update(gates, c)
        y = jnp.dot(h, fcw, preferred_element_type=jnp.float32) + fcb   # (B, Z)
        # out_ref is a single VMEM-resident block; its HBM writeback is one dense
        # DMA at kernel end, so these per-step stores never hit HBM individually.
        out_ref[t * B:(t + 1) * B, :] = y.astype(out_ref.dtype)
        z = y


def seq2seq_lstm(params, zvects, hidden_dim, target_len):
    """zvects: (B, T, Z) -> decoder predictions (B, target_len, Z)."""
    B, T, Z = zvects.shape
    z_flat = zvects.transpose(1, 0, 2).reshape(T * B, Z)   # time-major, flattened
    z_last = zvects[:, -1, :]
    # Pre-concatenate the decoder gate weights once: [W_ih; W_hh] -> (Z+H, 4H).
    dec_wcat = jnp.concatenate([params["ldec_wih"], params["ldec_whh"]], axis=0)

    vspec = pl.BlockSpec(memory_space=pltpu.MemorySpace.VMEM)  # whole-array, VMEM resident
    out_flat = pl.pallas_call(
        functools.partial(_seq2seq_lstm_kernel, hidden_dim=hidden_dim),
        out_shape=jax.ShapeDtypeStruct((target_len * B, Z), jnp.float32),
        in_specs=[vspec] * 9,
        out_specs=vspec,
        scratch_shapes=[
            pltpu.VMEM((T * B, 4 * hidden_dim), jnp.float32),   # hoisted gates_x
            pltpu.VMEM((B, Z + hidden_dim), jnp.float32),       # [x, h] staging
        ],
        compiler_params=pltpu.CompilerParams(vmem_limit_bytes=_VMEM_LIMIT),
    )(z_flat, z_last,
      params["lenc_wih"], params["lenc_whh"], params["lenc_b"].reshape(1, -1),
      dec_wcat, params["ldec_b"].reshape(1, -1),
      params["fc_w"], params["fc_b"].reshape(1, -1))
    # (T_out*B, Z) time-major -> (B, T_out, Z) batch-major.
    return out_flat.reshape(target_len, B, Z).transpose(1, 0, 2)


# ------------------------ fused VAE decoder (fc1 + fc2) ----------------------

def _vae_decode_kernel(z_ref, w1_ref, b1_ref, w2_ref, b2_ref, o_ref, feat_sc):
    # feat = relu(z @ w1 + b1) depends only on the row block -> compute it once per
    # row block (at output-column index 0) and keep it resident in VMEM scratch.
    @pl.when(pl.program_id(1) == 0)
    def _():
        h = jnp.dot(z_ref[...], w1_ref[...],
                    preferred_element_type=jnp.float32) + b1_ref[...]
        feat_sc[...] = jnp.maximum(h, 0.0)

    y = jnp.dot(feat_sc[...], w2_ref[...],
                preferred_element_type=jnp.float32) + b2_ref[...]
    o_ref[...] = jax.nn.sigmoid(y).astype(o_ref.dtype)


def vae_decode(params, z, C, H, W):
    """z: (M, Z) -> images (M, C, H, W); fc1+ReLU and fc2+sigmoid fused in one kernel."""
    M, Zd = z.shape
    w1 = params["dec_fc1_w"]
    w2 = params["dec_fc2_w"]
    F = w1.shape[1]
    N2 = w2.shape[1]
    tm = _pick_tile(M, (256, 128))
    tn2 = _pick_tile(N2, (512, 256, 128))
    grid = (M // tm, N2 // tn2)
    # TODO(synk): for very large feat_dim the (Zd, F)/(F, tn2) weight blocks would also
    # need K-axis tiling; at these shapes they comfortably fit VMEM on every generation.
    img = pl.pallas_call(
        _vae_decode_kernel,
        out_shape=jax.ShapeDtypeStruct((M, N2), jnp.float32),
        grid_spec=pltpu.PrefetchScalarGridSpec(
            num_scalar_prefetch=0,
            grid=grid,
            in_specs=[
                pl.BlockSpec((tm, Zd), lambda i, j: (i, 0)),
                pl.BlockSpec((Zd, F), lambda i, j: (0, 0)),
                pl.BlockSpec((1, F), lambda i, j: (0, 0)),
                pl.BlockSpec((F, tn2), lambda i, j: (0, j)),
                pl.BlockSpec((1, tn2), lambda i, j: (0, j)),
            ],
            out_specs=pl.BlockSpec((tm, tn2), lambda i, j: (i, j)),
            scratch_shapes=[pltpu.VMEM((tm, F), jnp.float32)],
        ),
        compiler_params=pltpu.CompilerParams(
            dimension_semantics=("parallel", "arbitrary"),
            vmem_limit_bytes=_VMEM_LIMIT,
        ),
    )(z, w1, params["dec_fc1_b"].reshape(1, F), w2, params["dec_fc2_b"].reshape(1, N2))
    return img.reshape(M, C, H, W)


# ------------------------------ JAX glue -------------------------------------

def im2col_3x3_s2(x, k_pad):
    """x: (N, C, H, W), 3x3 conv, stride 2, pad 1 -> (N*Ho*Wo, k_pad) patch matrix."""
    N, C, H, W = x.shape
    assert H % 2 == 0 and W % 2 == 0, "stride-2 / pad-1 / k-3 path assumes even H, W"
    Ho, Wo = H // 2, W // 2
    xp = jnp.pad(x, ((0, 0), (0, 0), (1, 1), (1, 1)))
    cols = []
    for ki in range(3):
        for kj in range(3):
            cols.append(xp[:, :, ki:ki + 2 * Ho:2, kj:kj + 2 * Wo:2])  # (N,C,Ho,Wo)
    p = jnp.stack(cols, axis=2)            # (N, C, 9, Ho, Wo)
    p = p.transpose(0, 3, 4, 1, 2)         # (N, Ho, Wo, C, 9)
    p = p.reshape(N * Ho * Wo, C * 9)
    if k_pad > C * 9:                       # pad K (27 -> 32) for sublane alignment
        p = jnp.pad(p, ((0, 0), (0, k_pad - C * 9)))
    return p, (N, Ho, Wo)


def vae_encode(params, frames):
    """frames: (N, C, H, W) -> z (N, Z).

    Deterministic path (z = mu): the logvar head is a dead matmul in this forward,
    so it is skipped entirely (compute enc_lv only when training the VAE)."""
    k_pad, conv_out = params["conv_w"].shape
    patches, (N, Ho, Wo) = im2col_3x3_s2(frames, k_pad)
    # conv(3x3, stride 2) + ReLU as one tiled im2col matmul
    feat = matmul_bias_act(patches, params["conv_w"], params["conv_b"], "relu")
    feat = feat.reshape(N, Ho * Wo * conv_out)             # NHWC flatten (XLA reshape)
    # TODO(synk): the (N*Ho*Wo, conv_out) feat round-trip through HBM could be avoided
    # by fusing the mu head into the conv kernel; kept as two kernels to stay within
    # Mosaic-supported in-kernel reshapes.
    mu = matmul_bias_act(feat, params["enc_mu_w"], params["enc_mu_b"])
    return mu


def cnnlstm_forward(params, video, target_len, hidden_dim):
    B, T, C, H, W = video.shape
    frames = video.reshape(B * T, C, H, W)                 # flatten(0, 1)
    z = vae_encode(params, frames)                         # cnnvae.encode (z = mu)
    zvects = z.reshape(B, T, -1)                           # unflatten

    # encoder LSTM -> (h, c); decoder LSTM + fc head with predictions fed back
    # (teacher_forcing / target_seq path not implemented — see TODO at top).
    lstm_out = seq2seq_lstm(params, zvects, hidden_dim, target_len)   # (B, T_out, Z)

    lstm_flat = lstm_out.reshape(B * target_len, -1)       # flatten(0, 1)
    predicted = vae_decode(params, lstm_flat, C, H, W)     # cnnvae.decode
    return predicted.reshape(B, target_len, C, H, W)       # unflatten


def init_params(key, z_dim, hidden_dim, C, H, W, conv_out=8):
    Ho, Wo = H // 2, W // 2
    feat_dim = conv_out * Ho * Wo
    img_dim = C * H * W
    k_pad = _round_up(C * 3 * 3, 8)        # im2col K padded 27 -> 32
    ks = jax.random.split(key, 16)
    n = lambda k, s: (0.1 * jax.random.normal(k, s)).astype(jnp.float32)
    return {
        # synthetic VAE encoder (conv 3x3/s2 as im2col matmul + fc heads);
        # conv_w rows beyond C*9 only multiply zero-padded patch columns.
        "conv_w": n(ks[0], (k_pad, conv_out)),
        "conv_b": n(ks[1], (conv_out,)),
        "enc_mu_w": n(ks[2], (feat_dim, z_dim)),
        "enc_mu_b": n(ks[3], (z_dim,)),
        # logvar head kept for completeness; never evaluated in the deterministic forward
        "enc_lv_w": n(ks[4], (feat_dim, z_dim)),
        "enc_lv_b": n(ks[5], (z_dim,)),
        # synthetic VAE decoder
        "dec_fc1_w": n(ks[6], (z_dim, feat_dim)),
        "dec_fc1_b": n(ks[7], (feat_dim,)),
        "dec_fc2_w": n(ks[8], (feat_dim, img_dim)),
        "dec_fc2_b": n(ks[9], (img_dim,)),
        # lstm_enc / lstm_dec (gate order i,f,g,o; bias = b_ih + b_hh combined)
        "lenc_wih": n(ks[10], (z_dim, 4 * hidden_dim)),
        "lenc_whh": n(ks[11], (hidden_dim, 4 * hidden_dim)),
        "lenc_b": n(ks[12], (4 * hidden_dim,)),
        "ldec_wih": n(ks[13], (z_dim, 4 * hidden_dim)),
        "ldec_whh": n(ks[14], (hidden_dim, 4 * hidden_dim)),
        "ldec_b": n(ks[15], (4 * hidden_dim,)),
        # fc: hidden_dim -> z_dim
        "fc_w": n(jax.random.fold_in(key, 100), (hidden_dim, z_dim)),
        "fc_b": n(jax.random.fold_in(key, 101), (z_dim,)),
    }


if __name__ == "__main__":
    B, T, C, H, W = 2, 8, 3, 16, 16
    Z_DIM, HIDDEN = 16, 32
    TARGET_LEN = 4

    key = jax.random.PRNGKey(0)
    k_params, k_video = jax.random.split(key)
    params = init_params(k_params, Z_DIM, HIDDEN, C, H, W)
    video = jax.random.normal(k_video, (B, T, C, H, W), dtype=jnp.float32)

    fwd = jax.jit(functools.partial(cnnlstm_forward,
                                    target_len=TARGET_LEN, hidden_dim=HIDDEN))
    out = fwd(params, video)
    out = jax.block_until_ready(out)
    assert out.shape == (B, TARGET_LEN, C, H, W), out.shape
    assert jnp.all(jnp.isfinite(out))
    print("KERNEL_OK")
</pallas_src>

<mosaic_0001>
module attributes {stable_mosaic.version = 11 : i64} {
  func.func @_matmul_bias_act_kernel(%arg0: i32, %arg1: i32, %arg2: i32, %arg3: memref<512x32xf32, #tpu.memory_space<vmem>>, %arg4: memref<32x8xf32, #tpu.memory_space<vmem>>, %arg5: memref<1x8xf32, #tpu.memory_space<vmem>>, %arg6: memref<512x8xf32, #tpu.memory_space<vmem>>, %arg7: memref<512x8xf32, #tpu.memory_space<vmem>>) attributes {dimension_semantics = [#tpu.dimension_semantics<parallel>, #tpu.dimension_semantics<parallel>, #tpu.dimension_semantics<arbitrary>], iteration_bounds = array<i64: 2, 1, 1>, scalar_prefetch = 0 : i64, scratch_operands = 1 : i64, tpu.core_type = #tpu.core_type<tc>, window_params = [{transform_indices = @transform_0, window_bounds = array<i64: 512, 32>}, {transform_indices = @transform_1, window_bounds = array<i64: 32, 8>}, {transform_indices = @transform_2, window_bounds = array<i64: 1, 8>}, {transform_indices = @transform_3, window_bounds = array<i64: 512, 8>}]} {
    %c0_i32 = arith.constant 0 : i32
    %0 = arith.cmpi eq, %arg2, %c0_i32 : i32
    %1 = arith.extui %0 : i1 to i32
    %c0_i32_0 = arith.constant 0 : i32
    %2 = arith.cmpi ne, %1, %c0_i32_0 : i32
    scf.if %2 {
      %cst_10 = arith.constant 0.000000e+00 : f32
      %12 = vector.broadcast %cst_10 : f32 to vector<512x8xf32>
      %c0_11 = arith.constant 0 : index
      %c0_12 = arith.constant 0 : index
      %13 = vector.load %arg7[%c0_11, %c0_12] : memref<512x8xf32, #tpu.memory_space<vmem>>, vector<512x8xf32>
      tpu.vector_store %arg7[%c0_11, %c0_12], %12 {strides = array<i32>} : memref<512x8xf32, #tpu.memory_space<vmem>>, vector<512x8xf32>,
    } else {
    }
    %c0 = arith.constant 0 : index
    %c0_1 = arith.constant 0 : index
    %3 = vector.load %arg7[%c0, %c0_1] : memref<512x8xf32, #tpu.memory_space<vmem>>, vector<512x8xf32>
    %c0_2 = arith.constant 0 : index
    %c0_3 = arith.constant 0 : index
    %4 = vector.load %arg3[%c0_2, %c0_3] : memref<512x32xf32, #tpu.memory_space<vmem>>, vector<512x32xf32>
    %c0_4 = arith.constant 0 : index
    %c0_5 = arith.constant 0 : index
    %5 = vector.load %arg4[%c0_4, %c0_5] : memref<32x8xf32, #tpu.memory_space<vmem>>, vector<32x8xf32>
    %cst = arith.constant dense<0.000000e+00> : vector<512x8xf32>
    %6 = tpu.matmul %4, %5, %cst {dimension_numbers = #tpu.dot_dimension_numbers<[1], [0], [0], [1], [0, 0, 1, 1], [], []>} : vector<512x32xf32>, vector<32x8xf32>, vector<512x8xf32> -> vector<512x8xf32>
    %7 = arith.addf %3, %6 : vector<512x8xf32>
    %c0_6 = arith.constant 0 : index
    %c0_7 = arith.constant 0 : index
    %8 = vector.load %arg7[%c0_6, %c0_7] : memref<512x8xf32, #tpu.memory_space<vmem>>, vector<512x8xf32>
    tpu.vector_store %arg7[%c0_6, %c0_7], %7 {strides = array<i32>} : memref<512x8xf32, #tpu.memory_space<vmem>>, vector<512x8xf32>,
    %c0_i32_8 = arith.constant 0 : i32
    %9 = arith.cmpi eq, %arg2, %c0_i32_8 : i32
    %10 = arith.extui %9 : i1 to i32
    %c0_i32_9 = arith.constant 0 : i32
    %11 = arith.cmpi ne, %10, %c0_i32_9 : i32
    scf.if %11 {
      %c0_10 = arith.constant 0 : index
      %c0_11 = arith.constant 0 : index
      %12 = vector.load %arg7[%c0_10, %c0_11] : memref<512x8xf32, #tpu.memory_space<vmem>>, vector<512x8xf32>
      %c0_12 = arith.constant 0 : index
      %c0_13 = arith.constant 0 : index
      %13 = vector.load %arg5[%c0_12, %c0_13] : memref<1x8xf32, #tpu.memory_space<vmem>>, vector<1x8xf32>
      %14 = vector.broadcast %13 : vector<1x8xf32> to vector<512x8xf32>
      %15 = arith.addf %12, %14 : vector<512x8xf32>
      %cst_14 = arith.constant 0.000000e+00 : f32
      %16 = vector.broadcast %cst_14 : f32 to vector<512x8xf32>
      %17 = arith.maximumf %15, %16 : vector<512x8xf32>
      %c0_15 = arith.constant 0 : index
      %c0_16 = arith.constant 0 : index
      %18 = vector.load %arg6[%c0_15, %c0_16] : memref<512x8xf32, #tpu.memory_space<vmem>>, vector<512x8xf32>
      tpu.vector_store %arg6[%c0_15, %c0_16], %17 {strides = array<i32>} : memref<512x8xf32, #tpu.memory_space<vmem>>, vector<512x8xf32>,
    } else {
    }
    return
  }
  func.func @transform_0(%arg0: i32, %arg1: i32, %arg2: i32) -> (i32, i32) {
    %c0_i32 = arith.constant 0 : i32
    return %arg0, %arg2 : i32, i32
  }
  func.func @transform_1(%arg0: i32, %arg1: i32, %arg2: i32) -> (i32, i32) {
    %c0_i32 = arith.constant 0 : i32
    return %arg2, %arg1 : i32, i32
  }
  func.func @transform_2(%arg0: i32, %arg1: i32, %arg2: i32) -> (i32, i32) {
    %c0_i32 = arith.constant 0 : i32
    %c0_i32_0 = arith.constant 0 : i32
    return %c0_i32, %arg1 : i32, i32
  }
  func.func @transform_3(%arg0: i32, %arg1: i32, %arg2: i32) -> (i32, i32) {
    %c0_i32 = arith.constant 0 : i32
    return %arg0, %arg1 : i32, i32
  }
}

module attributes {stable_mosaic.version = 11 : i64} {
  func.func @_matmul_bias_act_kernel(%arg0: i32, %arg1: i32, %arg2: i32, %arg3: memref<16x512xf32, #tpu.memory_space<vmem>>, %arg4: memref<512x16xf32, #tpu.memory_space<vmem>>, %arg5: memref<1x16xf32, #tpu.memory_space<vmem>>, %arg6: memref<16x16xf32, #tpu.memory_space<vmem>>, %arg7: memref<16x16xf32, #tpu.memory_space<vmem>>) attributes {dimension_semantics = [#tpu.dimension_semantics<parallel>, #tpu.dimension_semantics<parallel>, #tpu.dimension_semantics<arbitrary>], iteration_bounds = array<i64: 1, 1, 1>, scalar_prefetch = 0 : i64, scratch_operands = 1 : i64, tpu.core_type = #tpu.core_type<tc>, window_params = [{transform_indices = @transform_0, window_bounds = array<i64: 16, 512>}, {transform_indices = @transform_1, window_bounds = array<i64: 512, 16>}, {transform_indices = @transform_2, window_bounds = array<i64: 1, 16>}, {transform_indices = @transform_3, window_bounds = array<i64: 16, 16>}]} {
    %c0_i32 = arith.constant 0 : i32
    %0 = arith.cmpi eq, %arg2, %c0_i32 : i32
    %1 = arith.extui %0 : i1 to i32
    %c0_i32_0 = arith.constant 0 : i32
    %2 = arith.cmpi ne, %1, %c0_i32_0 : i32
    scf.if %2 {
      %cst_10 = arith.constant 0.000000e+00 : f32
      %12 = vector.broadcast %cst_10 : f32 to vector<16x16xf32>
      %c0_11 = arith.constant 0 : index
      %c0_12 = arith.constant 0 : index
      %13 = vector.load %arg7[%c0_11, %c0_12] : memref<16x16xf32, #tpu.memory_space<vmem>>, vector<16x16xf32>
      tpu.vector_store %arg7[%c0_11, %c0_12], %12 {strides = array<i32>} : memref<16x16xf32, #tpu.memory_space<vmem>>, vector<16x16xf32>,
    } else {
    }
    %c0 = arith.constant 0 : index
    %c0_1 = arith.constant 0 : index
    %3 = vector.load %arg7[%c0, %c0_1] : memref<16x16xf32, #tpu.memory_space<vmem>>, vector<16x16xf32>
    %c0_2 = arith.constant 0 : index
    %c0_3 = arith.constant 0 : index
    %4 = vector.load %arg3[%c0_2, %c0_3] : memref<16x512xf32, #tpu.memory_space<vmem>>, vector<16x512xf32>
    %c0_4 = arith.constant 0 : index
    %c0_5 = arith.constant 0 : index
    %5 = vector.load %arg4[%c0_4, %c0_5] : memref<512x16xf32, #tpu.memory_space<vmem>>, vector<512x16xf32>
    %cst = arith.constant dense<0.000000e+00> : vector<16x16xf32>
    %6 = tpu.matmul %4, %5, %cst {dimension_numbers = #tpu.dot_dimension_numbers<[1], [0], [0], [1], [0, 0, 1, 1], [], []>} : vector<16x512xf32>, vector<512x16xf32>, vector<16x16xf32> -> vector<16x16xf32>
    %7 = arith.addf %3, %6 : vector<16x16xf32>
    %c0_6 = arith.constant 0 : index
    %c0_7 = arith.constant 0 : index
    %8 = vector.load %arg7[%c0_6, %c0_7] : memref<16x16xf32, #tpu.memory_space<vmem>>, vector<16x16xf32>
    tpu.vector_store %arg7[%c0_6, %c0_7], %7 {strides = array<i32>} : memref<16x16xf32, #tpu.memory_space<vmem>>, vector<16x16xf32>,
    %c0_i32_8 = arith.constant 0 : i32
    %9 = arith.cmpi eq, %arg2, %c0_i32_8 : i32
    %10 = arith.extui %9 : i1 to i32
    %c0_i32_9 = arith.constant 0 : i32
    %11 = arith.cmpi ne, %10, %c0_i32_9 : i32
    scf.if %11 {
      %c0_10 = arith.constant 0 : index
      %c0_11 = arith.constant 0 : index
      %12 = vector.load %arg7[%c0_10, %c0_11] : memref<16x16xf32, #tpu.memory_space<vmem>>, vector<16x16xf32>
      %c0_12 = arith.constant 0 : index
      %c0_13 = arith.constant 0 : index
      %13 = vector.load %arg5[%c0_12, %c0_13] : memref<1x16xf32, #tpu.memory_space<vmem>>, vector<1x16xf32>
      %14 = vector.broadcast %13 : vector<1x16xf32> to vector<16x16xf32>
      %15 = arith.addf %12, %14 : vector<16x16xf32>
      %c0_14 = arith.constant 0 : index
      %c0_15 = arith.constant 0 : index
      %16 = vector.load %arg6[%c0_14, %c0_15] : memref<16x16xf32, #tpu.memory_space<vmem>>, vector<16x16xf32>
      tpu.vector_store %arg6[%c0_14, %c0_15], %15 {strides = array<i32>} : memref<16x16xf32, #tpu.memory_space<vmem>>, vector<16x16xf32>,
    } else {
    }
    return
  }
  func.func @transform_0(%arg0: i32, %arg1: i32, %arg2: i32) -> (i32, i32) {
    %c0_i32 = arith.constant 0 : i32
    return %arg0, %arg2 : i32, i32
  }
  func.func @transform_1(%arg0: i32, %arg1: i32, %arg2: i32) -> (i32, i32) {
    %c0_i32 = arith.constant 0 : i32
    return %arg2, %arg1 : i32, i32
  }
  func.func @transform_2(%arg0: i32, %arg1: i32, %arg2: i32) -> (i32, i32) {
    %c0_i32 = arith.constant 0 : i32
    %c0_i32_0 = arith.constant 0 : i32
    return %c0_i32, %arg1 : i32, i32
  }
  func.func @transform_3(%arg0: i32, %arg1: i32, %arg2: i32) -> (i32, i32) {
    %c0_i32 = arith.constant 0 : i32
    return %arg0, %arg1 : i32, i32
  }
}

module attributes {stable_mosaic.version = 11 : i64} {
  func.func @_seq2seq_lstm_kernel(%arg0: memref<16x16xf32, #tpu.memory_space<vmem>>, %arg1: memref<2x16xf32, #tpu.memory_space<vmem>>, %arg2: memref<16x128xf32, #tpu.memory_space<vmem>>, %arg3: memref<32x128xf32, #tpu.memory_space<vmem>>, %arg4: memref<1x128xf32, #tpu.memory_space<vmem>>, %arg5: memref<48x128xf32, #tpu.memory_space<vmem>>, %arg6: memref<1x128xf32, #tpu.memory_space<vmem>>, %arg7: memref<32x16xf32, #tpu.memory_space<vmem>>, %arg8: memref<1x16xf32, #tpu.memory_space<vmem>>, %arg9: memref<8x16xf32, #tpu.memory_space<vmem>>, %arg10: memref<16x128xf32, #tpu.memory_space<vmem>>, %arg11: memref<2x48xf32, #tpu.memory_space<vmem>>) attributes {dimension_semantics = [], scalar_prefetch = 0 : i64, scratch_operands = 2 : i64, tpu.core_type = #tpu.core_type<tc>} {
    %c0 = arith.constant 0 : index
    %c0_0 = arith.constant 0 : index
    %0 = vector.load %arg0[%c0, %c0_0] : memref<16x16xf32, #tpu.memory_space<vmem>>, vector<16x16xf32>
    %c0_1 = arith.constant 0 : index
    %c0_2 = arith.constant 0 : index
    %1 = vector.load %arg2[%c0_1, %c0_2] : memref<16x128xf32, #tpu.memory_space<vmem>>, vector<16x128xf32>
    %cst = arith.constant dense<0.000000e+00> : vector<16x128xf32>
    %2 = tpu.matmul %0, %1, %cst {dimension_numbers = #tpu.dot_dimension_numbers<[1], [0], [0], [1], [0, 0, 1, 1], [], []>} : vector<16x16xf32>, vector<16x128xf32>, vector<16x128xf32> -> vector<16x128xf32>
    %c0_3 = arith.constant 0 : index
    %c0_4 = arith.constant 0 : index
    %3 = vector.load %arg4[%c0_3, %c0_4] : memref<1x128xf32, #tpu.memory_space<vmem>>, vector<1x128xf32>
    %4 = vector.broadcast %3 : vector<1x128xf32> to vector<16x128xf32>
    %5 = arith.addf %2, %4 : vector<16x128xf32>
    %c0_5 = arith.constant 0 : index
    %c0_6 = arith.constant 0 : index
    %6 = vector.load %arg10[%c0_5, %c0_6] : memref<16x128xf32, #tpu.memory_space<vmem>>, vector<16x128xf32>
    tpu.vector_store %arg10[%c0_5, %c0_6], %5 {strides = array<i32>} : memref<16x128xf32, #tpu.memory_space<vmem>>, vector<16x128xf32>,
    %c0_7 = arith.constant 0 : index
    %c0_8 = arith.constant 0 : index
    %7 = vector.load %arg3[%c0_7, %c0_8] : memref<32x128xf32, #tpu.memory_space<vmem>>, vector<32x128xf32>
    %cst_9 = arith.constant 0.000000e+00 : f32
    %8 = vector.broadcast %cst_9 : f32 to vector<2x32xf32>
    %cst_10 = arith.constant 0.000000e+00 : f32
    %9 = vector.broadcast %cst_10 : f32 to vector<2x32xf32>
    %c0_11 = arith.constant 0 : index
    %c0_12 = arith.constant 0 : index
    %10 = vector.load %arg10[%c0_11, %c0_12] : memref<16x128xf32, #tpu.memory_space<vmem>>, vector<2x128xf32>
    %cst_13 = arith.constant dense<0.000000e+00> : vector<2x128xf32>
    %11 = tpu.matmul %8, %7, %cst_13 {dimension_numbers = #tpu.dot_dimension_numbers<[1], [0], [0], [1], [0, 0, 1, 1], [], []>} : vector<2x32xf32>, vector<32x128xf32>, vector<2x128xf32> -> vector<2x128xf32>
    %12 = arith.addf %10, %11 : vector<2x128xf32>
    %13 = vector.extract_strided_slice %12 {offsets = [0, 0], sizes = [2, 32], strides = [1, 1]} : vector<2x128xf32> to vector<2x32xf32>
    %14 = arith.negf %13 : vector<2x32xf32>
    %15 = math.exp %14 : vector<2x32xf32>
    %cst_14 = arith.constant 1.000000e+00 : f32
    %16 = vector.broadcast %cst_14 : f32 to vector<2x32xf32>
    %17 = arith.addf %16, %15 : vector<2x32xf32>
    %18 = arith.divf %16, %17 : vector<2x32xf32>
    %19 = vector.extract_strided_slice %12 {offsets = [0, 32], sizes = [2, 32], strides = [1, 1]} : vector<2x128xf32> to vector<2x32xf32>
    %20 = arith.negf %19 : vector<2x32xf32>
    %21 = math.exp %20 : vector<2x32xf32>
    %cst_15 = arith.constant 1.000000e+00 : f32
    %22 = vector.broadcast %cst_15 : f32 to vector<2x32xf32>
    %23 = arith.addf %22, %21 : vector<2x32xf32>
    %24 = arith.divf %22, %23 : vector<2x32xf32>
    %25 = vector.extract_strided_slice %12 {offsets = [0, 64], sizes = [2, 32], strides = [1, 1]} : vector<2x128xf32> to vector<2x32xf32>
    %26 = math.tanh %25 : vector<2x32xf32>
    %27 = vector.extract_strided_slice %12 {offsets = [0, 96], sizes = [2, 32], strides = [1, 1]} : vector<2x128xf32> to vector<2x32xf32>
    %28 = arith.negf %27 : vector<2x32xf32>
    %29 = math.exp %28 : vector<2x32xf32>
    %cst_16 = arith.constant 1.000000e+00 : f32
    %30 = vector.broadcast %cst_16 : f32 to vector<2x32xf32>
    %31 = arith.addf %30, %29 : vector<2x32xf32>
    %32 = arith.divf %30, %31 : vector<2x32xf32>
    %33 = arith.mulf %24, %9 : vector<2x32xf32>
    %34 = arith.mulf %18, %26 : vector<2x32xf32>
    %35 = arith.addf %33, %34 : vector<2x32xf32>
    %36 = math.tanh %35 : vector<2x32xf32>
    %37 = arith.mulf %32, %36 : vector<2x32xf32>
    %c2 = arith.constant 2 : index
    %c0_17 = arith.constant 0 : index
    %38 = vector.load %arg10[%c2, %c0_17] : memref<16x128xf32, #tpu.memory_space<vmem>>, vector<2x128xf32>
    %cst_18 = arith.constant dense<0.000000e+00> : vector<2x128xf32>
    %39 = tpu.matmul %37, %7, %cst_18 {dimension_numbers = #tpu.dot_dimension_numbers<[1], [0], [0], [1], [0, 0, 1, 1], [], []>} : vector<2x32xf32>, vector<32x128xf32>, vector<2x128xf32> -> vector<2x128xf32>
    %40 = arith.addf %38, %39 : vector<2x128xf32>
    %41 = vector.extract_strided_slice %40 {offsets = [0, 0], sizes = [2, 32], strides = [1, 1]} : vector<2x128xf32> to vector<2x32xf32>
    %42 = arith.negf %41 : vector<2x32xf32>
    %43 = math.exp %42 : vector<2x32xf32>
    %cst_19 = arith.constant 1.000000e+00 : f32
    %44 = vector.broadcast %cst_19 : f32 to vector<2x32xf32>
    %45 = arith.addf %44, %43 : vector<2x32xf32>
    %46 = arith.divf %44, %45 : vector<2x32xf32>
    %47 = vector.extract_strided_slice %40 {offsets = [0, 32], sizes = [2, 32], strides = [1, 1]} : vector<2x128xf32> to vector<2x32xf32>
    %48 = arith.negf %47 : vector<2x32xf32>
    %49 = math.exp %48 : vector<2x32xf32>
    %cst_20 = arith.constant 1.000000e+00 : f32
    %50 = vector.broadcast %cst_20 : f32 to vector<2x32xf32>
    %51 = arith.addf %50, %49 : vector<2x32xf32>
    %52 = arith.divf %50, %51 : vector<2x32xf32>
    %53 = vector.extract_strided_slice %40 {offsets = [0, 64], sizes = [2, 32], strides = [1, 1]} : vector<2x128xf32> to vector<2x32xf32>
    %54 = math.tanh %53 : vector<2x32xf32>
    %55 = vector.extract_strided_slice %40 {offsets = [0, 96], sizes = [2, 32], strides = [1, 1]} : vector<2x128xf32> to vector<2x32xf32>
    %56 = arith.negf %55 : vector<2x32xf32>
    %57 = math.exp %56 : vector<2x32xf32>
    %cst_21 = arith.constant 1.000000e+00 : f32
    %58 = vector.broadcast %cst_21 : f32 to vector<2x32xf32>
    %59 = arith.addf %58, %57 : vector<2x32xf32>
    %60 = arith.divf %58, %59 : vector<2x32xf32>
    %61 = arith.mulf %52, %35 : vector<2x32xf32>
    %62 = arith.mulf %46, %54 : vector<2x32xf32>
    %63 = arith.addf %61, %62 : vector<2x32xf32>
    %64 = math.tanh %63 : vector<2x32xf32>
    %65 = arith.mulf %60, %64 : vector<2x32xf32>
    %c4 = arith.constant 4 : index
    %c0_22 = arith.constant 0 : index
    %66 = vector.load %arg10[%c4, %c0_22] : memref<16x128xf32, #tpu.memory_space<vmem>>, vector<2x128xf32>
    %cst_23 = arith.constant dense<0.000000e+00> : vector<2x128xf32>
    %67 = tpu.matmul %65, %7, %cst_23 {dimension_numbers = #tpu.dot_dimension_numbers<[1], [0], [0], [1], [0, 0, 1, 1], [], []>} : vector<2x32xf32>, vector<32x128xf32>, vector<2x128xf32> -> vector<2x128xf32>
    %68 = arith.addf %66, %67 : vector<2x128xf32>
    %69 = vector.extract_strided_slice %68 {offsets = [0, 0], sizes = [2, 32], strides = [1, 1]} : vector<2x128xf32> to vector<2x32xf32>
    %70 = arith.negf %69 : vector<2x32xf32>
    %71 = math.exp %70 : vector<2x32xf32>
    %cst_24 = arith.constant 1.000000e+00 : f32
    %72 = vector.broadcast %cst_24 : f32 to vector<2x32xf32>
    %73 = arith.addf %72, %71 : vector<2x32xf32>
    %74 = arith.divf %72, %73 : vector<2x32xf32>
    %75 = vector.extract_strided_slice %68 {offsets = [0, 32], sizes = [2, 32], strides = [1, 1]} : vector<2x128xf32> to vector<2x32xf32>
    %76 = arith.negf %75 : vector<2x32xf32>
    %77 = math.exp %76 : vector<2x32xf32>
    %cst_25 = arith.constant 1.000000e+00 : f32
    %78 = vector.broadcast %cst_25 : f32 to vector<2x32xf32>
    %79 = arith.addf %78, %77 : vector<2x32xf32>
    %80 = arith.divf %78, %79 : vector<2x32xf32>
    %81 = vector.extract_strided_slice %68 {offsets = [0, 64], sizes = [2, 32], strides = [1, 1]} : vector<2x128xf32> to vector<2x32xf32>
    %82 = math.tanh %81 : vector<2x32xf32>
    %83 = vector.extract_strided_slice %68 {offsets = [0, 96], sizes = [2, 32], strides = [1, 1]} : vector<2x128xf32> to vector<2x32xf32>
    %84 = arith.negf %83 : vector<2x32xf32>
    %85 = math.exp %84 : vector<2x32xf32>
    %cst_26 = arith.constant 1.000000e+00 : f32
    %86 = vector.broadcast %cst_26 : f32 to vector<2x32xf32>
    %87 = arith.addf %86, %85 : vector<2x32xf32>
    %88 = arith.divf %86, %87 : vector<2x32xf32>
    %89 = arith.mulf %80, %63 : vector<2x32xf32>
    %90 = arith.mulf %74, %82 : vector<2x32xf32>
    %91 = arith.addf %89, %90 : vector<2x32xf32>
    %92 = math.tanh %91 : vector<2x32xf32>
    %93 = arith.mulf %88, %92 : vector<2x32xf32>
    %c6 = arith.constant 6 : index
    %c0_27 = arith.constant 0 : index
    %94 = vector.load %arg10[%c6, %c0_27] : memref<16x128xf32, #tpu.memory_space<vmem>>, vector<2x128xf32>
    %cst_28 = arith.constant dense<0.000000e+00> : vector<2x128xf32>
    %95 = tpu.matmul %93, %7, %cst_28 {dimension_numbers = #tpu.dot_dimension_numbers<[1], [0], [0], [1], [0, 0, 1, 1], [], []>} : vector<2x32xf32>, vector<32x128xf32>, vector<2x128xf32> -> vector<2x128xf32>
    %96 = arith.addf %94, %95 : vector<2x128xf32>
    %97 = vector.extract_strided_slice %96 {offsets = [0, 0], sizes = [2, 32], strides = [1, 1]} : vector<2x128xf32> to vector<2x32xf32>
    %98 = arith.negf %97 : vector<2x32xf32>
    %99 = math.exp %98 : vector<2x32xf32>
    %cst_29 = arith.constant 1.000000e+00 : f32
    %100 = vector.broadcast %cst_29 : f32 to vector<2x32xf32>
    %101 = arith.addf %100, %99 : vector<2x32xf32>
    %102 = arith.divf %100, %101 : vector<2x32xf32>
    %103 = vector.extract_strided_slice %96 {offsets = [0, 32], sizes = [2, 32], strides = [1, 1]} : vector<2x128xf32> to vector<2x32xf32>
    %104 = arith.negf %103 : vector<2x32xf32>
    %105 = math.exp %104 : vector<2x32xf32>
    %cst_30 = arith.constant 1.000000e+00 : f32
    %106 = vector.broadcast %cst_30 : f32 to vector<2x32xf32>
    %107 = arith.addf %106, %105 : vector<2x32xf32>
    %108 = arith.divf %106, %107 : vector<2x32xf32>
    %109 = vector.extract_strided_slice %96 {offsets = [0, 64], sizes = [2, 32], strides = [1, 1]} : vector<2x128xf32> to vector<2x32xf32>
    %110 = math.tanh %109 : vector<2x32xf32>
    %111 = vector.extract_strided_slice %96 {offsets = [0, 96], sizes = [2, 32], strides = [1, 1]} : vector<2x128xf32> to vector<2x32xf32>
    %112 = arith.negf %111 : vector<2x32xf32>
    %113 = math.exp %112 : vector<2x32xf32>
    %cst_31 = arith.constant 1.000000e+00 : f32
    %114 = vector.broadcast %cst_31 : f32 to vector<2x32xf32>
    %115 = arith.addf %114, %113 : vector<2x32xf32>
    %116 = arith.divf %114, %115 : vector<2x32xf32>
    %117 = arith.mulf %108, %91 : vector<2x32xf32>
    %118 = arith.mulf %102, %110 : vector<2x32xf32>
    %119 = arith.addf %117, %118 : vector<2x32xf32>
    %120 = math.tanh %119 : vector<2x32xf32>
    %121 = arith.mulf %116, %120 : vector<2x32xf32>
    %c8 = arith.constant 8 : index
    %c0_32 = arith.constant 0 : index
    %122 = vector.load %arg10[%c8, %c0_32] : memref<16x128xf32, #tpu.memory_space<vmem>>, vector<2x128xf32>
    %cst_33 = arith.constant dense<0.000000e+00> : vector<2x128xf32>
    %123 = tpu.matmul %121, %7, %cst_33 {dimension_numbers = #tpu.dot_dimension_numbers<[1], [0], [0], [1], [0, 0, 1, 1], [], []>} : vector<2x32xf32>, vector<32x128xf32>, vector<2x128xf32> -> vector<2x128xf32>
    %124 = arith.addf %122, %123 : vector<2x128xf32>
    %125 = vector.extract_strided_slice %124 {offsets = [0, 0], sizes = [2, 32], strides = [1, 1]} : vector<2x128xf32> to vector<2x32xf32>
    %126 = arith.negf %125 : vector<2x32xf32>
    %127 = math.exp %126 : vector<2x32xf32>
    %cst_34 = arith.constant 1.000000e+00 : f32
    %128 = vector.broadcast %cst_34 : f32 to vector<2x32xf32>
    %129 = arith.addf %128, %127 : vector<2x32xf32>
    %130 = arith.divf %128, %129 : vector<2x32xf32>
    %131 = vector.extract_strided_slice %124 {offsets = [0, 32], sizes = [2, 32], strides = [1, 1]} : vector<2x128xf32> to vector<2x32xf32>
    %132 = arith.negf %131 : vector<2x32xf32>
    %133 = math.exp %132 : vector<2x32xf32>
    %cst_35 = arith.constant 1.000000e+00 : f32
    %134 = vector.broadcast %cst_35 : f32 to vector<2x32xf32>
    %135 = arith.addf %134, %133 : vector<2x32xf32>
    %136 = arith.divf %134, %135 : vector<2x32xf32>
    %137 = vector.extract_strided_slice %124 {offsets = [0, 64], sizes = [2, 32], strides = [1, 1]} : vector<2x128xf32> to vector<2x32xf32>
    %138 = math.tanh %137 : vector<2x32xf32>
    %139 = vector.extract_strided_slice %124 {offsets = [0, 96], sizes = [2, 32], strides = [1, 1]} : vector<2x128xf32> to vector<2x32xf32>
    %140 = arith.negf %139 : vector<2x32xf32>
    %141 = math.exp %140 : vector<2x32xf32>
    %cst_36 = arith.constant 1.000000e+00 : f32
    %142 = vector.broadcast %cst_36 : f32 to vector<2x32xf32>
    %143 = arith.addf %142, %141 : vector<2x32xf32>
    %144 = arith.divf %142, %143 : vector<2x32xf32>
    %145 = arith.mulf %136, %119 : vector<2x32xf32>
    %146 = arith.mulf %130, %138 : vector<2x32xf32>
    %147 = arith.addf %145, %146 : vector<2x32xf32>
    %148 = math.tanh %147 : vector<2x32xf32>
    %149 = arith.mulf %144, %148 : vector<2x32xf32>
    %c10 = arith.constant 10 : index
    %c0_37 = arith.constant 0 : index
    %150 = vector.load %arg10[%c10, %c0_37] : memref<16x128xf32, #tpu.memory_space<vmem>>, vector<2x128xf32>
    %cst_38 = arith.constant dense<0.000000e+00> : vector<2x128xf32>
    %151 = tpu.matmul %149, %7, %cst_38 {dimension_numbers = #tpu.dot_dimension_numbers<[1], [0], [0], [1], [0, 0, 1, 1], [], []>} : vector<2x32xf32>, vector<32x128xf32>, vector<2x128xf32> -> vector<2x128xf32>
    %152 = arith.addf %150, %151 : vector<2x128xf32>
    %153 = vector.extract_strided_slice %152 {offsets = [0, 0], sizes = [2, 32], strides = [1, 1]} : vector<2x128xf32> to vector<2x32xf32>
    %154 = arith.negf %153 : vector<2x32xf32>
    %155 = math.exp %154 : vector<2x32xf32>
    %cst_39 = arith.constant 1.000000e+00 : f32
    %156 = vector.broadcast %cst_39 : f32 to vector<2x32xf32>
    %157 = arith.addf %156, %155 : vector<2x32xf32>
    %158 = arith.divf %156, %157 : vector<2x32xf32>
    %159 = vector.extract_strided_slice %152 {offsets = [0, 32], sizes = [2, 32], strides = [1, 1]} : vector<2x128xf32> to vector<2x32xf32>
    %160 = arith.negf %159 : vector<2x32xf32>
    %161 = math.exp %160 : vector<2x32xf32>
    %cst_40 = arith.constant 1.000000e+00 : f32
    %162 = vector.broadcast %cst_40 : f32 to vector<2x32xf32>
    %163 = arith.addf %162, %161 : vector<2x32xf32>
    %164 = arith.divf %162, %163 : vector<2x32xf32>
    %165 = vector.extract_strided_slice %152 {offsets = [0, 64], sizes = [2, 32], strides = [1, 1]} : vector<2x128xf32> to vector<2x32xf32>
    %166 = math.tanh %165 : vector<2x32xf32>
    %167 = vector.extract_strided_slice %152 {offsets = [0, 96], sizes = [2, 32], strides = [1, 1]} : vector<2x128xf32> to vector<2x32xf32>
    %168 = arith.negf %167 : vector<2x32xf32>
    %169 = math.exp %168 : vector<2x32xf32>
    %cst_41 = arith.constant 1.000000e+00 : f32
    %170 = vector.broadcast %cst_41 : f32 to vector<2x32xf32>
    %171 = arith.addf %170, %169 : vector<2x32xf32>
    %172 = arith.divf %170, %171 : vector<2x32xf32>
    %173 = arith.mulf %164, %147 : vector<2x32xf32>
    %174 = arith.mulf %158, %166 : vector<2x32xf32>
    %175 = arith.addf %173, %174 : vector<2x32xf32>
    %176 = math.tanh %175 : vector<2x32xf32>
    %177 = arith.mulf %172, %176 : vector<2x32xf32>
    %c12 = arith.constant 12 : index
    %c0_42 = arith.constant 0 : index
    %178 = vector.load %arg10[%c12, %c0_42] : memref<16x128xf32, #tpu.memory_space<vmem>>, vector<2x128xf32>
    %cst_43 = arith.constant dense<0.000000e+00> : vector<2x128xf32>
    %179 = tpu.matmul %177, %7, %cst_43 {dimension_numbers = #tpu.dot_dimension_numbers<[1], [0], [0], [1], [0, 0, 1, 1], [], []>} : vector<2x32xf32>, vector<32x128xf32>, vector<2x128xf32> -> vector<2x128xf32>
    %180 = arith.addf %178, %179 : vector<2x128xf32>
    %181 = vector.extract_strided_slice %180 {offsets = [0, 0], sizes = [2, 32], strides = [1, 1]} : vector<2x128xf32> to vector<2x32xf32>
    %182 = arith.negf %181 : vector<2x32xf32>
    %183 = math.exp %182 : vector<2x32xf32>
    %cst_44 = arith.constant 1.000000e+00 : f32
    %184 = vector.broadcast %cst_44 : f32 to vector<2x32xf32>
    %185 = arith.addf %184, %183 : vector<2x32xf32>
    %186 = arith.divf %184, %185 : vector<2x32xf32>
    %187 = vector.extract_strided_slice %180 {offsets = [0, 32], sizes = [2, 32], strides = [1, 1]} : vector<2x128xf32> to vector<2x32xf32>
    %188 = arith.negf %187 : vector<2x32xf32>
    %189 = math.exp %188 : vector<2x32xf32>
    %cst_45 = arith.constant 1.000000e+00 : f32
    %190 = vector.broadcast %cst_45 : f32 to vector<2x32xf32>
    %191 = arith.addf %190, %189 : vector<2x32xf32>
    %192 = arith.divf %190, %191 : vector<2x32xf32>
    %193 = vector.extract_strided_slice %180 {offsets = [0, 64], sizes = [2, 32], strides = [1, 1]} : vector<2x128xf32> to vector<2x32xf32>
    %194 = math.tanh %193 : vector<2x32xf32>
    %195 = vector.extract_strided_slice %180 {offsets = [0, 96], sizes = [2, 32], strides = [1, 1]} : vector<2x128xf32> to vector<2x32xf32>
    %196 = arith.negf %195 : vector<2x32xf32>
    %197 = math.exp %196 : vector<2x32xf32>
    %cst_46 = arith.constant 1.000000e+00 : f32
    %198 = vector.broadcast %cst_46 : f32 to vector<2x32xf32>
    %199 = arith.addf %198, %197 : vector<2x32xf32>
    %200 = arith.divf %198, %199 : vector<2x32xf32>
    %201 = arith.mulf %192, %175 : vector<2x32xf32>
    %202 = arith.mulf %186, %194 : vector<2x32xf32>
    %203 = arith.addf %201, %202 : vector<2x32xf32>
    %204 = math.tanh %203 : vector<2x32xf32>
    %205 = arith.mulf %200, %204 : vector<2x32xf32>
    %c14 = arith.constant 14 : index
    %c0_47 = arith.constant 0 : index
    %206 = vector.load %arg10[%c14, %c0_47] : memref<16x128xf32, #tpu.memory_space<vmem>>, vector<2x128xf32>
    %cst_48 = arith.constant dense<0.000000e+00> : vector<2x128xf32>
    %207 = tpu.matmul %205, %7, %cst_48 {dimension_numbers = #tpu.dot_dimension_numbers<[1], [0], [0], [1], [0, 0, 1, 1], [], []>} : vector<2x32xf32>, vector<32x128xf32>, vector<2x128xf32> -> vector<2x128xf32>
    %208 = arith.addf %206, %207 : vector<2x128xf32>
    %209 = vector.extract_strided_slice %208 {offsets = [0, 0], sizes = [2, 32], strides = [1, 1]} : vector<2x128xf32> to vector<2x32xf32>
    %210 = arith.negf %209 : vector<2x32xf32>
    %211 = math.exp %210 : vector<2x32xf32>
    %cst_49 = arith.constant 1.000000e+00 : f32
    %212 = vector.broadcast %cst_49 : f32 to vector<2x32xf32>
    %213 = arith.addf %212, %211 : vector<2x32xf32>
    %214 = arith.divf %212, %213 : vector<2x32xf32>
    %215 = vector.extract_strided_slice %208 {offsets = [0, 32], sizes = [2, 32], strides = [1, 1]} : vector<2x128xf32> to vector<2x32xf32>
    %216 = arith.negf %215 : vector<2x32xf32>
    %217 = math.exp %216 : vector<2x32xf32>
    %cst_50 = arith.constant 1.000000e+00 : f32
    %218 = vector.broadcast %cst_50 : f32 to vector<2x32xf32>
    %219 = arith.addf %218, %217 : vector<2x32xf32>
    %220 = arith.divf %218, %219 : vector<2x32xf32>
    %221 = vector.extract_strided_slice %208 {offsets = [0, 64], sizes = [2, 32], strides = [1, 1]} : vector<2x128xf32> to vector<2x32xf32>
    %222 = math.tanh %221 : vector<2x32xf32>
    %223 = vector.extract_strided_slice %208 {offsets = [0, 96], sizes = [2, 32], strides = [1, 1]} : vector<2x128xf32> to vector<2x32xf32>
    %224 = arith.negf %223 : vector<2x32xf32>
    %225 = math.exp %224 : vector<2x32xf32>
    %cst_51 = arith.constant 1.000000e+00 : f32
    %226 = vector.broadcast %cst_51 : f32 to vector<2x32xf32>
    %227 = arith.addf %226, %225 : vector<2x32xf32>
    %228 = arith.divf %226, %227 : vector<2x32xf32>
    %229 = arith.mulf %220, %203 : vector<2x32xf32>
    %230 = arith.mulf %214, %222 : vector<2x32xf32>
    %231 = arith.addf %229, %230 : vector<2x32xf32>
    %232 = math.tanh %231 : vector<2x32xf32>
    %233 = arith.mulf %228, %232 : vector<2x32xf32>
    %c0_52 = arith.constant 0 : index
    %c0_53 = arith.constant 0 : index
    %234 = vector.load %arg5[%c0_52, %c0_53] : memref<48x128xf32, #tpu.memory_space<vmem>>, vector<48x128xf32>
    %c0_54 = arith.constant 0 : index
    %c0_55 = arith.constant 0 : index
    %235 = vector.load %arg6[%c0_54, %c0_55] : memref<1x128xf32, #tpu.memory_space<vmem>>, vector<1x128xf32>
    %c0_56 = arith.constant 0 : index
    %c0_57 = arith.constant 0 : index
    %236 = vector.load %arg7[%c0_56, %c0_57] : memref<32x16xf32, #tpu.memory_space<vmem>>, vector<32x16xf32>
    %c0_58 = arith.constant 0 : index
    %c0_59 = arith.constant 0 : index
    %237 = vector.load %arg8[%c0_58, %c0_59] : memref<1x16xf32, #tpu.memory_space<vmem>>, vector<1x16xf32>
    %c0_60 = arith.constant 0 : index
    %c0_61 = arith.constant 0 : index
    %238 = vector.load %arg1[%c0_60, %c0_61] : memref<2x16xf32, #tpu.memory_space<vmem>>, vector<2x16xf32>
    %c0_62 = arith.constant 0 : index
    %c0_63 = arith.constant 0 : index
    %239 = vector.load %arg11[%c0_62, %c0_63] : memref<2x48xf32, #tpu.memory_space<vmem>>, vector<2x16xf32>
    tpu.vector_store %arg11[%c0_62, %c0_63], %238 {strides = array<i32>} : memref<2x48xf32, #tpu.memory_space<vmem>>, vector<2x16xf32>,
    %c0_64 = arith.constant 0 : index
    %c16 = arith.constant 16 : index
    %240 = vector.load %arg11[%c0_64, %c16] : memref<2x48xf32, #tpu.memory_space<vmem>>, vector<2x32xf32>
    tpu.vector_store %arg11[%c0_64, %c16], %233 {strides = array<i32>} : memref<2x48xf32, #tpu.memory_space<vmem>>, vector<2x32xf32>,
    %c0_65 = arith.constant 0 : index
    %c0_66 = arith.constant 0 : index
    %241 = vector.load %arg11[%c0_65, %c0_66] : memref<2x48xf32, #tpu.memory_space<vmem>>, vector<2x48xf32>
    %cst_67 = arith.constant dense<0.000000e+00> : vector<2x128xf32>
    %242 = tpu.matmul %241, %234, %cst_67 {dimension_numbers = #tpu.dot_dimension_numbers<[1], [0], [0], [1], [0, 0, 1, 1], [], []>} : vector<2x48xf32>, vector<48x128xf32>, vector<2x128xf32> -> vector<2x128xf32>
    %243 = vector.broadcast %235 : vector<1x128xf32> to vector<2x128xf32>
    %244 = arith.addf %242, %243 : vector<2x128xf32>
    %245 = vector.extract_strided_slice %244 {offsets = [0, 0], sizes = [2, 32], strides = [1, 1]} : vector<2x128xf32> to vector<2x32xf32>
    %246 = arith.negf %245 : vector<2x32xf32>
    %247 = math.exp %246 : vector<2x32xf32>
    %cst_68 = arith.constant 1.000000e+00 : f32
    %248 = vector.broadcast %cst_68 : f32 to vector<2x32xf32>
    %249 = arith.addf %248, %247 : vector<2x32xf32>
    %250 = arith.divf %248, %249 : vector<2x32xf32>
    %251 = vector.extract_strided_slice %244 {offsets = [0, 32], sizes = [2, 32], strides = [1, 1]} : vector<2x128xf32> to vector<2x32xf32>
    %252 = arith.negf %251 : vector<2x32xf32>
    %253 = math.exp %252 : vector<2x32xf32>
    %cst_69 = arith.constant 1.000000e+00 : f32
    %254 = vector.broadcast %cst_69 : f32 to vector<2x32xf32>
    %255 = arith.addf %254, %253 : vector<2x32xf32>
    %256 = arith.divf %254, %255 : vector<2x32xf32>
    %257 = vector.extract_strided_slice %244 {offsets = [0, 64], sizes = [2, 32], strides = [1, 1]} : vector<2x128xf32> to vector<2x32xf32>
    %258 = math.tanh %257 : vector<2x32xf32>
    %259 = vector.extract_strided_slice %244 {offsets = [0, 96], sizes = [2, 32], strides = [1, 1]} : vector<2x128xf32> to vector<2x32xf32>
    %260 = arith.negf %259 : vector<2x32xf32>
    %261 = math.exp %260 : vector<2x32xf32>
    %cst_70 = arith.constant 1.000000e+00 : f32
    %262 = vector.broadcast %cst_70 : f32 to vector<2x32xf32>
    %263 = arith.addf %262, %261 : vector<2x32xf32>
    %264 = arith.divf %262, %263 : vector<2x32xf32>
    %265 = arith.mulf %256, %231 : vector<2x32xf32>
    %266 = arith.mulf %250, %258 : vector<2x32xf32>
    %267 = arith.addf %265, %266 : vector<2x32xf32>
    %268 = math.tanh %267 : vector<2x32xf32>
    %269 = arith.mulf %264, %268 : vector<2x32xf32>
    %cst_71 = arith.constant dense<0.000000e+00> : vector<2x16xf32>
    %270 = tpu.matmul %269, %236, %cst_71 {dimension_numbers = #tpu.dot_dimension_numbers<[1], [0], [0], [1], [0, 0, 1, 1], [], []>} : vector<2x32xf32>, vector<32x16xf32>, vector<2x16xf32> -> vector<2x16xf32>
    %271 = vector.broadcast %237 : vector<1x16xf32> to vector<2x16xf32>
    %272 = arith.addf %270, %271 : vector<2x16xf32>
    %c0_72 = arith.constant 0 : index
    %c0_73 = arith.constant 0 : index
    %273 = vector.load %arg9[%c0_72, %c0_73] : memref<8x16xf32, #tpu.memory_space<vmem>>, vector<2x16xf32>
    tpu.vector_store %arg9[%c0_72, %c0_73], %272 {strides = array<i32>} : memref<8x16xf32, #tpu.memory_space<vmem>>, vector<2x16xf32>,
    %c0_74 = arith.constant 0 : index
    %c0_75 = arith.constant 0 : index
    %274 = vector.load %arg11[%c0_74, %c0_75] : memref<2x48xf32, #tpu.memory_space<vmem>>, vector<2x16xf32>
    tpu.vector_store %arg11[%c0_74, %c0_75], %272 {strides = array<i32>} : memref<2x48xf32, #tpu.memory_space<vmem>>, vector<2x16xf32>,
    %c0_76 = arith.constant 0 : index
    %c16_77 = arith.constant 16 : index
    %275 = vector.load %arg11[%c0_76, %c16_77] : memref<2x48xf32, #tpu.memory_space<vmem>>, vector<2x32xf32>
    tpu.vector_store %arg11[%c0_76, %c16_77], %269 {strides = array<i32>} : memref<2x48xf32, #tpu.memory_space<vmem>>, vector<2x32xf32>,
    %c0_78 = arith.constant 0 : index
    %c0_79 = arith.constant 0 : index
    %276 = vector.load %arg11[%c0_78, %c0_79] : memref<2x48xf32, #tpu.memory_space<vmem>>, vector<2x48xf32>
    %cst_80 = arith.constant dense<0.000000e+00> : vector<2x128xf32>
    %277 = tpu.matmul %276, %234, %cst_80 {dimension_numbers = #tpu.dot_dimension_numbers<[1], [0], [0], [1], [0, 0, 1, 1], [], []>} : vector<2x48xf32>, vector<48x128xf32>, vector<2x128xf32> -> vector<2x128xf32>
    %278 = vector.broadcast %235 : vector<1x128xf32> to vector<2x128xf32>
    %279 = arith.addf %277, %278 : vector<2x128xf32>
    %280 = vector.extract_strided_slice %279 {offsets = [0, 0], sizes = [2, 32], strides = [1, 1]} : vector<2x128xf32> to vector<2x32xf32>
    %281 = arith.negf %280 : vector<2x32xf32>
    %282 = math.exp %281 : vector<2x32xf32>
    %cst_81 = arith.constant 1.000000e+00 : f32
    %283 = vector.broadcast %cst_81 : f32 to vector<2x32xf32>
    %284 = arith.addf %283, %282 : vector<2x32xf32>
    %285 = arith.divf %283, %284 : vector<2x32xf32>
    %286 = vector.extract_strided_slice %279 {offsets = [0, 32], sizes = [2, 32], strides = [1, 1]} : vector<2x128xf32> to vector<2x32xf32>
    %287 = arith.negf %286 : vector<2x32xf32>
    %288 = math.exp %287 : vector<2x32xf32>
    %cst_82 = arith.constant 1.000000e+00 : f32
    %289 = vector.broadcast %cst_82 : f32 to vector<2x32xf32>
    %290 = arith.addf %289, %288 : vector<2x32xf32>
    %291 = arith.divf %289, %290 : vector<2x32xf32>
    %292 = vector.extract_strided_slice %279 {offsets = [0, 64], sizes = [2, 32], strides = [1, 1]} : vector<2x128xf32> to vector<2x32xf32>
    %293 = math.tanh %292 : vector<2x32xf32>
    %294 = vector.extract_strided_slice %279 {offsets = [0, 96], sizes = [2, 32], strides = [1, 1]} : vector<2x128xf32> to vector<2x32xf32>
    %295 = arith.negf %294 : vector<2x32xf32>
    %296 = math.exp %295 : vector<2x32xf32>
    %cst_83 = arith.constant 1.000000e+00 : f32
    %297 = vector.broadcast %cst_83 : f32 to vector<2x32xf32>
    %298 = arith.addf %297, %296 : vector<2x32xf32>
    %299 = arith.divf %297, %298 : vector<2x32xf32>
    %300 = arith.mulf %291, %267 : vector<2x32xf32>
    %301 = arith.mulf %285, %293 : vector<2x32xf32>
    %302 = arith.addf %300, %301 : vector<2x32xf32>
    %303 = math.tanh %302 : vector<2x32xf32>
    %304 = arith.mulf %299, %303 : vector<2x32xf32>
    %cst_84 = arith.constant dense<0.000000e+00> : vector<2x16xf32>
    %305 = tpu.matmul %304, %236, %cst_84 {dimension_numbers = #tpu.dot_dimension_numbers<[1], [0], [0], [1], [0, 0, 1, 1], [], []>} : vector<2x32xf32>, vector<32x16xf32>, vector<2x16xf32> -> vector<2x16xf32>
    %306 = vector.broadcast %237 : vector<1x16xf32> to vector<2x16xf32>
    %307 = arith.addf %305, %306 : vector<2x16xf32>
    %c2_85 = arith.constant 2 : index
    %c0_86 = arith.constant 0 : index
    %308 = vector.load %arg9[%c2_85, %c0_86] : memref<8x16xf32, #tpu.memory_space<vmem>>, vector<2x16xf32>
    tpu.vector_store %arg9[%c2_85, %c0_86], %307 {strides = array<i32>} : memref<8x16xf32, #tpu.memory_space<vmem>>, vector<2x16xf32>,
    %c0_87 = arith.constant 0 : index
    %c0_88 = arith.constant 0 : index
    %309 = vector.load %arg11[%c0_87, %c0_88] : memref<2x48xf32, #tpu.memory_space<vmem>>, vector<2x16xf32>
    tpu.vector_store %arg11[%c0_87, %c0_88], %307 {strides = array<i32>} : memref<2x48xf32, #tpu.memory_space<vmem>>, vector<2x16xf32>,
    %c0_89 = arith.constant 0 : index
    %c16_90 = arith.constant 16 : index
    %310 = vector.load %arg11[%c0_89, %c16_90] : memref<2x48xf32, #tpu.memory_space<vmem>>, vector<2x32xf32>
    tpu.vector_store %arg11[%c0_89, %c16_90], %304 {strides = array<i32>} : memref<2x48xf32, #tpu.memory_space<vmem>>, vector<2x32xf32>,
    %c0_91 = arith.constant 0 : index
    %c0_92 = arith.constant 0 : index
    %311 = vector.load %arg11[%c0_91, %c0_92] : memref<2x48xf32, #tpu.memory_space<vmem>>, vector<2x48xf32>
    %cst_93 = arith.constant dense<0.000000e+00> : vector<2x128xf32>
    %312 = tpu.matmul %311, %234, %cst_93 {dimension_numbers = #tpu.dot_dimension_numbers<[1], [0], [0], [1], [0, 0, 1, 1], [], []>} : vector<2x48xf32>, vector<48x128xf32>, vector<2x128xf32> -> vector<2x128xf32>
    %313 = vector.broadcast %235 : vector<1x128xf32> to vector<2x128xf32>
    %314 = arith.addf %312, %313 : vector<2x128xf32>
    %315 = vector.extract_strided_slice %314 {offsets = [0, 0], sizes = [2, 32], strides = [1, 1]} : vector<2x128xf32> to vector<2x32xf32>
    %316 = arith.negf %315 : vector<2x32xf32>
    %317 = math.exp %316 : vector<2x32xf32>
    %cst_94 = arith.constant 1.000000e+00 : f32
    %318 = vector.broadcast %cst_94 : f32 to vector<2x32xf32>
    %319 = arith.addf %318, %317 : vector<2x32xf32>
    %320 = arith.divf %318, %319 : vector<2x32xf32>
    %321 = vector.extract_strided_slice %314 {offsets = [0, 32], sizes = [2, 32], strides = [1, 1]} : vector<2x128xf32> to vector<2x32xf32>
    %322 = arith.negf %321 : vector<2x32xf32>
    %323 = math.exp %322 : vector<2x32xf32>
    %cst_95 = arith.constant 1.000000e+00 : f32
    %324 = vector.broadcast %cst_95 : f32 to vector<2x32xf32>
    %325 = arith.addf %324, %323 : vector<2x32xf32>
    %326 = arith.divf %324, %325 : vector<2x32xf32>
    %327 = vector.extract_strided_slice %314 {offsets = [0, 64], sizes = [2, 32], strides = [1, 1]} : vector<2x128xf32> to vector<2x32xf32>
    %328 = math.tanh %327 : vector<2x32xf32>
    %329 = vector.extract_strided_slice %314 {offsets = [0, 96], sizes = [2, 32], strides = [1, 1]} : vector<2x128xf32> to vector<2x32xf32>
    %330 = arith.negf %329 : vector<2x32xf32>
    %331 = math.exp %330 : vector<2x32xf32>
    %cst_96 = arith.constant 1.000000e+00 : f32
    %332 = vector.broadcast %cst_96 : f32 to vector<2x32xf32>
    %333 = arith.addf %332, %331 : vector<2x32xf32>
    %334 = arith.divf %332, %333 : vector<2x32xf32>
    %335 = arith.mulf %326, %302 : vector<2x32xf32>
    %336 = arith.mulf %320, %328 : vector<2x32xf32>
    %337 = arith.addf %335, %336 : vector<2x32xf32>
    %338 = math.tanh %337 : vector<2x32xf32>
    %339 = arith.mulf %334, %338 : vector<2x32xf32>
    %cst_97 = arith.constant dense<0.000000e+00> : vector<2x16xf32>
    %340 = tpu.matmul %339, %236, %cst_97 {dimension_numbers = #tpu.dot_dimension_numbers<[1], [0], [0], [1], [0, 0, 1, 1], [], []>} : vector<2x32xf32>, vector<32x16xf32>, vector<2x16xf32> -> vector<2x16xf32>
    %341 = vector.broadcast %237 : vector<1x16xf32> to vector<2x16xf32>
    %342 = arith.addf %340, %341 : vector<2x16xf32>
    %c4_98 = arith.constant 4 : index
    %c0_99 = arith.constant 0 : index
    %343 = vector.load %arg9[%c4_98, %c0_99] : memref<8x16xf32, #tpu.memory_space<vmem>>, vector<2x16xf32>
    tpu.vector_store %arg9[%c4_98, %c0_99], %342 {strides = array<i32>} : memref<8x16xf32, #tpu.memory_space<vmem>>, vector<2x16xf32>,
    %c0_100 = arith.constant 0 : index
    %c0_101 = arith.constant 0 : index
    %344 = vector.load %arg11[%c0_100, %c0_101] : memref<2x48xf32, #tpu.memory_space<vmem>>, vector<2x16xf32>
    tpu.vector_store %arg11[%c0_100, %c0_101], %342 {strides = array<i32>} : memref<2x48xf32, #tpu.memory_space<vmem>>, vector<2x16xf32>,
    %c0_102 = arith.constant 0 : index
    %c16_103 = arith.constant 16 : index
    %345 = vector.load %arg11[%c0_102, %c16_103] : memref<2x48xf32, #tpu.memory_space<vmem>>, vector<2x32xf32>
    tpu.vector_store %arg11[%c0_102, %c16_103], %339 {strides = array<i32>} : memref<2x48xf32, #tpu.memory_space<vmem>>, vector<2x32xf32>,
    %c0_104 = arith.constant 0 : index
    %c0_105 = arith.constant 0 : index
    %346 = vector.load %arg11[%c0_104, %c0_105] : memref<2x48xf32, #tpu.memory_space<vmem>>, vector<2x48xf32>
    %cst_106 = arith.constant dense<0.000000e+00> : vector<2x128xf32>
    %347 = tpu.matmul %346, %234, %cst_106 {dimension_numbers = #tpu.dot_dimension_numbers<[1], [0], [0], [1], [0, 0, 1, 1], [], []>} : vector<2x48xf32>, vector<48x128xf32>, vector<2x128xf32> -> vector<2x128xf32>
    %348 = vector.broadcast %235 : vector<1x128xf32> to vector<2x128xf32>
    %349 = arith.addf %347, %348 : vector<2x128xf32>
    %350 = vector.extract_strided_slice %349 {offsets = [0, 0], sizes = [2, 32], strides = [1, 1]} : vector<2x128xf32> to vector<2x32xf32>
    %351 = arith.negf %350 : vector<2x32xf32>
    %352 = math.exp %351 : vector<2x32xf32>
    %cst_107 = arith.constant 1.000000e+00 : f32
    %353 = vector.broadcast %cst_107 : f32 to vector<2x32xf32>
    %354 = arith.addf %353, %352 : vector<2x32xf32>
    %355 = arith.divf %353, %354 : vector<2x32xf32>
    %356 = vector.extract_strided_slice %349 {offsets = [0, 32], sizes = [2, 32], strides = [1, 1]} : vector<2x128xf32> to vector<2x32xf32>
    %357 = arith.negf %356 : vector<2x32xf32>
    %358 = math.exp %357 : vector<2x32xf32>
    %cst_108 = arith.constant 1.000000e+00 : f32
    %359 = vector.broadcast %cst_108 : f32 to vector<2x32xf32>
    %360 = arith.addf %359, %358 : vector<2x32xf32>
    %361 = arith.divf %359, %360 : vector<2x32xf32>
    %362 = vector.extract_strided_slice %349 {offsets = [0, 64], sizes = [2, 32], strides = [1, 1]} : vector<2x128xf32> to vector<2x32xf32>
    %363 = math.tanh %362 : vector<2x32xf32>
    %364 = vector.extract_strided_slice %349 {offsets = [0, 96], sizes = [2, 32], strides = [1, 1]} : vector<2x128xf32> to vector<2x32xf32>
    %365 = arith.negf %364 : vector<2x32xf32>
    %366 = math.exp %365 : vector<2x32xf32>
    %cst_109 = arith.constant 1.000000e+00 : f32
    %367 = vector.broadcast %cst_109 : f32 to vector<2x32xf32>
    %368 = arith.addf %367, %366 : vector<2x32xf32>
    %369 = arith.divf %367, %368 : vector<2x32xf32>
    %370 = arith.mulf %361, %337 : vector<2x32xf32>
    %371 = arith.mulf %355, %363 : vector<2x32xf32>
    %372 = arith.addf %370, %371 : vector<2x32xf32>
    %373 = math.tanh %372 : vector<2x32xf32>
    %374 = arith.mulf %369, %373 : vector<2x32xf32>
    %cst_110 = arith.constant dense<0.000000e+00> : vector<2x16xf32>
    %375 = tpu.matmul %374, %236, %cst_110 {dimension_numbers = #tpu.dot_dimension_numbers<[1], [0], [0], [1], [0, 0, 1, 1], [], []>} : vector<2x32xf32>, vector<32x16xf32>, vector<2x16xf32> -> vector<2x16xf32>
    %376 = vector.broadcast %237 : vector<1x16xf32> to vector<2x16xf32>
    %377 = arith.addf %375, %376 : vector<2x16xf32>
    %c6_111 = arith.constant 6 : index
    %c0_112 = arith.constant 0 : index
    %378 = vector.load %arg9[%c6_111, %c0_112] : memref<8x16xf32, #tpu.memory_space<vmem>>, vector<2x16xf32>
    tpu.vector_store %arg9[%c6_111, %c0_112], %377 {strides = array<i32>} : memref<8x16xf32, #tpu.memory_space<vmem>>, vector<2x16xf32>,
    return
  }
}

module attributes {stable_mosaic.version = 11 : i64} {
  func.func @_vae_decode_kernel(%arg0: i32, %arg1: i32, %arg2: memref<8x16xf32, #tpu.memory_space<vmem>>, %arg3: memref<16x512xf32, #tpu.memory_space<vmem>>, %arg4: memref<1x512xf32, #tpu.memory_space<vmem>>, %arg5: memref<512x256xf32, #tpu.memory_space<vmem>>, %arg6: memref<1x256xf32, #tpu.memory_space<vmem>>, %arg7: memref<8x256xf32, #tpu.memory_space<vmem>>, %arg8: memref<8x512xf32, #tpu.memory_space<vmem>>) attributes {dimension_semantics = [#tpu.dimension_semantics<parallel>, #tpu.dimension_semantics<arbitrary>], iteration_bounds = array<i64: 1, 3>, scalar_prefetch = 0 : i64, scratch_operands = 1 : i64, tpu.core_type = #tpu.core_type<tc>, window_params = [{transform_indices = @transform_0, window_bounds = array<i64: 8, 16>}, {pipeline_mode = #tpu.pipeline_mode<synchronous>, transform_indices = @transform_1, window_bounds = array<i64: 16, 512>}, {pipeline_mode = #tpu.pipeline_mode<synchronous>, transform_indices = @transform_2, window_bounds = array<i64: 1, 512>}, {transform_indices = @transform_3, window_bounds = array<i64: 512, 256>}, {transform_indices = @transform_4, window_bounds = array<i64: 1, 256>}, {transform_indices = @transform_5, window_bounds = array<i64: 8, 256>}]} {
    %c0_i32 = arith.constant 0 : i32
    %0 = arith.cmpi eq, %arg1, %c0_i32 : i32
    %1 = arith.extui %0 : i1 to i32
    %c0_i32_0 = arith.constant 0 : i32
    %2 = arith.cmpi ne, %1, %c0_i32_0 : i32
    scf.if %2 {
      %c0_9 = arith.constant 0 : index
      %c0_10 = arith.constant 0 : index
      %15 = vector.load %arg2[%c0_9, %c0_10] : memref<8x16xf32, #tpu.memory_space<vmem>>, vector<8x16xf32>
      %c0_11 = arith.constant 0 : index
      %c0_12 = arith.constant 0 : index
      %16 = vector.load %arg3[%c0_11, %c0_12] : memref<16x512xf32, #tpu.memory_space<vmem>>, vector<16x512xf32>
      %cst_13 = arith.constant dense<0.000000e+00> : vector<8x512xf32>
      %17 = tpu.matmul %15, %16, %cst_13 {dimension_numbers = #tpu.dot_dimension_numbers<[1], [0], [0], [1], [0, 0, 1, 1], [], []>} : vector<8x16xf32>, vector<16x512xf32>, vector<8x512xf32> -> vector<8x512xf32>
      %c0_14 = arith.constant 0 : index
      %c0_15 = arith.constant 0 : index
      %18 = vector.load %arg4[%c0_14, %c0_15] : memref<1x512xf32, #tpu.memory_space<vmem>>, vector<1x512xf32>
      %19 = vector.broadcast %18 : vector<1x512xf32> to vector<8x512xf32>
      %20 = arith.addf %17, %19 : vector<8x512xf32>
      %cst_16 = arith.constant 0.000000e+00 : f32
      %21 = vector.broadcast %cst_16 : f32 to vector<8x512xf32>
      %22 = arith.maximumf %20, %21 : vector<8x512xf32>
      %c0_17 = arith.constant 0 : index
      %c0_18 = arith.constant 0 : index
      %23 = vector.load %arg8[%c0_17, %c0_18] : memref<8x512xf32, #tpu.memory_space<vmem>>, vector<8x512xf32>
      tpu.vector_store %arg8[%c0_17, %c0_18], %22 {strides = array<i32>} : memref<8x512xf32, #tpu.memory_space<vmem>>, vector<8x512xf32>,
    } else {
    }
    %c0 = arith.constant 0 : index
    %c0_1 = arith.constant 0 : index
    %3 = vector.load %arg8[%c0, %c0_1] : memref<8x512xf32, #tpu.memory_space<vmem>>, vector<8x512xf32>
    %c0_2 = arith.constant 0 : index
    %c0_3 = arith.constant 0 : index
    %4 = vector.load %arg5[%c0_2, %c0_3] : memref<512x256xf32, #tpu.memory_space<vmem>>, vector<512x256xf32>
    %cst = arith.constant dense<0.000000e+00> : vector<8x256xf32>
    %5 = tpu.matmul %3, %4, %cst {dimension_numbers = #tpu.dot_dimension_numbers<[1], [0], [0], [1], [0, 0, 1, 1], [], []>} : vector<8x512xf32>, vector<512x256xf32>, vector<8x256xf32> -> vector<8x256xf32>
    %c0_4 = arith.constant 0 : index
    %c0_5 = arith.constant 0 : index
    %6 = vector.load %arg6[%c0_4, %c0_5] : memref<1x256xf32, #tpu.memory_space<vmem>>, vector<1x256xf32>
    %7 = vector.broadcast %6 : vector<1x256xf32> to vector<8x256xf32>
    %8 = arith.addf %5, %7 : vector<8x256xf32>
    %9 = arith.negf %8 : vector<8x256xf32>
    %10 = math.exp %9 : vector<8x256xf32>
    %cst_6 = arith.constant 1.000000e+00 : f32
    %11 = vector.broadcast %cst_6 : f32 to vector<8x256xf32>
    %12 = arith.addf %11, %10 : vector<8x256xf32>
    %13 = arith.divf %11, %12 : vector<8x256xf32>
    %c0_7 = arith.constant 0 : index
    %c0_8 = arith.constant 0 : index
    %14 = vector.load %arg7[%c0_7, %c0_8] : memref<8x256xf32, #tpu.memory_space<vmem>>, vector<8x256xf32>
    tpu.vector_store %arg7[%c0_7, %c0_8], %13 {strides = array<i32>} : memref<8x256xf32, #tpu.memory_space<vmem>>, vector<8x256xf32>,
    return
  }
  func.func @transform_0(%arg0: i32, %arg1: i32) -> (i32, i32) {
    %c0_i32 = arith.constant 0 : i32
    %c0_i32_0 = arith.constant 0 : i32
    return %arg0, %c0_i32 : i32, i32
  }
  func.func @transform_1(%arg0: i32, %arg1: i32) -> (i32, i32) {
    %c0_i32 = arith.constant 0 : i32
    %c0_i32_0 = arith.constant 0 : i32
    %c0_i32_1 = arith.constant 0 : i32
    return %c0_i32, %c0_i32_0 : i32, i32
  }
  func.func @transform_2(%arg0: i32, %arg1: i32) -> (i32, i32) {
    %c0_i32 = arith.constant 0 : i32
    %c0_i32_0 = arith.constant 0 : i32
    %c0_i32_1 = arith.constant 0 : i32
    return %c0_i32, %c0_i32_0 : i32, i32
  }
  func.func @transform_3(%arg0: i32, %arg1: i32) -> (i32, i32) {
    %c0_i32 = arith.constant 0 : i32
    %c0_i32_0 = arith.constant 0 : i32
    return %c0_i32, %arg1 : i32, i32
  }
  func.func @transform_4(%arg0: i32, %arg1: i32) -> (i32, i32) {
    %c0_i32 = arith.constant 0 : i32
    %c0_i32_0 = arith.constant 0 : i32
    return %c0_i32, %arg1 : i32, i32
  }
  func.func @transform_5(%arg0: i32, %arg1: i32) -> (i32, i32) {
    %c0_i32 = arith.constant 0 : i32
    return %arg0, %arg1 : i32, i32
  }
}

</mosaic_0001>

<llo_original>
// kernel: cnnlstm_forward.4
$region0: #{cnnlstm_forward.4}
  #allocation0 [shape = 'u32[]', space=smem, size = 0x4, offset = 0x4, fixed_abs, tag = 'smem constant byte address 0x4 - core index']
  #allocation1 [shape = 'u32[144,128]{1,0:T(1,128)}', space=vmem, size = 0x12000, scoped, tag = 'internal scratch']
  #allocation2 [shape = 'f32[512,8]{1,0:T(8,128)}', space=vmem, size = 0x40000, scoped, tag = 'scratch operand']
  %s0 = inlined_call_operand.vmem [shape: f32[1024,32], index: 0, kind: input, shape index: {}]
  %s1 = inlined_call_operand.vmem [shape: f32[32,8], index: 1, kind: input, shape index: {}]
  %s2 = inlined_call_operand.vmem [shape: f32[1,8], index: 2, kind: input, shape index: {}]
  %s3 = inlined_call_operand.vmem [shape: f32[1024,8], index: 3, kind: output, shape index: {}]
  %s4 = sld [smem:[#allocation0]]
  $region53: #{cnnlstm_forward.4} parent=0
    _
  %s6 = ssub.s32 1, %s4
  %s7 = scalar_select 0, %s6, %s4
  loop: start=0, step=1, limit=4
  $region2: #{cnnlstm_forward.4} parent=0 // loop_pre_header
    _
  $region3: #{cnnlstm_forward.4} parent=0 // loop_header
    %s9 = sphi 0, %s13
    %p10 = scmp.ge.s32.totalorder %s9, 4
    %s16 = sphi 0, %s35
    %s17 = sphi 0, %s31
    %s18 = sphi 0, %s27
    %s19 = sphi 0, %s16
    %s20 = sphi 0, %s17
    %s21 = sphi 0, %s18
    %s22 = sphi 0, %s19
    %s23 = sphi 0, %s20
    %s24 = sphi 0, %s21
    %s40 = sphi 0, %s42
    %s43 = sphi 0, %s40
    %s44 = sphi 0, %s43
    %s60 = sphi 0, %s44
    %s68 = sphi 0, %s70
    %s71 = sphi 0, %s68
    %s72 = sphi 0, %s71
    %s88 = sphi 0, %s72
    %s94 = sphi 0, %s96
    %s97 = sphi 0, %s94
    %s98 = sphi 0, %s97
    %s114 = sphi 0, %s98
    %s122 = sphi 0, %s124
    %s125 = sphi 0, %s122
    %s126 = sphi 0, %s125
    %s142 = sphi 0, %s126
  $region4: #{cnnlstm_forward.4} parent=0 // loop_header_branch
    %12 = sbr.rel (%p10) target = $region8
  $region5: #{cnnlstm_forward.4} parent=0 // loop_body
    %s14 = ssub.s32 %s9, 1
    %s15 = ssub.s32 %s9, 2
    %s25 = sadd.s32 1, %s18
    %p26 = scmp.ge.s32.totalorder %s25, 1
    %s27 = scalar_select %p26, 0, %s25
    %s28 = sadd.s32 1, %s17
    %s29 = scalar_select %p26, %s28, %s17
    %p30 = scmp.ge.s32.totalorder %s29, 1
    %s31 = scalar_select %p30, 0, %s29
    %s32 = sadd.s32 1, %s16
    %s33 = scalar_select %p30, %s32, %s16
    %p34 = scmp.ge.s32.totalorder %s33, 2
    %s35 = scalar_select %p34, 0, %s33
    %s36 = ssub.s32 %s16, %s35
    %s37 = ssub.s32 %s18, %s27
    %s38 = sor.u32 %s36, %s37
    %p39 = scmp.eq.s32.totalorder %s38, 0
    %s41 = sadd.s32 %s40, 1
    %s42 = scalar_select %p39, %s40, %s41
    %p45 = pneg %p39
    %p46 = scmp.eq.s32.totalorder %s9, 1
    %p47 = por %p45, %p46
    %p48 = scmp.ne.s32.totalorder %s40, %s43
    %p49 = scmp.eq.s32.totalorder %s9, 0
    %p50 = por %p48, %p49
    %p51 = scmp.ne.s32.totalorder %s40, %s43
    %p52 = scmp.eq.s32.totalorder %s14, 1
    %p53 = por %p51, %p52
    %p54 = scmp.ne.s32.totalorder %s43, %s44
    %p55 = scmp.eq.s32.totalorder %s14, 0
    %p56 = por %p54, %p55
    %p57 = scmp.ne.s32.totalorder %s43, %s44
    %p58 = scmp.eq.s32.totalorder %s15, 1
    %p59 = por %p57, %p58
    %p61 = scmp.ne.s32.totalorder %s44, %s60
    %p62 = scmp.eq.s32.totalorder %s15, 0
    %p63 = por %p61, %p62
    %s64 = ssub.s32 %s18, %s27
    %s65 = ssub.s32 %s17, %s31
    %s66 = sor.u32 %s64, %s65
    %p67 = scmp.eq.s32.totalorder %s66, 0
    %s69 = sadd.s32 %s68, 1
    %s70 = scalar_select %p67, %s68, %s69
    %p73 = pneg %p67
    %p74 = scmp.eq.s32.totalorder %s9, 1
    %p75 = por %p73, %p74
    %p76 = scmp.ne.s32.totalorder %s68, %s71
    %p77 = scmp.eq.s32.totalorder %s9, 0
    %p78 = por %p76, %p77
    %p79 = scmp.ne.s32.totalorder %s68, %s71
    %p80 = scmp.eq.s32.totalorder %s14, 1
    %p81 = por %p79, %p80
    %p82 = scmp.ne.s32.totalorder %s71, %s72
    %p83 = scmp.eq.s32.totalorder %s14, 0
    %p84 = por %p82, %p83
    %p85 = scmp.ne.s32.totalorder %s71, %s72
    %p86 = scmp.eq.s32.totalorder %s15, 1
    %p87 = por %p85, %p86
    %p89 = scmp.ne.s32.totalorder %s72, %s88
    %p90 = scmp.eq.s32.totalorder %s15, 0
    %p91 = por %p89, %p90
    %s92 = ssub.s32 %s17, %s31
    %p93 = scmp.eq.s32.totalorder %s92, 0
    %s95 = sadd.s32 %s94, 1
    %s96 = scalar_select %p93, %s94, %s95
    %p99 = pneg %p93
    %p100 = scmp.eq.s32.totalorder %s9, 1
    %p101 = por %p99, %p100
    %p102 = scmp.ne.s32.totalorder %s94, %s97
    %p103 = scmp.eq.s32.totalorder %s9, 0
    %p104 = por %p102, %p103
    %p105 = scmp.ne.s32.totalorder %s94, %s97
    %p106 = scmp.eq.s32.totalorder %s14, 1
    %p107 = por %p105, %p106
    %p108 = scmp.ne.s32.totalorder %s97, %s98
    %p109 = scmp.eq.s32.totalorder %s14, 0
    %p110 = por %p108, %p109
    %p111 = scmp.ne.s32.totalorder %s97, %s98
    %p112 = scmp.eq.s32.totalorder %s15, 1
    %p113 = por %p111, %p112
    %p115 = scmp.ne.s32.totalorder %s98, %s114
    %p116 = scmp.eq.s32.totalorder %s15, 0
    %p117 = por %p115, %p116
    %s118 = ssub.s32 %s16, %s35
    %s119 = ssub.s32 %s17, %s31
    %s120 = sor.u32 %s118, %s119
    %p121 = scmp.eq.s32.totalorder %s120, 0
    %s123 = sadd.s32 %s122, 1
    %s124 = scalar_select %p121, %s122, %s123
    %p127 = pneg %p121
    %p128 = scmp.eq.s32.totalorder %s9, 1
    %p129 = por %p127, %p128
    %p130 = scmp.ne.s32.totalorder %s122, %s125
    %p131 = scmp.eq.s32.totalorder %s9, 0
    %p132 = por %p130, %p131
    %p133 = scmp.ne.s32.totalorder %s122, %s125
    %p134 = scmp.eq.s32.totalorder %s14, 1
    %p135 = por %p133, %p134
    %p136 = scmp.ne.s32.totalorder %s125, %s126
    %p137 = scmp.eq.s32.totalorder %s14, 0
    %p138 = por %p136, %p137
    %p139 = scmp.ne.s32.totalorder %s125, %s126
    %p140 = scmp.eq.s32.totalorder %s15, 1
    %p141 = por %p139, %p140
    %p143 = scmp.ne.s32.totalorder %s126, %s142
    %p144 = scmp.eq.s32.totalorder %s15, 0
    %p145 = por %p143, %p144
    %p146 = scmp.le.s32.totalorder 1, %s9
    %p147 = scmp.lt.s32.totalorder %s9, 3
    %p148 = pnand %p146, %p147
    %p149 = pneg %p148
    // Predicated region
    $region9: #{cnnlstm_forward.4} parent=5 // pred_check
      _
    $region10: #{cnnlstm_forward.4} parent=5 // pred_check_branch
      %151 = sbr.rel (%p148) target = $region12
    $region11: #{cnnlstm_forward.4} parent=5 // pred_region
      %s152 = ssub.s32 %s9, 1
      // Predicated region
      $region13: #{cnnlstm_forward.4} parent=11 // pred_check
        %p153 = pneg %p84
      $region14: #{cnnlstm_forward.4} parent=11 // pred_check_branch
        %155 = sbr.rel (%p153) target = $region16
      $region15: #{cnnlstm_forward.4} parent=11 // pred_region
        %s156 = smul.u32 4, %s21
        %p157 = scmp.lt.s32.totalorder %s156, 3
        %s158 = scalar_select %p157, %s156, 3
        %p159 = scmp.lt.s32.totalorder %s20, 0
        %s160 = scalar_select %p159, %s20, 0
        %s161 = sadd.s32 %s160, %s158
        %s162 = smul.addr %s161, 8
        %s163 = scalar_lea.vmem %s1, %s162
        %s164 = smul.u32 4, %s21
      $region16: #{cnnlstm_forward.4} parent=11 // pred_fallthru
        _
      // Predicated region
      $region17: #{cnnlstm_forward.4} parent=11 // pred_check
        %p165 = pneg %p110
      $region18: #{cnnlstm_forward.4} parent=11 // pred_check_branch
        %167 = sbr.rel (%p165) target = $region20
      $region19: #{cnnlstm_forward.4} parent=11 // pred_region
        %p168 = scmp.lt.s32.totalorder %s20, 0
        %s169 = scalar_select %p168, %s20, 0
        %s170 = scalar_lea.vmem %s2, %s169
      $region20: #{cnnlstm_forward.4} parent=11 // pred_fallthru
        _
    $region12: #{cnnlstm_forward.4} parent=5 // pred_fallthru
      _
    %p171 = scmp.lt.s32.totalorder %s9, 2
    // Predicated region
    $region21: #{cnnlstm_forward.4} parent=5 // pred_check
      %p172 = pneg %p171
    $region22: #{cnnlstm_forward.4} parent=5 // pred_check_branch
      %174 = sbr.rel (%p172) target = $region24
    $region23: #{cnnlstm_forward.4} parent=5 // pred_region
      // Predicated region
      $region25: #{cnnlstm_forward.4} parent=23 // pred_check
        %p175 = pneg %p50
      $region26: #{cnnlstm_forward.4} parent=23 // pred_check_branch
        %177 = sbr.rel (%p175) target = $region28
      $region27: #{cnnlstm_forward.4} parent=23 // pred_region
        %s178 = smul.u32 64, %s16
        %p179 = scmp.lt.s32.totalorder %s178, 127
        %s180 = scalar_select %p179, %s178, 127
        %p181 = scmp.lt.s32.totalorder %s18, 0
        %s182 = scalar_select %p181, %s18, 0
        %s183 = sadd.s32 %s182, %s180
        %s184 = smul.addr %s183, 8
        %s185 = scalar_lea.vmem %s0, %s184
        %s186 = smul.u32 64, %s16
      $region28: #{cnnlstm_forward.4} parent=23 // pred_fallthru
        _
    $region24: #{cnnlstm_forward.4} parent=5 // pred_fallthru
      _
    %p187 = scmp.le.s32.totalorder 1, %s9
    %p188 = scmp.lt.s32.totalorder %s9, 3
    %p189 = pnand %p187, %p188
    %p190 = pneg %p189
    // Predicated region
    $region29: #{cnnlstm_forward.4} parent=5 // pred_check
      _
    $region30: #{cnnlstm_forward.4} parent=5 // pred_check_branch
      %192 = sbr.rel (%p189) target = $region32
    $region31: #{cnnlstm_forward.4} parent=5 // pred_region
      %s193 = ssub.s32 %s9, 1
      %s194 = smul.u32 64, %s19
      %p195 = scmp.lt.s32.totalorder %s194, 127
      %s196 = scalar_select %p195, %s194, 127
      %p197 = scmp.lt.s32.totalorder %s21, 0
      %s198 = scalar_select %p197, %s21, 0
      %s199 = sadd.s32 %s198, %s196
      %s200 = smul.addr %s199, 8
      %s201 = scalar_lea.vmem %s0, %s200
      %p202 = pneg %p56
      %p203 = pneg %p53
      %s204 = smul.u32 4, %s21
      %p205 = scmp.lt.s32.totalorder %s204, 3
      %s206 = scalar_select %p205, %s204, 3
      %p207 = scmp.lt.s32.totalorder %s20, 0
      %s208 = scalar_select %p207, %s20, 0
      %s209 = sadd.s32 %s208, %s206
      %s210 = smul.addr %s209, 8
      %s211 = scalar_lea.vmem %s1, %s210
      %p212 = pneg %p84
      %p213 = pneg %p81
      %p214 = scmp.lt.s32.totalorder %s20, 0
      %s215 = scalar_select %p214, %s20, 0
      %s216 = scalar_lea.vmem %s2, %s215
      %p217 = pneg %p110
      %p218 = pneg %p107
      %p219 = pneg %p138
      %p220 = pneg %p135
      %s221 = smul.u32 64, %s19
      %p222 = scmp.lt.s32.totalorder %s221, 127
      %s223 = scalar_select %p222, %s221, 127
      %p224 = scmp.lt.s32.totalorder %s20, 0
      %s225 = scalar_select %p224, %s20, 0
      %s226 = sadd.s32 %s225, %s223
      %s227 = smul.addr %s226, 8
      %s228 = scalar_lea.vmem %s3, %s227
      %s229 = smul.u32 64, %s19
      %p230 = scmp.lt.s32.totalorder %s229, 127
      %s231 = scalar_select %p230, %s229, 127
      %p232 = scmp.lt.s32.totalorder %s21, 0
      %s233 = scalar_select %p232, %s21, 0
      %s234 = sadd.s32 %s233, %s231
      %s235 = smul.addr %s234, 8
      %s236 = scalar_lea.vmem %s0, %s235
      %s237 = smul.u32 64, %s19
      %s238 = smul.u32 4, %s21
      %p239 = scmp.lt.s32.totalorder %s238, 3
      %s240 = scalar_select %p239, %s238, 3
      %p241 = scmp.lt.s32.totalorder %s20, 0
      %s242 = scalar_select %p241, %s20, 0
      %s243 = sadd.s32 %s242, %s240
      %s244 = smul.addr %s243, 8
      %s245 = scalar_lea.vmem %s1, %s244
      %s246 = smul.u32 4, %s21
      %p247 = scmp.lt.s32.totalorder %s20, 0
      %s248 = scalar_select %p247, %s20, 0
      %s249 = scalar_lea.vmem %s2, %s248
      %s250 = smul.u32 64, %s19
      %p251 = scmp.lt.s32.totalorder %s250, 127
      %s252 = scalar_select %p251, %s250, 127
      %p253 = scmp.lt.s32.totalorder %s20, 0
      %s254 = scalar_select %p253, %s20, 0
      %s255 = sadd.s32 %s254, %s252
      %s256 = smul.addr %s255, 8
      %s257 = scalar_lea.vmem %s3, %s256
      %s258 = smul.u32 64, %s19
      %p259 = scmp.eq.s32.totalorder %s21, 0
      // Predicated region
      $region33: #{cnnlstm_forward.4} parent=31 // pred_check
        %p260 = pneg %p259
      $region34: #{cnnlstm_forward.4} parent=31 // pred_check_branch
        %262 = sbr.rel (%p260) target = $region36
      $region35: #{cnnlstm_forward.4} parent=31 // pred_region
        %vm263 = vcmask 64512
        %264 = vst.msk [vmem:[#allocation2] sm:$0xff] %vm263, 0.0
        %265 = vst.msk [vmem:[#allocation2 + $0x8] sm:$0xff] %vm263, 0.0
        %266 = vst.msk [vmem:[#allocation2 + $0x10] sm:$0xff] %vm263, 0.0
        %267 = vst.msk [vmem:[#allocation2 + $0x18] sm:$0xff] %vm263, 0.0
        %268 = vst.msk [vmem:[#allocation2 + $0x20] sm:$0xff] %vm263, 0.0
        %269 = vst.msk [vmem:[#allocation2 + $0x28] sm:$0xff] %vm263, 0.0
        %270 = vst.msk [vmem:[#allocation2 + $0x30] sm:$0xff] %vm263, 0.0
        %271 = vst.msk [vmem:[#allocation2 + $0x38] sm:$0xff] %vm263, 0.0
        %272 = vst.msk [vmem:[#allocation2 + $0x40] sm:$0xff] %vm263, 0.0
        %273 = vst.msk [vmem:[#allocation2 + $0x48] sm:$0xff] %vm263, 0.0
        %274 = vst.msk [vmem:[#allocation2 + $0x50] sm:$0xff] %vm263, 0.0
        %275 = vst.msk [vmem:[#allocation2 + $0x58] sm:$0xff] %vm263, 0.0
        %276 = vst.msk [vmem:[#allocation2 + $0x60] sm:$0xff] %vm263, 0.0
        %277 = vst.msk [vmem:[#allocation2 + $0x68] sm:$0xff] %vm263, 0.0
        %278 = vst.msk [vmem:[#allocation2 + $0x70] sm:$0xff] %vm263, 0.0
        %279 = vst.msk [vmem:[#allocation2 + $0x78] sm:$0xff] %vm263, 0.0
        %280 = vst.msk [vmem:[#allocation2 + $0x80] sm:$0xff] %vm263, 0.0
        %281 = vst.msk [vmem:[#allocation2 + $0x88] sm:$0xff] %vm263, 0.0
        %282 = vst.msk [vmem:[#allocation2 + $0x90] sm:$0xff] %vm263, 0.0
        %283 = vst.msk [vmem:[#allocation2 + $0x98] sm:$0xff] %vm263, 0.0
        %284 = vst.msk [vmem:[#allocation2 + $0xa0] sm:$0xff] %vm263, 0.0
        %285 = vst.msk [vmem:[#allocation2 + $0xa8] sm:$0xff] %vm263, 0.0
        %286 = vst.msk [vmem:[#allocation2 + $0xb0] sm:$0xff] %vm263, 0.0
        %287 = vst.msk [vmem:[#allocation2 + $0xb8] sm:$0xff] %vm263, 0.0
        %288 = vst.msk [vmem:[#allocation2 + $0xc0] sm:$0xff] %vm263, 0.0
        %289 = vst.msk [vmem:[#allocation2 + $0xc8] sm:$0xff] %vm263, 0.0
        %290 = vst.msk [vmem:[#allocation2 + $0xd0] sm:$0xff] %vm263, 0.0
        %291 = vst.msk [vmem:[#allocation2 + $0xd8] sm:$0xff] %vm263, 0.0
        %292 = vst.msk [vmem:[#allocation2 + $0xe0] sm:$0xff] %vm263, 0.0
        %293 = vst.msk [vmem:[#allocation2 + $0xe8] sm:$0xff] %vm263, 0.0
        %294 = vst.msk [vmem:[#allocation2 + $0xf0] sm:$0xff] %vm263, 0.0
        %295 = vst.msk [vmem:[#allocation2 + $0xf8] sm:$0xff] %vm263, 0.0
        %296 = vst.msk [vmem:[#allocation2 + $0x100] sm:$0xff] %vm263, 0.0
        %297 = vst.msk [vmem:[#allocation2 + $0x108] sm:$0xff] %vm263, 0.0
        %298 = vst.msk [vmem:[#allocation2 + $0x110] sm:$0xff] %vm263, 0.0
        %299 = vst.msk [vmem:[#allocation2 + $0x118] sm:$0xff] %vm263, 0.0
        %300 = vst.msk [vmem:[#allocation2 + $0x120] sm:$0xff] %vm263, 0.0
        %301 = vst.msk [vmem:[#allocation2 + $0x128] sm:$0xff] %vm263, 0.0
        %302 = vst.msk [vmem:[#allocation2 + $0x130] sm:$0xff] %vm263, 0.0
        %303 = vst.msk [vmem:[#allocation2 + $0x138] sm:$0xff] %vm263, 0.0
        %304 = vst.msk [vmem:[#allocation2 + $0x140] sm:$0xff] %vm263, 0.0
        %305 = vst.msk [vmem:[#allocation2 + $0x148] sm:$0xff] %vm263, 0.0
        %306 = vst.msk [vmem:[#allocation2 + $0x150] sm:$0xff] %vm263, 0.0
        %307 = vst.msk [vmem:[#allocation2 + $0x158] sm:$0xff] %vm263, 0.0
        %308 = vst.msk [vmem:[#allocation2 + $0x160] sm:$0xff] %vm263, 0.0
        %309 = vst.msk [vmem:[#allocation2 + $0x168] sm:$0xff] %vm263, 0.0
        %310 = vst.msk [vmem:[#allocation2 + $0x170] sm:$0xff] %vm263, 0.0
        %311 = vst.msk [vmem:[#allocation2 + $0x178] sm:$0xff] %vm263, 0.0
        %312 = vst.msk [vmem:[#allocation2 + $0x180] sm:$0xff] %vm263, 0.0
        %313 = vst.msk [vmem:[#allocation2 + $0x188] sm:$0xff] %vm263, 0.0
        %314 = vst.msk [vmem:[#allocation2 + $0x190] sm:$0xff] %vm263, 0.0
        %315 = vst.msk [vmem:[#allocation2 + $0x198] sm:$0xff] %vm263, 0.0
        %316 = vst.msk [vmem:[#allocation2 + $0x1a0] sm:$0xff] %vm263, 0.0
        %317 = vst.msk [vmem:[#allocation2 + $0x1a8] sm:$0xff] %vm263, 0.0
        %318 = vst.msk [vmem:[#allocation2 + $0x1b0] sm:$0xff] %vm263, 0.0
        %319 = vst.msk [vmem:[#allocation2 + $0x1b8] sm:$0xff] %vm263, 0.0
        %320 = vst.msk [vmem:[#allocation2 + $0x1c0] sm:$0xff] %vm263, 0.0
        %321 = vst.msk [vmem:[#allocation2 + $0x1c8] sm:$0xff] %vm263, 0.0
        %322 = vst.msk [vmem:[#allocation2 + $0x1d0] sm:$0xff] %vm263, 0.0
        %323 = vst.msk [vmem:[#allocation2 + $0x1d8] sm:$0xff] %vm263, 0.0
        %324 = vst.msk [vmem:[#allocation2 + $0x1e0] sm:$0xff] %vm263, 0.0
        %325 = vst.msk [vmem:[#allocation2 + $0x1e8] sm:$0xff] %vm263, 0.0
        %326 = vst.msk [vmem:[#allocation2 + $0x1f0] sm:$0xff] %vm263, 0.0
        %327 = vst.msk [vmem:[#allocation2 + $0x1f8] sm:$0xff] %vm263, 0.0
      $region36: #{cnnlstm_forward.4} parent=31 // pred_fallthru
        _
      %v328 = vld [vmem:[#allocation2] sm:$0xff]
      %v329 = vld [vmem:[#allocation2 + $0x8] sm:$0xff]
      %v330 = vld [vmem:[#allocation2 + $0x10] sm:$0xff]
      %v331 = vld [vmem:[#allocation2 + $0x18] sm:$0xff]
      %v332 = vld [vmem:[#allocation2 + $0x20] sm:$0xff]
      %v333 = vld [vmem:[#allocation2 + $0x28] sm:$0xff]
      %v334 = vld [vmem:[#allocation2 + $0x30] sm:$0xff]
      %v335 = vld [vmem:[#allocation2 + $0x38] sm:$0xff]
      %v336 = vld [vmem:[#allocation2 + $0x40] sm:$0xff]
      %v337 = vld [vmem:[#allocation2 + $0x48] sm:$0xff]
      %v338 = vld [vmem:[#allocation2 + $0x50] sm:$0xff]
      %v339 = vld [vmem:[#allocation2 + $0x58] sm:$0xff]
      %v340 = vld [vmem:[#allocation2 + $0x60] sm:$0xff]
      %v341 = vld [vmem:[#allocation2 + $0x68] sm:$0xff]
      %v342 = vld [vmem:[#allocation2 + $0x70] sm:$0xff]
      %v343 = vld [vmem:[#allocation2 + $0x78] sm:$0xff]
      %v344 = vld [vmem:[#allocation2 + $0x80] sm:$0xff]
      %v345 = vld [vmem:[#allocation2 + $0x88] sm:$0xff]
      %v346 = vld [vmem:[#allocation2 + $0x90] sm:$0xff]
      %v347 = vld [vmem:[#allocation2 + $0x98] sm:$0xff]
      %v348 = vld [vmem:[#allocation2 + $0xa0] sm:$0xff]
      %v349 = vld [vmem:[#allocation2 + $0xa8] sm:$0xff]
      %v350 = vld [vmem:[#allocation2 + $0xb0] sm:$0xff]
      %v351 = vld [vmem:[#allocation2 + $0xb8] sm:$0xff]
      %v352 = vld [vmem:[#allocation2 + $0xc0] sm:$0xff]
      %v353 = vld [vmem:[#allocation2 + $0xc8] sm:$0xff]
      %v354 = vld [vmem:[#allocation2 + $0xd0] sm:$0xff]
      %v355 = vld [vmem:[#allocation2 + $0xd8] sm:$0xff]
      %v356 = vld [vmem:[#allocation2 + $0xe0] sm:$0xff]
      %v357 = vld [vmem:[#allocation2 + $0xe8] sm:$0xff]
      %v358 = vld [vmem:[#allocation2 + $0xf0] sm:$0xff]
      %v359 = vld [vmem:[#allocation2 + $0xf8] sm:$0xff]
      %v360 = vld [vmem:[#allocation2 + $0x100] sm:$0xff]
      %v361 = vld [vmem:[#allocation2 + $0x108] sm:$0xff]
      %v362 = vld [vmem:[#allocation2 + $0x110] sm:$0xff]
      %v363 = vld [vmem:[#allocation2 + $0x118] sm:$0xff]
      %v364 = vld [vmem:[#allocation2 + $0x120] sm:$0xff]
      %v365 = vld [vmem:[#allocation2 + $0x128] sm:$0xff]
      %v366 = vld [vmem:[#allocation2 + $0x130] sm:$0xff]
      %v367 = vld [vmem:[#allocation2 + $0x138] sm:$0xff]
      %v368 = vld [vmem:[#allocation2 + $0x140] sm:$0xff]
      %v369 = vld [vmem:[#allocation2 + $0x148] sm:$0xff]
      %v370 = vld [vmem:[#allocation2 + $0x150] sm:$0xff]
      %v371 = vld [vmem:[#allocation2 + $0x158] sm:$0xff]
      %v372 = vld [vmem:[#allocation2 + $0x160] sm:$0xff]
      %v373 = vld [vmem:[#allocation2 + $0x168] sm:$0xff]
      %v374 = vld [vmem:[#allocation2 + $0x170] sm:$0xff]
      %v375 = vld [vmem:[#allocation2 + $0x178] sm:$0xff]
      %v376 = vld [vmem:[#allocation2 + $0x180] sm:$0xff]
      %v377 = vld [vmem:[#allocation2 + $0x188] sm:$0xff]
      %v378 = vld [vmem:[#allocation2 + $0x190] sm:$0xff]
      %v379 = vld [vmem:[#allocation2 + $0x198] sm:$0xff]
      %v380 = vld [vmem:[#allocation2 + $0x1a0] sm:$0xff]
      %v381 = vld [vmem:[#allocation2 + $0x1a8] sm:$0xff]
      %v382 = vld [vmem:[#allocation2 + $0x1b0] sm:$0xff]
      %v383 = vld [vmem:[#allocation2 + $0x1b8] sm:$0xff]
      %v384 = vld [vmem:[#allocation2 + $0x1c0] sm:$0xff]
      %v385 = vld [vmem:[#allocation2 + $0x1c8] sm:$0xff]
      %v386 = vld [vmem:[#allocation2 + $0x1d0] sm:$0xff]
      %v387 = vld [vmem:[#allocation2 + $0x1d8] sm:$0xff]
      %v388 = vld [vmem:[#allocation2 + $0x1e0] sm:$0xff]
      %v389 = vld [vmem:[#allocation2 + $0x1e8] sm:$0xff]
      %v390 = vld [vmem:[#allocation2 + $0x1f0] sm:$0xff]
      %v391 = vld [vmem:[#allocation2 + $0x1f8] sm:$0xff]
      %v392 = vld [vmem:[%s236] sm:$0xff]
      %v393 = vld [vmem:[%s236 + $0x8] sm:$0xff]
      %v394 = vld [vmem:[%s236 + $0x10] sm:$0xff]
      %v395 = vld [vmem:[%s236 + $0x18] sm:$0xff]
      %v396 = vld [vmem:[%s236 + $0x20] sm:$0xff]
      %v397 = vld [vmem:[%s236 + $0x28] sm:$0xff]
      %v398 = vld [vmem:[%s236 + $0x30] sm:$0xff]
      %v399 = vld [vmem:[%s236 + $0x38] sm:$0xff]
      %v400 = vld [vmem:[%s236 + $0x40] sm:$0xff]
      %v401 = vld [vmem:[%s236 + $0x48] sm:$0xff]
      %v402 = vld [vmem:[%s236 + $0x50] sm:$0xff]
      %v403 = vld [vmem:[%s236 + $0x58] sm:$0xff]
      %v404 = vld [vmem:[%s236 + $0x60] sm:$0xff]
      %v405 = vld [vmem:[%s236 + $0x68] sm:$0xff]
      %v406 = vld [vmem:[%s236 + $0x70] sm:$0xff]
      %v407 = vld [vmem:[%s236 + $0x78] sm:$0xff]
      %v408 = vld [vmem:[%s236 + $0x80] sm:$0xff]
      %v409 = vld [vmem:[%s236 + $0x88] sm:$0xff]
      %v410 = vld [vmem:[%s236 + $0x90] sm:$0xff]
      %v411 = vld [vmem:[%s236 + $0x98] sm:$0xff]
      %v412 = vld [vmem:[%s236 + $0xa0] sm:$0xff]
      %v413 = vld [vmem:[%s236 + $0xa8] sm:$0xff]
      %v414 = vld [vmem:[%s236 + $0xb0] sm:$0xff]
      %v415 = vld [vmem:[%s236 + $0xb8] sm:$0xff]
      %v416 = vld [vmem:[%s236 + $0xc0] sm:$0xff]
      %v417 = vld [vmem:[%s236 + $0xc8] sm:$0xff]
      %v418 = vld [vmem:[%s236 + $0xd0] sm:$0xff]
      %v419 = vld [vmem:[%s236 + $0xd8] sm:$0xff]
      %v420 = vld [vmem:[%s236 + $0xe0] sm:$0xff]
      %v421 = vld [vmem:[%s236 + $0xe8] sm:$0xff]
      %v422 = vld [vmem:[%s236 + $0xf0] sm:$0xff]
      %v423 = vld [vmem:[%s236 + $0xf8] sm:$0xff]
      %v424 = vld [vmem:[%s236 + $0x100] sm:$0xff]
      %v425 = vld [vmem:[%s236 + $0x108] sm:$0xff]
      %v426 = vld [vmem:[%s236 + $0x110] sm:$0xff]
      %v427 = vld [vmem:[%s236 + $0x118] sm:$0xff]
      %v428 = vld [vmem:[%s236 + $0x120] sm:$0xff]
      %v429 = vld [vmem:[%s236 + $0x128] sm:$0xff]
      %v430 = vld [vmem:[%s236 + $0x130] sm:$0xff]
      %v431 = vld [vmem:[%s236 + $0x138] sm:$0xff]
      %v432 = vld [vmem:[%s236 + $0x140] sm:$0xff]
      %v433 = vld [vmem:[%s236 + $0x148] sm:$0xff]
      %v434 = vld [vmem:[%s236 + $0x150] sm:$0xff]
      %v435 = vld [vmem:[%s236 + $0x158] sm:$0xff]
      %v436 = vld [vmem:[%s236 + $0x160] sm:$0xff]
      %v437 = vld [vmem:[%s236 + $0x168] sm:$0xff]
      %v438 = vld [vmem:[%s236 + $0x170] sm:$0xff]
      %v439 = vld [vmem:[%s236 + $0x178] sm:$0xff]
      %v440 = vld [vmem:[%s236 + $0x180] sm:$0xff]
      %v441 = vld [vmem:[%s236 + $0x188] sm:$0xff]
      %v442 = vld [vmem:[%s236 + $0x190] sm:$0xff]
      %v443 = vld [vmem:[%s236 + $0x198] sm:$0xff]
      %v444 = vld [vmem:[%s236 + $0x1a0] sm:$0xff]
      %v445 = vld [vmem:[%s236 + $0x1a8] sm:$0xff]
      %v446 = vld [vmem:[%s236 + $0x1b0] sm:$0xff]
      %v447 = vld [vmem:[%s236 + $0x1b8] sm:$0xff]
      %v448 = vld [vmem:[%s236 + $0x1c0] sm:$0xff]
      %v449 = vld [vmem:[%s236 + $0x1c8] sm:$0xff]
      %v450 = vld [vmem:[%s236 + $0x1d0] sm:$0xff]
      %v451 = vld [vmem:[%s236 + $0x1d8] sm:$0xff]
      %v452 = vld [vmem:[%s236 + $0x1e0] sm:$0xff]
      %v453 = vld [vmem:[%s236 + $0x1e8] sm:$0xff]
      %v454 = vld [vmem:[%s236 + $0x1f0] sm:$0xff]
      %v455 = vld [vmem:[%s236 + $0x1f8] sm:$0xff]
      %v456 = vld [vmem:[%s245] sm:$0xff]
      %v457 = vld [vmem:[%s245 + $0x8] sm:$0xff]
      %v458 = vld [vmem:[%s245 + $0x10] sm:$0xff]
      %v459 = vld [vmem:[%s245 + $0x18] sm:$0xff]
      %vm460 = vcmask 261120
      %v462 = vsel %vm460, %v392, 0
      %v465 = vsel %vm460, %v393, 0
      %v468 = vsel %vm460, %v394, 0
      %v471 = vsel %vm460, %v395, 0
      %v474 = vsel %vm460, %v396, 0
      %v477 = vsel %vm460, %v397, 0
      %v480 = vsel %vm460, %v398, 0
      %v483 = vsel %vm460, %v399, 0
      %v486 = vsel %vm460, %v400, 0
      %v489 = vsel %vm460, %v401, 0
      %v492 = vsel %vm460, %v402, 0
      %v495 = vsel %vm460, %v403, 0
      %v498 = vsel %vm460, %v404, 0
      %v501 = vsel %vm460, %v405, 0
      %v504 = vsel %vm460, %v406, 0
      %v507 = vsel %vm460, %v407, 0
      %v510 = vsel %vm460, %v408, 0
      %v513 = vsel %vm460, %v409, 0
      %v516 = vsel %vm460, %v410, 0
      %v519 = vsel %vm460, %v411, 0
      %v522 = vsel %vm460, %v412, 0
      %v525 = vsel %vm460, %v413, 0
      %v528 = vsel %vm460, %v414, 0
      %v531 = vsel %vm460, %v415, 0
      %v534 = vsel %vm460, %v416, 0
      %v537 = vsel %vm460, %v417, 0
      %v540 = vsel %vm460, %v418, 0
      %v543 = vsel %vm460, %v419, 0
      %v546 = vsel %vm460, %v420, 0
      %v549 = vsel %vm460, %v421, 0
      %v552 = vsel %vm460, %v422, 0
      %v555 = vsel %vm460, %v423, 0
      %v558 = vsel %vm460, %v424, 0
      %v561 = vsel %vm460, %v425, 0
      %v564 = vsel %vm460, %v426, 0
      %v567 = vsel %vm460, %v427, 0
      %v570 = vsel %vm460, %v428, 0
      %v573 = vsel %vm460, %v429, 0
      %v576 = vsel %vm460, %v430, 0
      %v579 = vsel %vm460, %v431, 0
      %v582 = vsel %vm460, %v432, 0
      %v585 = vsel %vm460, %v433, 0
      %v588 = vsel %vm460, %v434, 0
      %v591 = vsel %vm460, %v435, 0
      %v594 = vsel %vm460, %v436, 0
      %v597 = vsel %vm460, %v437, 0
      %v600 = vsel %vm460, %v438, 0
      %v603 = vsel %vm460, %v439, 0
      %v606 = vsel %vm460, %v440, 0
      %v609 = vsel %vm460, %v441, 0
      %v612 = vsel %vm460, %v442, 0
      %v615 = vsel %vm460, %v443, 0
      %v618 = vsel %vm460, %v444, 0
      %v621 = vsel %vm460, %v445, 0
      %v624 = vsel %vm460, %v446, 0
      %v627 = vsel %vm460, %v447, 0
      %v630 = vsel %vm460, %v448, 0
      %v633 = vsel %vm460, %v449, 0
      %v636 = vsel %vm460, %v450, 0
      %v639 = vsel %vm460, %v451, 0
      %v642 = vsel %vm460, %v452, 0
      %v645 = vsel %vm460, %v453, 0
      %v648 = vsel %vm460, %v454, 0
      %v651 = vsel %vm460, %v455, 0
      %653 = vmatprep.subr.mxu0 0.0
      %654 = vmatpush1.msra.mxu0 %v456
      %655 = vmatprep.subr.mxu0 0.0
      %656 = vmatpush1.msra.mxu0 %v457
      %657 = vmatprep.subr.mxu0 0.0
      %658 = vmatpush1.msra.mxu0 %v458
      %659 = vmatprep.subr.mxu0 0.0
      %660 = vmatpush1.msra.mxu0 %v459
      %661 = vmatprep.subr.mxu0 0.0
      %662 = vmatpush1.msra.mxu0 0.0
      %663 = vmatprep.subr.mxu0 0.0
      %664 = vmatpush1.msra.mxu0 0.0
      %665 = vmatprep.subr.mxu0 0.0
      %666 = vmatpush1.msra.mxu0 0.0
      %667 = vmatprep.subr.mxu0 0.0
      %668 = vmatpush1.msra.mxu0 0.0
      %669 = vmatprep.subr.mxu0 0.0
      %670 = vmatpush1.msra.mxu0 0.0
      %671 = vmatprep.subr.mxu0 0.0
      %672 = vmatpush1.msra.mxu0 0.0
      %673 = vmatprep.subr.mxu0 0.0
      %674 = vmatpush1.msra.mxu0 0.0
      %675 = vmatprep.subr.mxu0 0.0
      %676 = vmatpush1.msra.mxu0 0.0
      %677 = vmatprep.subr.mxu0 0.0
      %678 = vmatpush1.msra.mxu0 0.0
      %679 = vmatprep.subr.mxu0 0.0
      %680 = vmatpush1.msra.mxu0 0.0
      %681 = vmatprep.subr.mxu0 0.0
      %682 = vmatpush1.msra.mxu0 0.0
      %683 = vmatprep.subr.mxu0 0.0
      %684 = vmatpush1.msra.mxu0 0.0
      %685 = vmatprep.subr.mxu0 0.0
      %686 = vmatpush1.msra.mxu0 0.0
      %687 = vmatprep.subr.mxu0 0.0
      %688 = vmatpush1.msra.mxu0 0.0
      %689 = vmatprep.subr.mxu0 0.0
      %690 = vmatpush1.msra.mxu0 0.0
      %691 = vmatprep.subr.mxu0 0.0
      %692 = vmatpush1.msra.mxu0 0.0
      %693 = vmatprep.subr.mxu0 0.0
      %694 = vmatpush1.msra.mxu0 0.0
      %695 = vmatprep.subr.mxu0 0.0
      %696 = vmatpush1.msra.mxu0 0.0
      %697 = vmatprep.subr.mxu0 0.0
      %698 = vmatpush1.msra.mxu0 0.0
      %699 = vmatprep.subr.mxu0 0.0
      %700 = vmatpush1.msra.mxu0 0.0
      %701 = vmatprep.subr.mxu0 0.0
      %702 = vmatpush1.msra.mxu0 0.0
      %703 = vmatprep.subr.mxu0 0.0
      %704 = vmatpush1.msra.mxu0 0.0
      %705 = vmatprep.subr.mxu0 0.0
      %706 = vmatpush1.msra.mxu0 0.0
      %707 = vmatprep.subr.mxu0 0.0
      %708 = vmatpush1.msra.mxu0 0.0
      %709 = vmatprep.subr.mxu0 0.0
      %710 = vmatpush1.msra.mxu0 0.0
      %711 = vmatprep.subr.mxu0 0.0
      %712 = vmatpush1.msra.mxu0 0.0
      %713 = vmatprep.subr.mxu0 0.0
      %714 = vmatpush1.msra.mxu0 0.0
      %715 = vmatprep.subr.mxu0 0.0
      %716 = vmatpush1.msra.mxu0 0.0
      %717 = vmatprep.mubr.f32.mxu0 0.0
      %718 = vmatmul.mubr.f32.gmra.mrb[0].mxu0 %v462
      %v719 = vpop.f32.mrb[0].mxu0
      %v720 = vadd.f32 0.0, %v719
      %v721 = vpop.f32.mrb[0].mxu0
      %722 = vmatprep.mubr.f32.mxu0 0.0
      %723 = vmatmul.mubr.f32.gmra.mrb[0].mxu0 %v465
      %v724 = vpop.f32.mrb[0].mxu0
      %v725 = vadd.f32 0.0, %v724
      %v726 = vpop.f32.mrb[0].mxu0
      %727 = vmatprep.mubr.f32.mxu0 0.0
      %728 = vmatmul.mubr.f32.gmra.mrb[0].mxu0 %v468
      %v729 = vpop.f32.mrb[0].mxu0
      %v730 = vadd.f32 0.0, %v729
      %v731 = vpop.f32.mrb[0].mxu0
      %732 = vmatprep.mubr.f32.mxu0 0.0
      %733 = vmatmul.mubr.f32.gmra.mrb[0].mxu0 %v471
      %v734 = vpop.f32.mrb[0].mxu0
      %v735 = vadd.f32 0.0, %v734
      %v736 = vpop.f32.mrb[0].mxu0
      %737 = vmatprep.mubr.f32.mxu0 0.0
      %738 = vmatmul.mubr.f32.gmra.mrb[0].mxu0 %v474
      %v739 = vpop.f32.mrb[0].mxu0
      %v740 = vadd.f32 0.0, %v739
      %v741 = vpop.f32.mrb[0].mxu0
      %742 = vmatprep.mubr.f32.mxu0 0.0
      %743 = vmatmul.mubr.f32.gmra.mrb[0].mxu0 %v477
      %v744 = vpop.f32.mrb[0].mxu0
      %v745 = vadd.f32 0.0, %v744
      %v746 = vpop.f32.mrb[0].mxu0
      %747 = vmatprep.mubr.f32.mxu0 0.0
      %748 = vmatmul.mubr.f32.gmra.mrb[0].mxu0 %v480
      %v749 = vpop.f32.mrb[0].mxu0
      %v750 = vadd.f32 0.0, %v749
      %v751 = vpop.f32.mrb[0].mxu0
      %752 = vmatprep.mubr.f32.mxu0 0.0
      %753 = vmatmul.mubr.f32.gmra.mrb[0].mxu0 %v483
      %v754 = vpop.f32.mrb[0].mxu0
      %v755 = vadd.f32 0.0, %v754
      %v756 = vpop.f32.mrb[0].mxu0
      %757 = vmatprep.mubr.f32.mxu0 0.0
      %758 = vmatmul.mubr.f32.gmra.mrb[0].mxu0 %v486
      %v759 = vpop.f32.mrb[0].mxu0
      %v760 = vadd.f32 0.0, %v759
      %v761 = vpop.f32.mrb[0].mxu0
      %762 = vmatprep.mubr.f32.mxu0 0.0
      %763 = vmatmul.mubr.f32.gmra.mrb[0].mxu0 %v489
      %v764 = vpop.f32.mrb[0].mxu0
      %v765 = vadd.f32 0.0, %v764
      %v766 = vpop.f32.mrb[0].mxu0
      %767 = vmatprep.mubr.f32.mxu0 0.0
      %768 = vmatmul.mubr.f32.gmra.mrb[0].mxu0 %v492
      %v769 = vpop.f32.mrb[0].mxu0
      %v770 = vadd.f32 0.0, %v769
      %v771 = vpop.f32.mrb[0].mxu0
      %772 = vmatprep.mubr.f32.mxu0 0.0
      %773 = vmatmul.mubr.f32.gmra.mrb[0].mxu0 %v495
      %v774 = vpop.f32.mrb[0].mxu0
      %v775 = vadd.f32 0.0, %v774
      %v776 = vpop.f32.mrb[0].mxu0
      %777 = vmatprep.mubr.f32.mxu0 0.0
      %778 = vmatmul.mubr.f32.gmra.mrb[0].mxu0 %v498
      %v779 = vpop.f32.mrb[0].mxu0
      %v780 = vadd.f32 0.0, %v779
      %v781 = vpop.f32.mrb[0].mxu0
      %782 = vmatprep.mubr.f32.mxu0 0.0
      %783 = vmatmul.mubr.f32.gmra.mrb[0].mxu0 %v501
      %v784 = vpop.f32.mrb[0].mxu0
      %v785 = vadd.f32 0.0, %v784
      %v786 = vpop.f32.mrb[0].mxu0
      %787 = vmatprep.mubr.f32.mxu0 0.0
      %788 = vmatmul.mubr.f32.gmra.mrb[0].mxu0 %v504
      %v789 = vpop.f32.mrb[0].mxu0
      %v790 = vadd.f32 0.0, %v789
      %v791 = vpop.f32.mrb[0].mxu0
      %792 = vmatprep.mubr.f32.mxu0 0.0
      %793 = vmatmul.mubr.f32.gmra.mrb[0].mxu0 %v507
      %v794 = vpop.f32.mrb[0].mxu0
      %v795 = vadd.f32 0.0, %v794
      %v796 = vpop.f32.mrb[0].mxu0
      %797 = vmatprep.mubr.f32.mxu0 0.0
      %798 = vmatmul.mubr.f32.gmra.mrb[0].mxu0 %v510
      %v799 = vpop.f32.mrb[0].mxu0
      %v800 = vadd.f32 0.0, %v799
      %v801 = vpop.f32.mrb[0].mxu0
      %802 = vmatprep.mubr.f32.mxu0 0.0
      %803 = vmatmul.mubr.f32.gmra.mrb[0].mxu0 %v513
      %v804 = vpop.f32.mrb[0].mxu0
      %v805 = vadd.f32 0.0, %v804
      %v806 = vpop.f32.mrb[0].mxu0
      %807 = vmatprep.mubr.f32.mxu0 0.0
      %808 = vmatmul.mubr.f32.gmra.mrb[0].mxu0 %v516
      %v809 = vpop.f32.mrb[0].mxu0
      %v810 = vadd.f32 0.0, %v809
      %v811 = vpop.f32.mrb[0].mxu0
      %812 = vmatprep.mubr.f32.mxu0 0.0
      %813 = vmatmul.mubr.f32.gmra.mrb[0].mxu0 %v519
      %v814 = vpop.f32.mrb[0].mxu0
      %v815 = vadd.f32 0.0, %v814
      %v816 = vpop.f32.mrb[0].mxu0
      %817 = vmatprep.mubr.f32.mxu0 0.0
      %818 = vmatmul.mubr.f32.gmra.mrb[0].mxu0 %v522
      %v819 = vpop.f32.mrb[0].mxu0
      %v820 = vadd.f32 0.0, %v819
      %v821 = vpop.f32.mrb[0].mxu0
      %822 = vmatprep.mubr.f32.mxu0 0.0
      %823 = vmatmul.mubr.f32.gmra.mrb[0].mxu0 %v525
      %v824 = vpop.f32.mrb[0].mxu0
      %v825 = vadd.f32 0.0, %v824
      %v826 = vpop.f32.mrb[0].mxu0
      %827 = vmatprep.mubr.f32.mxu0 0.0
      %828 = vmatmul.mubr.f32.gmra.mrb[0].mxu0 %v528
      %v829 = vpop.f32.mrb[0].mxu0
      %v830 = vadd.f32 0.0, %v829
      %v831 = vpop.f32.mrb[0].mxu0
      %832 = vmatprep.mubr.f32.mxu0 0.0
      %833 = vmatmul.mubr.f32.gmra.mrb[0].mxu0 %v531
      %v834 = vpop.f32.mrb[0].mxu0
      %v835 = vadd.f32 0.0, %v834
      %v836 = vpop.f32.mrb[0].mxu0
      %837 = vmatprep.mubr.f32.mxu0 0.0
      %838 = vmatmul.mubr.f32.gmra.mrb[0].mxu0 %v534
      %v839 = vpop.f32.mrb[0].mxu0
      %v840 = vadd.f32 0.0, %v839
      %v841 = vpop.f32.mrb[0].mxu0
      %842 = vmatprep.mubr.f32.mxu0 0.0
      %843 = vmatmul.mubr.f32.gmra.mrb[0].mxu0 %v537
      %v844 = vpop.f32.mrb[0].mxu0
      %v845 = vadd.f32 0.0, %v844
      %v846 = vpop.f32.mrb[0].mxu0
      %847 = vmatprep.mubr.f32.mxu0 0.0
      %848 = vmatmul.mubr.f32.gmra.mrb[0].mxu0 %v540
      %v849 = vpop.f32.mrb[0].mxu0
      %v850 = vadd.f32 0.0, %v849
      %v851 = vpop.f32.mrb[0].mxu0
      %852 = vmatprep.mubr.f32.mxu0 0.0
      %853 = vmatmul.mubr.f32.gmra.mrb[0].mxu0 %v543
      %v854 = vpop.f32.mrb[0].mxu0
      %v855 = vadd.f32 0.0, %v854
      %v856 = vpop.f32.mrb[0].mxu0
      %857 = vmatprep.mubr.f32.mxu0 0.0
      %858 = vmatmul.mubr.f32.gmra.mrb[0].mxu0 %v546
      %v859 = vpop.f32.mrb[0].mxu0
      %v860 = vadd.f32 0.0, %v859
      %v861 = vpop.f32.mrb[0].mxu0
      %862 = vmatprep.mubr.f32.mxu0 0.0
      %863 = vmatmul.mubr.f32.gmra.mrb[0].mxu0 %v549
      %v864 = vpop.f32.mrb[0].mxu0
      %v865 = vadd.f32 0.0, %v864
      %v866 = vpop.f32.mrb[0].mxu0
      %867 = vmatprep.mubr.f32.mxu0 0.0
      %868 = vmatmul.mubr.f32.gmra.mrb[0].mxu0 %v552
      %v869 = vpop.f32.mrb[0].mxu0
      %v870 = vadd.f32 0.0, %v869
      %v871 = vpop.f32.mrb[0].mxu0
      %872 = vmatprep.mubr.f32.mxu0 0.0
      %873 = vmatmul.mubr.f32.gmra.mrb[0].mxu0 %v555
      %v874 = vpop.f32.mrb[0].mxu0
      %v875 = vadd.f32 0.0, %v874
      %v876 = vpop.f32.mrb[0].mxu0
      %877 = vmatprep.mubr.f32.mxu0 0.0
      %878 = vmatmul.mubr.f32.gmra.mrb[0].mxu0 %v558
      %v879 = vpop.f32.mrb[0].mxu0
      %v880 = vadd.f32 0.0, %v879
      %v881 = vpop.f32.mrb[0].mxu0
      %882 = vmatprep.mubr.f32.mxu0 0.0
      %883 = vmatmul.mubr.f32.gmra.mrb[0].mxu0 %v561
      %v884 = vpop.f32.mrb[0].mxu0
      %v885 = vadd.f32 0.0, %v884
      %v886 = vpop.f32.mrb[0].mxu0
      %887 = vmatprep.mubr.f32.mxu0 0.0
      %888 = vmatmul.mubr.f32.gmra.mrb[0].mxu0 %v564
      %v889 = vpop.f32.mrb[0].mxu0
      %v890 = vadd.f32 0.0, %v889
      %v891 = vpop.f32.mrb[0].mxu0
      %892 = vmatprep.mubr.f32.mxu0 0.0
      %893 = vmatmul.mubr.f32.gmra.mrb[0].mxu0 %v567
      %v894 = vpop.f32.mrb[0].mxu0
      %v895 = vadd.f32 0.0, %v894
      %v896 = vpop.f32.mrb[0].mxu0
      %897 = vmatprep.mubr.f32.mxu0 0.0
      %898 = vmatmul.mubr.f32.gmra.mrb[0].mxu0 %v570
      %v899 = vpop.f32.mrb[0].mxu0
      %v900 = vadd.f32 0.0, %v899
      %v901 = vpop.f32.mrb[0].mxu0
      %902 = vmatprep.mubr.f32.mxu0 0.0
      %903 = vmatmul.mubr.f32.gmra.mrb[0].mxu0 %v573
      %v904 = vpop.f32.mrb[0].mxu0
      %v905 = vadd.f32 0.0, %v904
      %v906 = vpop.f32.mrb[0].mxu0
      %907 = vmatprep.mubr.f32.mxu0 0.0
      %908 = vmatmul.mubr.f32.gmra.mrb[0].mxu0 %v576
      %v909 = vpop.f32.mrb[0].mxu0
      %v910 = vadd.f32 0.0, %v909
      %v911 = vpop.f32.mrb[0].mxu0
      %912 = vmatprep.mubr.f32.mxu0 0.0
      %913 = vmatmul.mubr.f32.gmra.mrb[0].mxu0 %v579
      %v914 = vpop.f32.mrb[0].mxu0
      %v915 = vadd.f32 0.0, %v914
      %v916 = vpop.f32.mrb[0].mxu0
      %917 = vmatprep.mubr.f32.mxu0 0.0
      %918 = vmatmul.mubr.f32.gmra.mrb[0].mxu0 %v582
      %v919 = vpop.f32.mrb[0].mxu0
      %v920 = vadd.f32 0.0, %v919
      %v921 = vpop.f32.mrb[0].mxu0
      %922 = vmatprep.mubr.f32.mxu0 0.0
      %923 = vmatmul.mubr.f32.gmra.mrb[0].mxu0 %v585
      %v924 = vpop.f32.mrb[0].mxu0
      %v925 = vadd.f32 0.0, %v924
      %v926 = vpop.f32.mrb[0].mxu0
      %927 = vmatprep.mubr.f32.mxu0 0.0
      %928 = vmatmul.mubr.f32.gmra.mrb[0].mxu0 %v588
      %v929 = vpop.f32.mrb[0].mxu0
      %v930 = vadd.f32 0.0, %v929
      %v931 = vpop.f32.mrb[0].mxu0
      %932 = vmatprep.mubr.f32.mxu0 0.0
      %933 = vmatmul.mubr.f32.gmra.mrb[0].mxu0 %v591
      %v934 = vpop.f32.mrb[0].mxu0
      %v935 = vadd.f32 0.0, %v934
      %v936 = vpop.f32.mrb[0].mxu0
      %937 = vmatprep.mubr.f32.mxu0 0.0
      %938 = vmatmul.mubr.f32.gmra.mrb[0].mxu0 %v594
      %v939 = vpop.f32.mrb[0].mxu0
      %v940 = vadd.f32 0.0, %v939
      %v941 = vpop.f32.mrb[0].mxu0
      %942 = vmatprep.mubr.f32.mxu0 0.0
      %943 = vmatmul.mubr.f32.gmra.mrb[0].mxu0 %v597
      %v944 = vpop.f32.mrb[0].mxu0
      %v945 = vadd.f32 0.0, %v944
      %v946 = vpop.f32.mrb[0].mxu0
      %947 = vmatprep.mubr.f32.mxu0 0.0
      %948 = vmatmul.mubr.f32.gmra.mrb[0].mxu0 %v600
      %v949 = vpop.f32.mrb[0].mxu0
      %v950 = vadd.f32 0.0, %v949
      %v951 = vpop.f32.mrb[0].mxu0
      %952 = vmatprep.mubr.f32.mxu0 0.0
      %953 = vmatmul.mubr.f32.gmra.mrb[0].mxu0 %v603
      %v954 = vpop.f32.mrb[0].mxu0
      %v955 = vadd.f32 0.0, %v954
      %v956 = vpop.f32.mrb[0].mxu0
      %957 = vmatprep.mubr.f32.mxu0 0.0
      %958 = vmatmul.mubr.f32.gmra.mrb[0].mxu0 %v606
      %v959 = vpop.f32.mrb[0].mxu0
      %v960 = vadd.f32 0.0, %v959
      %v961 = vpop.f32.mrb[0].mxu0
      %962 = vmatprep.mubr.f32.mxu0 0.0
      %963 = vmatmul.mubr.f32.gmra.mrb[0].mxu0 %v609
      %v964 = vpop.f32.mrb[0].mxu0
      %v965 = vadd.f32 0.0, %v964
      %v966 = vpop.f32.mrb[0].mxu0
      %967 = vmatprep.mubr.f32.mxu0 0.0
      %968 = vmatmul.mubr.f32.gmra.mrb[0].mxu0 %v612
      %v969 = vpop.f32.mrb[0].mxu0
      %v970 = vadd.f32 0.0, %v969
      %v971 = vpop.f32.mrb[0].mxu0
      %972 = vmatprep.mubr.f32.mxu0 0.0
      %973 = vmatmul.mubr.f32.gmra.mrb[0].mxu0 %v615
      %v974 = vpop.f32.mrb[0].mxu0
      %v975 = vadd.f32 0.0, %v974
      %v976 = vpop.f32.mrb[0].mxu0
      %977 = vmatprep.mubr.f32.mxu0 0.0
      %978 = vmatmul.mubr.f32.gmra.mrb[0].mxu0 %v618
      %v979 = vpop.f32.mrb[0].mxu0
      %v980 = vadd.f32 0.0, %v979
      %v981 = vpop.f32.mrb[0].mxu0
      %982 = vmatprep.mubr.f32.mxu0 0.0
      %983 = vmatmul.mubr.f32.gmra.mrb[0].mxu0 %v621
      %v984 = vpop.f32.mrb[0].mxu0
      %v985 = vadd.f32 0.0, %v984
      %v986 = vpop.f32.mrb[0].mxu0
      %987 = vmatprep.mubr.f32.mxu0 0.0
      %988 = vmatmul.mubr.f32.gmra.mrb[0].mxu0 %v624
      %v989 = vpop.f32.mrb[0].mxu0
      %v990 = vadd.f32 0.0, %v989
      %v991 = vpop.f32.mrb[0].mxu0
      %992 = vmatprep.mubr.f32.mxu0 0.0
      %993 = vmatmul.mubr.f32.gmra.mrb[0].mxu0 %v627
      %v994 = vpop.f32.mrb[0].mxu0
      %v995 = vadd.f32 0.0, %v994
      %v996 = vpop.f32.mrb[0].mxu0
      %997 = vmatprep.mubr.f32.mxu0 0.0
      %998 = vmatmul.mubr.f32.gmra.mrb[0].mxu0 %v630
      %v999 = vpop.f32.mrb[0].mxu0
      %v1000 = vadd.f32 0.0, %v999
      %v1001 = vpop.f32.mrb[0].mxu0
      %1002 = vmatprep.mubr.f32.mxu0 0.0
      %1003 = vmatmul.mubr.f32.gmra.mrb[0].mxu0 %v633
      %v1004 = vpop.f32.mrb[0].mxu0
      %v1005 = vadd.f32 0.0, %v1004
      %v1006 = vpop.f32.mrb[0].mxu0
      %1007 = vmatprep.mubr.f32.mxu0 0.0
      %1008 = vmatmul.mubr.f32.gmra.mrb[0].mxu0 %v636
      %v1009 = vpop.f32.mrb[0].mxu0
      %v1010 = vadd.f32 0.0, %v1009
      %v1011 = vpop.f32.mrb[0].mxu0
      %1012 = vmatprep.mubr.f32.mxu0 0.0
      %1013 = vmatmul.mubr.f32.gmra.mrb[0].mxu0 %v639
      %v1014 = vpop.f32.mrb[0].mxu0
      %v1015 = vadd.f32 0.0, %v1014
      %v1016 = vpop.f32.mrb[0].mxu0
      %1017 = vmatprep.mubr.f32.mxu0 0.0
      %1018 = vmatmul.mubr.f32.gmra.mrb[0].mxu0 %v642
      %v1019 = vpop.f32.mrb[0].mxu0
      %v1020 = vadd.f32 0.0, %v1019
      %v1021 = vpop.f32.mrb[0].mxu0
      %1022 = vmatprep.mubr.f32.mxu0 0.0
      %1023 = vmatmul.mubr.f32.gmra.mrb[0].mxu0 %v645
      %v1024 = vpop.f32.mrb[0].mxu0
      %v1025 = vadd.f32 0.0, %v1024
      %v1026 = vpop.f32.mrb[0].mxu0
      %1027 = vmatprep.mubr.f32.mxu0 0.0
      %1028 = vmatmul.mubr.f32.gmra.mrb[0].mxu0 %v648
      %v1029 = vpop.f32.mrb[0].mxu0
      %v1030 = vadd.f32 0.0, %v1029
      %v1031 = vpop.f32.mrb[0].mxu0
      %1032 = vmatprep.mubr.f32.mxu0 0.0
      %1033 = vmatmul.mubr.f32.gmra.mrb[0].mxu0 %v651
      %v1034 = vpop.f32.mrb[0].mxu0
      %v1035 = vadd.f32 0.0, %v1034
      %v1036 = vpop.f32.mrb[0].mxu0
      %1037 = vdwg.mxu0
      %v1038 = vadd.f32 %v328, %v720
      %v1039 = vadd.f32 %v329, %v725
      %v1040 = vadd.f32 %v330, %v730
      %v1041 = vadd.f32 %v331, %v735
      %v1042 = vadd.f32 %v332, %v740
      %v1043 = vadd.f32 %v333, %v745
      %v1044 = vadd.f32 %v334, %v750
      %v1045 = vadd.f32 %v335, %v755
      %v1046 = vadd.f32 %v336, %v760
      %v1047 = vadd.f32 %v337, %v765
      %v1048 = vadd.f32 %v338, %v770
      %v1049 = vadd.f32 %v339, %v775
      %v1050 = vadd.f32 %v340, %v780
      %v1051 = vadd.f32 %v341, %v785
      %v1052 = vadd.f32 %v342, %v790
      %v1053 = vadd.f32 %v343, %v795
      %v1054 = vadd.f32 %v344, %v800
      %v1055 = vadd.f32 %v345, %v805
      %v1056 = vadd.f32 %v346, %v810
      %v1057 = vadd.f32 %v347, %v815
      %v1058 = vadd.f32 %v348, %v820
      %v1059 = vadd.f32 %v349, %v825
      %v1060 = vadd.f32 %v350, %v830
      %v1061 = vadd.f32 %v351, %v835
      %v1062 = vadd.f32 %v352, %v840
      %v1063 = vadd.f32 %v353, %v845
      %v1064 = vadd.f32 %v354, %v850
      %v1065 = vadd.f32 %v355, %v855
      %v1066 = vadd.f32 %v356, %v860
      %v1067 = vadd.f32 %v357, %v865
      %v1068 = vadd.f32 %v358, %v870
      %v1069 = vadd.f32 %v359, %v875
      %v1070 = vadd.f32 %v360, %v880
      %v1071 = vadd.f32 %v361, %v885
      %v1072 = vadd.f32 %v362, %v890
      %v1073 = vadd.f32 %v363, %v895
      %v1074 = vadd.f32 %v364, %v900
      %v1075 = vadd.f32 %v365, %v905
      %v1076 = vadd.f32 %v366, %v910
      %v1077 = vadd.f32 %v367, %v915
      %v1078 = vadd.f32 %v368, %v920
      %v1079 = vadd.f32 %v369, %v925
      %v1080 = vadd.f32 %v370, %v930
      %v1081 = vadd.f32 %v371, %v935
      %v1082 = vadd.f32 %v372, %v940
      %v1083 = vadd.f32 %v373, %v945
      %v1084 = vadd.f32 %v374, %v950
      %v1085 = vadd.f32 %v375, %v955
      %v1086 = vadd.f32 %v376, %v960
      %v1087 = vadd.f32 %v377, %v965
      %v1088 = vadd.f32 %v378, %v970
      %v1089 = vadd.f32 %v379, %v975
      %v1090 = vadd.f32 %v380, %v980
      %v1091 = vadd.f32 %v381, %v985
      %v1092 = vadd.f32 %v382, %v990
      %v1093 = vadd.f32 %v383, %v995
      %v1094 = vadd.f32 %v384, %v1000
      %v1095 = vadd.f32 %v385, %v1005
      %v1096 = vadd.f32 %v386, %v1010
      %v1097 = vadd.f32 %v387, %v1015
      %v1098 = vadd.f32 %v388, %v1020
      %v1099 = vadd.f32 %v389, %v1025
      %v1100 = vadd.f32 %v390, %v1030
      %v1101 = vadd.f32 %v391, %v1035
      %vm1102 = vcmask 64512
      %1103 = vst.msk [vmem:[#allocation2] sm:$0xff] %vm1102, %v1038
      %1104 = vst.msk [vmem:[#allocation2 + $0x8] sm:$0xff] %vm1102, %v1039
      %1105 = vst.msk [vmem:[#allocation2 + $0x10] sm:$0xff] %vm1102, %v1040
      %1106 = vst.msk [vmem:[#allocation2 + $0x18] sm:$0xff] %vm1102, %v1041
      %1107 = vst.msk [vmem:[#allocation2 + $0x20] sm:$0xff] %vm1102, %v1042
      %1108 = vst.msk [vmem:[#allocation2 + $0x28] sm:$0xff] %vm1102, %v1043
      %1109 = vst.msk [vmem:[#allocation2 + $0x30] sm:$0xff] %vm1102, %v1044
      %1110 = vst.msk [vmem:[#allocation2 + $0x38] sm:$0xff] %vm1102, %v1045
      %1111 = vst.msk [vmem:[#allocation2 + $0x40] sm:$0xff] %vm1102, %v1046
      %1112 = vst.msk [vmem:[#allocation2 + $0x48] sm:$0xff] %vm1102, %v1047
      %1113 = vst.msk [vmem:[#allocation2 + $0x50] sm:$0xff] %vm1102, %v1048
      %1114 = vst.msk [vmem:[#allocation2 + $0x58] sm:$0xff] %vm1102, %v1049
      %1115 = vst.msk [vmem:[#allocation2 + $0x60] sm:$0xff] %vm1102, %v1050
      %1116 = vst.msk [vmem:[#allocation2 + $0x68] sm:$0xff] %vm1102, %v1051
      %1117 = vst.msk [vmem:[#allocation2 + $0x70] sm:$0xff] %vm1102, %v1052
      %1118 = vst.msk [vmem:[#allocation2 + $0x78] sm:$0xff] %vm1102, %v1053
      %1119 = vst.msk [vmem:[#allocation2 + $0x80] sm:$0xff] %vm1102, %v1054
      %1120 = vst.msk [vmem:[#allocation2 + $0x88] sm:$0xff] %vm1102, %v1055
      %1121 = vst.msk [vmem:[#allocation2 + $0x90] sm:$0xff] %vm1102, %v1056
      %1122 = vst.msk [vmem:[#allocation2 + $0x98] sm:$0xff] %vm1102, %v1057
      %1123 = vst.msk [vmem:[#allocation2 + $0xa0] sm:$0xff] %vm1102, %v1058
      %1124 = vst.msk [vmem:[#allocation2 + $0xa8] sm:$0xff] %vm1102, %v1059
      %1125 = vst.msk [vmem:[#allocation2 + $0xb0] sm:$0xff] %vm1102, %v1060
      %1126 = vst.msk [vmem:[#allocation2 + $0xb8] sm:$0xff] %vm1102, %v1061
      %1127 = vst.msk [vmem:[#allocation2 + $0xc0] sm:$0xff] %vm1102, %v1062
      %1128 = vst.msk [vmem:[#allocation2 + $0xc8] sm:$0xff] %vm1102, %v1063
      %1129 = vst.msk [vmem:[#allocation2 + $0xd0] sm:$0xff] %vm1102, %v1064
      %1130 = vst.msk [vmem:[#allocation2 + $0xd8] sm:$0xff] %vm1102, %v1065
      %1131 = vst.msk [vmem:[#allocation2 + $0xe0] sm:$0xff] %vm1102, %v1066
      %1132 = vst.msk [vmem:[#allocation2 + $0xe8] sm:$0xff] %vm1102, %v1067
      %1133 = vst.msk [vmem:[#allocation2 + $0xf0] sm:$0xff] %vm1102, %v1068
      %1134 = vst.msk [vmem:[#allocation2 + $0xf8] sm:$0xff] %vm1102, %v1069
      %1135 = vst.msk [vmem:[#allocation2 + $0x100] sm:$0xff] %vm1102, %v1070
      %1136 = vst.msk [vmem:[#allocation2 + $0x108] sm:$0xff] %vm1102, %v1071
      %1137 = vst.msk [vmem:[#allocation2 + $0x110] sm:$0xff] %vm1102, %v1072
      %1138 = vst.msk [vmem:[#allocation2 + $0x118] sm:$0xff] %vm1102, %v1073
      %1139 = vst.msk [vmem:[#allocation2 + $0x120] sm:$0xff] %vm1102, %v1074
      %1140 = vst.msk [vmem:[#allocation2 + $0x128] sm:$0xff] %vm1102, %v1075
      %1141 = vst.msk [vmem:[#allocation2 + $0x130] sm:$0xff] %vm1102, %v1076
      %1142 = vst.msk [vmem:[#allocation2 + $0x138] sm:$0xff] %vm1102, %v1077
      %1143 = vst.msk [vmem:[#allocation2 + $0x140] sm:$0xff] %vm1102, %v1078
      %1144 = vst.msk [vmem:[#allocation2 + $0x148] sm:$0xff] %vm1102, %v1079
      %1145 = vst.msk [vmem:[#allocation2 + $0x150] sm:$0xff] %vm1102, %v1080
      %1146 = vst.msk [vmem:[#allocation2 + $0x158] sm:$0xff] %vm1102, %v1081
      %1147 = vst.msk [vmem:[#allocation2 + $0x160] sm:$0xff] %vm1102, %v1082
      %1148 = vst.msk [vmem:[#allocation2 + $0x168] sm:$0xff] %vm1102, %v1083
      %1149 = vst.msk [vmem:[#allocation2 + $0x170] sm:$0xff] %vm1102, %v1084
      %1150 = vst.msk [vmem:[#allocation2 + $0x178] sm:$0xff] %vm1102, %v1085
      %1151 = vst.msk [vmem:[#allocation2 + $0x180] sm:$0xff] %vm1102, %v1086
      %1152 = vst.msk [vmem:[#allocation2 + $0x188] sm:$0xff] %vm1102, %v1087
      %1153 = vst.msk [vmem:[#allocation2 + $0x190] sm:$0xff] %vm1102, %v1088
      %1154 = vst.msk [vmem:[#allocation2 + $0x198] sm:$0xff] %vm1102, %v1089
      %1155 = vst.msk [vmem:[#allocation2 + $0x1a0] sm:$0xff] %vm1102, %v1090
      %1156 = vst.msk [vmem:[#allocation2 + $0x1a8] sm:$0xff] %vm1102, %v1091
      %1157 = vst.msk [vmem:[#allocation2 + $0x1b0] sm:$0xff] %vm1102, %v1092
      %1158 = vst.msk [vmem:[#allocation2 + $0x1b8] sm:$0xff] %vm1102, %v1093
      %1159 = vst.msk [vmem:[#allocation2 + $0x1c0] sm:$0xff] %vm1102, %v1094
      %1160 = vst.msk [vmem:[#allocation2 + $0x1c8] sm:$0xff] %vm1102, %v1095
      %1161 = vst.msk [vmem:[#allocation2 + $0x1d0] sm:$0xff] %vm1102, %v1096
      %1162 = vst.msk [vmem:[#allocation2 + $0x1d8] sm:$0xff] %vm1102, %v1097
      %1163 = vst.msk [vmem:[#allocation2 + $0x1e0] sm:$0xff] %vm1102, %v1098
      %1164 = vst.msk [vmem:[#allocation2 + $0x1e8] sm:$0xff] %vm1102, %v1099
      %1165 = vst.msk [vmem:[#allocation2 + $0x1f0] sm:$0xff] %vm1102, %v1100
      %1166 = vst.msk [vmem:[#allocation2 + $0x1f8] sm:$0xff] %vm1102, %v1101
      // Predicated region
      $region37: #{cnnlstm_forward.4} parent=31 // pred_check
        %p1167 = pneg %p259
      $region38: #{cnnlstm_forward.4} parent=31 // pred_check_branch
        %1169 = sbr.rel (%p1167) target = $region40
      $region39: #{cnnlstm_forward.4} parent=31 // pred_region
        %v1170 = vld [vmem:[#allocation2] sm:$0xff]
        %v1171 = vld [vmem:[#allocation2 + $0x8] sm:$0xff]
        %v1172 = vld [vmem:[#allocation2 + $0x10] sm:$0xff]
        %v1173 = vld [vmem:[#allocation2 + $0x18] sm:$0xff]
        %v1174 = vld [vmem:[#allocation2 + $0x20] sm:$0xff]
        %v1175 = vld [vmem:[#allocation2 + $0x28] sm:$0xff]
        %v1176 = vld [vmem:[#allocation2 + $0x30] sm:$0xff]
        %v1177 = vld [vmem:[#allocation2 + $0x38] sm:$0xff]
        %v1178 = vld [vmem:[#allocation2 + $0x40] sm:$0xff]
        %v1179 = vld [vmem:[#allocation2 + $0x48] sm:$0xff]
        %v1180 = vld [vmem:[#allocation2 + $0x50] sm:$0xff]
        %v1181 = vld [vmem:[#allocation2 + $0x58] sm:$0xff]
        %v1182 = vld [vmem:[#allocation2 + $0x60] sm:$0xff]
        %v1183 = vld [vmem:[#allocation2 + $0x68] sm:$0xff]
        %v1184 = vld [vmem:[#allocation2 + $0x70] sm:$0xff]
        %v1185 = vld [vmem:[#allocation2 + $0x78] sm:$0xff]
        %v1186 = vld [vmem:[#allocation2 + $0x80] sm:$0xff]
        %v1187 = vld [vmem:[#allocation2 + $0x88] sm:$0xff]
        %v1188 = vld [vmem:[#allocation2 + $0x90] sm:$0xff]
        %v1189 = vld [vmem:[#allocation2 + $0x98] sm:$0xff]
        %v1190 = vld [vmem:[#allocation2 + $0xa0] sm:$0xff]
        %v1191 = vld [vmem:[#allocation2 + $0xa8] sm:$0xff]
        %v1192 = vld [vmem:[#allocation2 + $0xb0] sm:$0xff]
        %v1193 = vld [vmem:[#allocation2 + $0xb8] sm:$0xff]
        %v1194 = vld [vmem:[#allocation2 + $0xc0] sm:$0xff]
        %v1195 = vld [vmem:[#allocation2 + $0xc8] sm:$0xff]
        %v1196 = vld [vmem:[#allocation2 + $0xd0] sm:$0xff]
        %v1197 = vld [vmem:[#allocation2 + $0xd8] sm:$0xff]
        %v1198 = vld [vmem:[#allocation2 + $0xe0] sm:$0xff]
        %v1199 = vld [vmem:[#allocation2 + $0xe8] sm:$0xff]
        %v1200 = vld [vmem:[#allocation2 + $0xf0] sm:$0xff]
        %v1201 = vld [vmem:[#allocation2 + $0xf8] sm:$0xff]
        %v1202 = vld [vmem:[#allocation2 + $0x100] sm:$0xff]
        %v1203 = vld [vmem:[#allocation2 + $0x108] sm:$0xff]
        %v1204 = vld [vmem:[#allocation2 + $0x110] sm:$0xff]
        %v1205 = vld [vmem:[#allocation2 + $0x118] sm:$0xff]
        %v1206 = vld [vmem:[#allocation2 + $0x120] sm:$0xff]
        %v1207 = vld [vmem:[#allocation2 + $0x128] sm:$0xff]
        %v1208 = vld [vmem:[#allocation2 + $0x130] sm:$0xff]
        %v1209 = vld [vmem:[#allocation2 + $0x138] sm:$0xff]
        %v1210 = vld [vmem:[#allocation2 + $0x140] sm:$0xff]
        %v1211 = vld [vmem:[#allocation2 + $0x148] sm:$0xff]
        %v1212 = vld [vmem:[#allocation2 + $0x150] sm:$0xff]
        %v1213 = vld [vmem:[#allocation2 + $0x158] sm:$0xff]
        %v1214 = vld [vmem:[#allocation2 + $0x160] sm:$0xff]
        %v1215 = vld [vmem:[#allocation2 + $0x168] sm:$0xff]
        %v1216 = vld [vmem:[#allocation2 + $0x170] sm:$0xff]
        %v1217 = vld [vmem:[#allocation2 + $0x178] sm:$0xff]
        %v1218 = vld [vmem:[#allocation2 + $0x180] sm:$0xff]
        %v1219 = vld [vmem:[#allocation2 + $0x188] sm:$0xff]
        %v1220 = vld [vmem:[#allocation2 + $0x190] sm:$0xff]
        %v1221 = vld [vmem:[#allocation2 + $0x198] sm:$0xff]
        %v1222 = vld [vmem:[#allocation2 + $0x1a0] sm:$0xff]
        %v1223 = vld [vmem:[#allocation2 + $0x1a8] sm:$0xff]
        %v1224 = vld [vmem:[#allocation2 + $0x1b0] sm:$0xff]
        %v1225 = vld [vmem:[#allocation2 + $0x1b8] sm:$0xff]
        %v1226 = vld [vmem:[#allocation2 + $0x1c0] sm:$0xff]
        %v1227 = vld [vmem:[#allocation2 + $0x1c8] sm:$0xff]
        %v1228 = vld [vmem:[#allocation2 + $0x1d0] sm:$0xff]
        %v1229 = vld [vmem:[#allocation2 + $0x1d8] sm:$0xff]
        %v1230 = vld [vmem:[#allocation2 + $0x1e0] sm:$0xff]
        %v1231 = vld [vmem:[#allocation2 + $0x1e8] sm:$0xff]
        %v1232 = vld [vmem:[#allocation2 + $0x1f0] sm:$0xff]
        %v1233 = vld [vmem:[#allocation2 + $0x1f8] sm:$0xff]
        %v1234 = vld [vmem:[%s249] sm:$0x1]
        %v1236 = vlaneseq
        %v1237 = vshrl.u32 %v1236, 7
        %v1238 = vsub.s32 0, %v1237
        %v1239 = vrot.slane %v1234, %v1238
        %v1241 = vadd.f32 %v1170, %v1239
        %v1242 = vadd.f32 %v1171, %v1239
        %v1243 = vadd.f32 %v1172, %v1239
        %v1244 = vadd.f32 %v1173, %v1239
        %v1245 = vadd.f32 %v1174, %v1239
        %v1246 = vadd.f32 %v1175, %v1239
        %v1247 = vadd.f32 %v1176, %v1239
        %v1248 = vadd.f32 %v1177, %v1239
        %v1249 = vadd.f32 %v1178, %v1239
        %v1250 = vadd.f32 %v1179, %v1239
        %v1251 = vadd.f32 %v1180, %v1239
        %v1252 = vadd.f32 %v1181, %v1239
        %v1253 = vadd.f32 %v1182, %v1239
        %v1254 = vadd.f32 %v1183, %v1239
        %v1255 = vadd.f32 %v1184, %v1239
        %v1256 = vadd.f32 %v1185, %v1239
        %v1257 = vadd.f32 %v1186, %v1239
        %v1258 = vadd.f32 %v1187, %v1239
        %v1259 = vadd.f32 %v1188, %v1239
        %v1260 = vadd.f32 %v1189, %v1239
        %v1261 = vadd.f32 %v1190, %v1239
        %v1262 = vadd.f32 %v1191, %v1239
        %v1263 = vadd.f32 %v1192, %v1239
        %v1264 = vadd.f32 %v1193, %v1239
        %v1265 = vadd.f32 %v1194, %v1239
        %v1266 = vadd.f32 %v1195, %v1239
        %v1267 = vadd.f32 %v1196, %v1239
        %v1268 = vadd.f32 %v1197, %v1239
        %v1269 = vadd.f32 %v1198, %v1239
        %v1270 = vadd.f32 %v1199, %v1239
        %v1271 = vadd.f32 %v1200, %v1239
        %v1272 = vadd.f32 %v1201, %v1239
        %v1273 = vadd.f32 %v1202, %v1239
        %v1274 = vadd.f32 %v1203, %v1239
        %v1275 = vadd.f32 %v1204, %v1239
        %v1276 = vadd.f32 %v1205, %v1239
        %v1277 = vadd.f32 %v1206, %v1239
        %v1278 = vadd.f32 %v1207, %v1239
        %v1279 = vadd.f32 %v1208, %v1239
        %v1280 = vadd.f32 %v1209, %v1239
        %v1281 = vadd.f32 %v1210, %v1239
        %v1282 = vadd.f32 %v1211, %v1239
        %v1283 = vadd.f32 %v1212, %v1239
        %v1284 = vadd.f32 %v1213, %v1239
        %v1285 = vadd.f32 %v1214, %v1239
        %v1286 = vadd.f32 %v1215, %v1239
        %v1287 = vadd.f32 %v1216, %v1239
        %v1288 = vadd.f32 %v1217, %v1239
        %v1289 = vadd.f32 %v1218, %v1239
        %v1290 = vadd.f32 %v1219, %v1239
        %v1291 = vadd.f32 %v1220, %v1239
        %v1292 = vadd.f32 %v1221, %v1239
        %v1293 = vadd.f32 %v1222, %v1239
        %v1294 = vadd.f32 %v1223, %v1239
        %v1295 = vadd.f32 %v1224, %v1239
        %v1296 = vadd.f32 %v1225, %v1239
        %v1297 = vadd.f32 %v1226, %v1239
        %v1298 = vadd.f32 %v1227, %v1239
        %v1299 = vadd.f32 %v1228, %v1239
        %v1300 = vadd.f32 %v1229, %v1239
        %v1301 = vadd.f32 %v1230, %v1239
        %v1302 = vadd.f32 %v1231, %v1239
        %v1303 = vadd.f32 %v1232, %v1239
        %v1304 = vadd.f32 %v1233, %v1239
        %v1305 = vmax.f32 %v1241, 0.0
        %v1306 = vmax.f32 %v1242, 0.0
        %v1307 = vmax.f32 %v1243, 0.0
        %v1308 = vmax.f32 %v1244, 0.0
        %v1309 = vmax.f32 %v1245, 0.0
        %v1310 = vmax.f32 %v1246, 0.0
        %v1311 = vmax.f32 %v1247, 0.0
        %v1312 = vmax.f32 %v1248, 0.0
        %v1313 = vmax.f32 %v1249, 0.0
        %v1314 = vmax.f32 %v1250, 0.0
        %v1315 = vmax.f32 %v1251, 0.0
        %v1316 = vmax.f32 %v1252, 0.0
        %v1317 = vmax.f32 %v1253, 0.0
        %v1318 = vmax.f32 %v1254, 0.0
        %v1319 = vmax.f32 %v1255, 0.0
        %v1320 = vmax.f32 %v1256, 0.0
        %v1321 = vmax.f32 %v1257, 0.0
        %v1322 = vmax.f32 %v1258, 0.0
        %v1323 = vmax.f32 %v1259, 0.0
        %v1324 = vmax.f32 %v1260, 0.0
        %v1325 = vmax.f32 %v1261, 0.0
        %v1326 = vmax.f32 %v1262, 0.0
        %v1327 = vmax.f32 %v1263, 0.0
        %v1328 = vmax.f32 %v1264, 0.0
        %v1329 = vmax.f32 %v1265, 0.0
        %v1330 = vmax.f32 %v1266, 0.0
        %v1331 = vmax.f32 %v1267, 0.0
        %v1332 = vmax.f32 %v1268, 0.0
        %v1333 = vmax.f32 %v1269, 0.0
        %v1334 = vmax.f32 %v1270, 0.0
        %v1335 = vmax.f32 %v1271, 0.0
        %v1336 = vmax.f32 %v1272, 0.0
        %v1337 = vmax.f32 %v1273, 0.0
        %v1338 = vmax.f32 %v1274, 0.0
        %v1339 = vmax.f32 %v1275, 0.0
        %v1340 = vmax.f32 %v1276, 0.0
        %v1341 = vmax.f32 %v1277, 0.0
        %v1342 = vmax.f32 %v1278, 0.0
        %v1343 = vmax.f32 %v1279, 0.0
        %v1344 = vmax.f32 %v1280, 0.0
        %v1345 = vmax.f32 %v1281, 0.0
        %v1346 = vmax.f32 %v1282, 0.0
        %v1347 = vmax.f32 %v1283, 0.0
        %v1348 = vmax.f32 %v1284, 0.0
        %v1349 = vmax.f32 %v1285, 0.0
        %v1350 = vmax.f32 %v1286, 0.0
        %v1351 = vmax.f32 %v1287, 0.0
        %v1352 = vmax.f32 %v1288, 0.0
        %v1353 = vmax.f32 %v1289, 0.0
        %v1354 = vmax.f32 %v1290, 0.0
        %v1355 = vmax.f32 %v1291, 0.0
        %v1356 = vmax.f32 %v1292, 0.0
        %v1357 = vmax.f32 %v1293, 0.0
        %v1358 = vmax.f32 %v1294, 0.0
        %v1359 = vmax.f32 %v1295, 0.0
        %v1360 = vmax.f32 %v1296, 0.0
        %v1361 = vmax.f32 %v1297, 0.0
        %v1362 = vmax.f32 %v1298, 0.0
        %v1363 = vmax.f32 %v1299, 0.0
        %v1364 = vmax.f32 %v1300, 0.0
        %v1365 = vmax.f32 %v1301, 0.0
        %v1366 = vmax.f32 %v1302, 0.0
        %v1367 = vmax.f32 %v1303, 0.0
        %v1368 = vmax.f32 %v1304, 0.0
        %1369 = vst.msk [vmem:[%s257] sm:$0xff] %vm1102, %v1305
        %1370 = vst.msk [vmem:[%s257 + $0x8] sm:$0xff] %vm1102, %v1306
        %1371 = vst.msk [vmem:[%s257 + $0x10] sm:$0xff] %vm1102, %v1307
        %1372 = vst.msk [vmem:[%s257 + $0x18] sm:$0xff] %vm1102, %v1308
        %1373 = vst.msk [vmem:[%s257 + $0x20] sm:$0xff] %vm1102, %v1309
        %1374 = vst.msk [vmem:[%s257 + $0x28] sm:$0xff] %vm1102, %v1310
        %1375 = vst.msk [vmem:[%s257 + $0x30] sm:$0xff] %vm1102, %v1311
        %1376 = vst.msk [vmem:[%s257 + $0x38] sm:$0xff] %vm1102, %v1312
        %1377 = vst.msk [vmem:[%s257 + $0x40] sm:$0xff] %vm1102, %v1313
        %1378 = vst.msk [vmem:[%s257 + $0x48] sm:$0xff] %vm1102, %v1314
        %1379 = vst.msk [vmem:[%s257 + $0x50] sm:$0xff] %vm1102, %v1315
        %1380 = vst.msk [vmem:[%s257 + $0x58] sm:$0xff] %vm1102, %v1316
        %1381 = vst.msk [vmem:[%s257 + $0x60] sm:$0xff] %vm1102, %v1317
        %1382 = vst.msk [vmem:[%s257 + $0x68] sm:$0xff] %vm1102, %v1318
        %1383 = vst.msk [vmem:[%s257 + $0x70] sm:$0xff] %vm1102, %v1319
        %1384 = vst.msk [vmem:[%s257 + $0x78] sm:$0xff] %vm1102, %v1320
        %1385 = vst.msk [vmem:[%s257 + $0x80] sm:$0xff] %vm1102, %v1321
        %1386 = vst.msk [vmem:[%s257 + $0x88] sm:$0xff] %vm1102, %v1322
        %1387 = vst.msk [vmem:[%s257 + $0x90] sm:$0xff] %vm1102, %v1323
        %1388 = vst.msk [vmem:[%s257 + $0x98] sm:$0xff] %vm1102, %v1324
        %1389 = vst.msk [vmem:[%s257 + $0xa0] sm:$0xff] %vm1102, %v1325
        %1390 = vst.msk [vmem:[%s257 + $0xa8] sm:$0xff] %vm1102, %v1326
        %1391 = vst.msk [vmem:[%s257 + $0xb0] sm:$0xff] %vm1102, %v1327
        %1392 = vst.msk [vmem:[%s257 + $0xb8] sm:$0xff] %vm1102, %v1328
        %1393 = vst.msk [vmem:[%s257 + $0xc0] sm:$0xff] %vm1102, %v1329
        %1394 = vst.msk [vmem:[%s257 + $0xc8] sm:$0xff] %vm1102, %v1330
        %1395 = vst.msk [vmem:[%s257 + $0xd0] sm:$0xff] %vm1102, %v1331
        %1396 = vst.msk [vmem:[%s257 + $0xd8] sm:$0xff] %vm1102, %v1332
        %1397 = vst.msk [vmem:[%s257 + $0xe0] sm:$0xff] %vm1102, %v1333
        %1398 = vst.msk [vmem:[%s257 + $0xe8] sm:$0xff] %vm1102, %v1334
        %1399 = vst.msk [vmem:[%s257 + $0xf0] sm:$0xff] %vm1102, %v1335
        %1400 = vst.msk [vmem:[%s257 + $0xf8] sm:$0xff] %vm1102, %v1336
        %1401 = vst.msk [vmem:[%s257 + $0x100] sm:$0xff] %vm1102, %v1337
        %1402 = vst.msk [vmem:[%s257 + $0x108] sm:$0xff] %vm1102, %v1338
        %1403 = vst.msk [vmem:[%s257 + $0x110] sm:$0xff] %vm1102, %v1339
        %1404 = vst.msk [vmem:[%s257 + $0x118] sm:$0xff] %vm1102, %v1340
        %1405 = vst.msk [vmem:[%s257 + $0x120] sm:$0xff] %vm1102, %v1341
        %1406 = vst.msk [vmem:[%s257 + $0x128] sm:$0xff] %vm1102, %v1342
        %1407 = vst.msk [vmem:[%s257 + $0x130] sm:$0xff] %vm1102, %v1343
        %1408 = vst.msk [vmem:[%s257 + $0x138] sm:$0xff] %vm1102, %v1344
        %1409 = vst.msk [vmem:[%s257 + $0x140] sm:$0xff] %vm1102, %v1345
        %1410 = vst.msk [vmem:[%s257 + $0x148] sm:$0xff] %vm1102, %v1346
        %1411 = vst.msk [vmem:[%s257 + $0x150] sm:$0xff] %vm1102, %v1347
        %1412 = vst.msk [vmem:[%s257 + $0x158] sm:$0xff] %vm1102, %v1348
        %1413 = vst.msk [vmem:[%s257 + $0x160] sm:$0xff] %vm1102, %v1349
        %1414 = vst.msk [vmem:[%s257 + $0x168] sm:$0xff] %vm1102, %v1350
        %1415 = vst.msk [vmem:[%s257 + $0x170] sm:$0xff] %vm1102, %v1351
        %1416 = vst.msk [vmem:[%s257 + $0x178] sm:$0xff] %vm1102, %v1352
        %1417 = vst.msk [vmem:[%s257 + $0x180] sm:$0xff] %vm1102, %v1353
        %1418 = vst.msk [vmem:[%s257 + $0x188] sm:$0xff] %vm1102, %v1354
        %1419 = vst.msk [vmem:[%s257 + $0x190] sm:$0xff] %vm1102, %v1355
        %1420 = vst.msk [vmem:[%s257 + $0x198] sm:$0xff] %vm1102, %v1356
        %1421 = vst.msk [vmem:[%s257 + $0x1a0] sm:$0xff] %vm1102, %v1357
        %1422 = vst.msk [vmem:[%s257 + $0x1a8] sm:$0xff] %vm1102, %v1358
        %1423 = vst.msk [vmem:[%s257 + $0x1b0] sm:$0xff] %vm1102, %v1359
        %1424 = vst.msk [vmem:[%s257 + $0x1b8] sm:$0xff] %vm1102, %v1360
        %1425 = vst.msk [vmem:[%s257 + $0x1c0] sm:$0xff] %vm1102, %v1361
        %1426 = vst.msk [vmem:[%s257 + $0x1c8] sm:$0xff] %vm1102, %v1362
        %1427 = vst.msk [vmem:[%s257 + $0x1d0] sm:$0xff] %vm1102, %v1363
        %1428 = vst.msk [vmem:[%s257 + $0x1d8] sm:$0xff] %vm1102, %v1364
        %1429 = vst.msk [vmem:[%s257 + $0x1e0] sm:$0xff] %vm1102, %v1365
        %1430 = vst.msk [vmem:[%s257 + $0x1e8] sm:$0xff] %vm1102, %v1366
        %1431 = vst.msk [vmem:[%s257 + $0x1f0] sm:$0xff] %vm1102, %v1367
        %1432 = vst.msk [vmem:[%s257 + $0x1f8] sm:$0xff] %vm1102, %v1368
      $region40: #{cnnlstm_forward.4} parent=31 // pred_fallthru
        _
      %s1433 = smul.u32 64, %s19
      %p1434 = scmp.lt.s32.totalorder %s1433, 127
      %s1435 = scalar_select %p1434, %s1433, 127
      %p1436 = scmp.lt.s32.totalorder %s20, 0
      %s1437 = scalar_select %p1436, %s20, 0
      %s1438 = sadd.s32 %s1437, %s1435
      %s1439 = smul.addr %s1438, 8
      %s1440 = scalar_lea.vmem %s3, %s1439
      // Predicated region
      $region41: #{cnnlstm_forward.4} parent=31 // pred_check
        %p1441 = pneg %p135
      $region42: #{cnnlstm_forward.4} parent=31 // pred_check_branch
        %1443 = sbr.rel (%p1441) target = $region44
      $region43: #{cnnlstm_forward.4} parent=31 // pred_region
        %s1444 = smul.u32 64, %s19
      $region44: #{cnnlstm_forward.4} parent=31 // pred_fallthru
        _
    $region32: #{cnnlstm_forward.4} parent=5 // pred_fallthru
      _
    %p1445 = scmp.le.s32.totalorder 2, %s9
    // Predicated region
    $region45: #{cnnlstm_forward.4} parent=5 // pred_check
      %p1446 = pneg %p1445
    $region46: #{cnnlstm_forward.4} parent=5 // pred_check_branch
      %1448 = sbr.rel (%p1446) target = $region48
    $region47: #{cnnlstm_forward.4} parent=5 // pred_region
      %s1449 = ssub.s32 %s9, 2
      // Predicated region
      $region49: #{cnnlstm_forward.4} parent=47 // pred_check
        %p1450 = pneg %p141
      $region50: #{cnnlstm_forward.4} parent=47 // pred_check_branch
        %1452 = sbr.rel (%p1450) target = $region52
      $region51: #{cnnlstm_forward.4} parent=47 // pred_region
        %s1453 = smul.u32 64, %s22
        %p1454 = scmp.lt.s32.totalorder %s1453, 127
        %s1455 = scalar_select %p1454, %s1453, 127
        %p1456 = scmp.lt.s32.totalorder %s23, 0
        %s1457 = scalar_select %p1456, %s23, 0
        %s1458 = sadd.s32 %s1457, %s1455
        %s1459 = smul.addr %s1458, 8
        %s1460 = scalar_lea.vmem %s3, %s1459
      $region52: #{cnnlstm_forward.4} parent=47 // pred_fallthru
        _
    $region48: #{cnnlstm_forward.4} parent=5 // pred_fallthru
      _
  $region6: #{cnnlstm_forward.4} parent=0 // loop_footer
    %s13 = sadd.s32 1, %s9
  $region7: #{cnnlstm_forward.4} parent=0 // loop_footer_branch
    %8 = sbr.rel target = $region3
  $region8: #{cnnlstm_forward.4} parent=0 // loop_exit
    _

// kernel: cnnlstm_forward.5
$region0: #{cnnlstm_forward.5}
  #allocation0 [shape = 'u32[]', space=smem, size = 0x4, offset = 0x4, fixed_abs, tag = 'smem constant byte address 0x4 - core index']
  #allocation1 [shape = 'u32[144,128]{1,0:T(1,128)}', space=vmem, size = 0x12000, scoped, tag = 'internal scratch']
  #allocation2 [shape = 'f32[16,16]{1,0:T(8,128)}', space=vmem, size = 0x2000, scoped, tag = 'scratch operand']
  %s0 = inlined_call_operand.vmem [shape: f32[16,512], index: 0, kind: input, shape index: {}]
  %s1 = inlined_call_operand.vmem [shape: f32[512,16], index: 1, kind: input, shape index: {}]
  %s2 = inlined_call_operand.vmem [shape: f32[1,16], index: 2, kind: input, shape index: {}]
  %s3 = inlined_call_operand.vmem [shape: f32[16,16], index: 3, kind: output, shape index: {}]
  %s4 = sld [smem:[#allocation0]]
  $region30: #{cnnlstm_forward.5} parent=0
    _
  %s6 = ssub.s32 1, %s4
  %s7 = scalar_select 0, %s6, %s4
  // Predicated region
  $region2: #{cnnlstm_forward.5} parent=0 // pred_check
    _
  $region3: #{cnnlstm_forward.5} parent=0 // pred_check_branch
    %9 = sbr.rel (0) target = $region5
  $region4: #{cnnlstm_forward.5} parent=0 // pred_region
    _
  $region5: #{cnnlstm_forward.5} parent=0 // pred_fallthru
    _
  // Predicated region
  $region6: #{cnnlstm_forward.5} parent=0 // pred_check
    _
  $region7: #{cnnlstm_forward.5} parent=0 // pred_check_branch
    %11 = sbr.rel (0) target = $region9
  $region8: #{cnnlstm_forward.5} parent=0 // pred_region
    _
  $region9: #{cnnlstm_forward.5} parent=0 // pred_fallthru
    _
  // Predicated region
  $region10: #{cnnlstm_forward.5} parent=0 // pred_check
    _
  $region11: #{cnnlstm_forward.5} parent=0 // pred_check_branch
    %13 = sbr.rel (0) target = $region13
  $region12: #{cnnlstm_forward.5} parent=0 // pred_region
    _
  $region13: #{cnnlstm_forward.5} parent=0 // pred_fallthru
    _
  %p14 = scmp.eq.s32.totalorder 0, 0
  // Predicated region
  $region14: #{cnnlstm_forward.5} parent=0 // pred_check
    %p15 = pneg %p14
  $region15: #{cnnlstm_forward.5} parent=0 // pred_check_branch
    %17 = sbr.rel (%p15) target = $region17
  $region16: #{cnnlstm_forward.5} parent=0 // pred_region
    %vm18 = vcmask 130048
    %19 = vst.msk [vmem:[#allocation2] sm:$0xff] %vm18, 0.0
    %20 = vst.msk [vmem:[#allocation2 + $0x8] sm:$0xff] %vm18, 0.0
  $region17: #{cnnlstm_forward.5} parent=0 // pred_fallthru
    _
  %v21 = vld [vmem:[#allocation2] sm:$0xff]
  %v22 = vld [vmem:[#allocation2 + $0x8] sm:$0xff]
  %v23 = vld [vmem:[%s0] sm:$0xff]
  %v24 = vld [vmem:[%s0 + $0x8] sm:$0xff]
  %v25 = vld [vmem:[%s0 + $0x10] sm:$0xff]
  %v26 = vld [vmem:[%s0 + $0x18] sm:$0xff]
  %v27 = vld [vmem:[%s0 + $0x20] sm:$0xff]
  %v28 = vld [vmem:[%s0 + $0x28] sm:$0xff]
  %v29 = vld [vmem:[%s0 + $0x30] sm:$0xff]
  %v30 = vld [vmem:[%s0 + $0x38] sm:$0xff]
  %v31 = vld [vmem:[%s1] sm:$0xff]
  %v32 = vld [vmem:[%s1 + $0x8] sm:$0xff]
  %v33 = vld [vmem:[%s1 + $0x10] sm:$0xff]
  %v34 = vld [vmem:[%s1 + $0x18] sm:$0xff]
  %v35 = vld [vmem:[%s1 + $0x20] sm:$0xff]
  %v36 = vld [vmem:[%s1 + $0x28] sm:$0xff]
  %v37 = vld [vmem:[%s1 + $0x30] sm:$0xff]
  %v38 = vld [vmem:[%s1 + $0x38] sm:$0xff]
  %v39 = vld [vmem:[%s1 + $0x40] sm:$0xff]
  %v40 = vld [vmem:[%s1 + $0x48] sm:$0xff]
  %v41 = vld [vmem:[%s1 + $0x50] sm:$0xff]
  %v42 = vld [vmem:[%s1 + $0x58] sm:$0xff]
  %v43 = vld [vmem:[%s1 + $0x60] sm:$0xff]
  %v44 = vld [vmem:[%s1 + $0x68] sm:$0xff]
  %v45 = vld [vmem:[%s1 + $0x70] sm:$0xff]
  %v46 = vld [vmem:[%s1 + $0x78] sm:$0xff]
  %v47 = vld [vmem:[%s1 + $0x80] sm:$0xff]
  %v48 = vld [vmem:[%s1 + $0x88] sm:$0xff]
  %v49 = vld [vmem:[%s1 + $0x90] sm:$0xff]
  %v50 = vld [vmem:[%s1 + $0x98] sm:$0xff]
  %v51 = vld [vmem:[%s1 + $0xa0] sm:$0xff]
  %v52 = vld [vmem:[%s1 + $0xa8] sm:$0xff]
  %v53 = vld [vmem:[%s1 + $0xb0] sm:$0xff]
  %v54 = vld [vmem:[%s1 + $0xb8] sm:$0xff]
  %v55 = vld [vmem:[%s1 + $0xc0] sm:$0xff]
  %v56 = vld [vmem:[%s1 + $0xc8] sm:$0xff]
  %v57 = vld [vmem:[%s1 + $0xd0] sm:$0xff]
  %v58 = vld [vmem:[%s1 + $0xd8] sm:$0xff]
  %v59 = vld [vmem:[%s1 + $0xe0] sm:$0xff]
  %v60 = vld [vmem:[%s1 + $0xe8] sm:$0xff]
  %v61 = vld [vmem:[%s1 + $0xf0] sm:$0xff]
  %v62 = vld [vmem:[%s1 + $0xf8] sm:$0xff]
  %v63 = vld [vmem:[%s1 + $0x100] sm:$0xff]
  %v64 = vld [vmem:[%s1 + $0x108] sm:$0xff]
  %v65 = vld [vmem:[%s1 + $0x110] sm:$0xff]
  %v66 = vld [vmem:[%s1 + $0x118] sm:$0xff]
  %v67 = vld [vmem:[%s1 + $0x120] sm:$0xff]
  %v68 = vld [vmem:[%s1 + $0x128] sm:$0xff]
  %v69 = vld [vmem:[%s1 + $0x130] sm:$0xff]
  %v70 = vld [vmem:[%s1 + $0x138] sm:$0xff]
  %v71 = vld [vmem:[%s1 + $0x140] sm:$0xff]
  %v72 = vld [vmem:[%s1 + $0x148] sm:$0xff]
  %v73 = vld [vmem:[%s1 + $0x150] sm:$0xff]
  %v74 = vld [vmem:[%s1 + $0x158] sm:$0xff]
  %v75 = vld [vmem:[%s1 + $0x160] sm:$0xff]
  %v76 = vld [vmem:[%s1 + $0x168] sm:$0xff]
  %v77 = vld [vmem:[%s1 + $0x170] sm:$0xff]
  %v78 = vld [vmem:[%s1 + $0x178] sm:$0xff]
  %v79 = vld [vmem:[%s1 + $0x180] sm:$0xff]
  %v80 = vld [vmem:[%s1 + $0x188] sm:$0xff]
  %v81 = vld [vmem:[%s1 + $0x190] sm:$0xff]
  %v82 = vld [vmem:[%s1 + $0x198] sm:$0xff]
  %v83 = vld [vmem:[%s1 + $0x1a0] sm:$0xff]
  %v84 = vld [vmem:[%s1 + $0x1a8] sm:$0xff]
  %v85 = vld [vmem:[%s1 + $0x1b0] sm:$0xff]
  %v86 = vld [vmem:[%s1 + $0x1b8] sm:$0xff]
  %v87 = vld [vmem:[%s1 + $0x1c0] sm:$0xff]
  %v88 = vld [vmem:[%s1 + $0x1c8] sm:$0xff]
  %v89 = vld [vmem:[%s1 + $0x1d0] sm:$0xff]
  %v90 = vld [vmem:[%s1 + $0x1d8] sm:$0xff]
  %v91 = vld [vmem:[%s1 + $0x1e0] sm:$0xff]
  %v92 = vld [vmem:[%s1 + $0x1e8] sm:$0xff]
  %v93 = vld [vmem:[%s1 + $0x1f0] sm:$0xff]
  %v94 = vld [vmem:[%s1 + $0x1f8] sm:$0xff]
  %95 = vmatprep.subr.mxu0 0.0
  %96 = vmatpush1.msra.mxu0 %v31
  %97 = vmatprep.subr.mxu0 0.0
  %98 = vmatpush1.msra.mxu0 %v32
  %99 = vmatprep.subr.mxu0 0.0
  %100 = vmatpush1.msra.mxu0 %v33
  %101 = vmatprep.subr.mxu0 0.0
  %102 = vmatpush1.msra.mxu0 %v34
  %103 = vmatprep.subr.mxu0 0.0
  %104 = vmatpush1.msra.mxu0 %v35
  %105 = vmatprep.subr.mxu0 0.0
  %106 = vmatpush1.msra.mxu0 %v36
  %107 = vmatprep.subr.mxu0 0.0
  %108 = vmatpush1.msra.mxu0 %v37
  %109 = vmatprep.subr.mxu0 0.0
  %110 = vmatpush1.msra.mxu0 %v38
  %111 = vmatprep.subr.mxu0 0.0
  %112 = vmatpush1.msra.mxu0 %v39
  %113 = vmatprep.subr.mxu0 0.0
  %114 = vmatpush1.msra.mxu0 %v40
  %115 = vmatprep.subr.mxu0 0.0
  %116 = vmatpush1.msra.mxu0 %v41
  %117 = vmatprep.subr.mxu0 0.0
  %118 = vmatpush1.msra.mxu0 %v42
  %119 = vmatprep.subr.mxu0 0.0
  %120 = vmatpush1.msra.mxu0 %v43
  %121 = vmatprep.subr.mxu0 0.0
  %122 = vmatpush1.msra.mxu0 %v44
  %123 = vmatprep.subr.mxu0 0.0
  %124 = vmatpush1.msra.mxu0 %v45
  %125 = vmatprep.subr.mxu0 0.0
  %126 = vmatpush1.msra.mxu0 %v46
  %127 = vmatprep.subr.mxu0 0.0
  %128 = vmatpush1.msra.mxu0 %v47
  %129 = vmatprep.subr.mxu0 0.0
  %130 = vmatpush1.msra.mxu0 %v48
  %131 = vmatprep.subr.mxu0 0.0
  %132 = vmatpush1.msra.mxu0 %v49
  %133 = vmatprep.subr.mxu0 0.0
  %134 = vmatpush1.msra.mxu0 %v50
  %135 = vmatprep.subr.mxu0 0.0
  %136 = vmatpush1.msra.mxu0 %v51
  %137 = vmatprep.subr.mxu0 0.0
  %138 = vmatpush1.msra.mxu0 %v52
  %139 = vmatprep.subr.mxu0 0.0
  %140 = vmatpush1.msra.mxu0 %v53
  %141 = vmatprep.subr.mxu0 0.0
  %142 = vmatpush1.msra.mxu0 %v54
  %143 = vmatprep.subr.mxu0 0.0
  %144 = vmatpush1.msra.mxu0 %v55
  %145 = vmatprep.subr.mxu0 0.0
  %146 = vmatpush1.msra.mxu0 %v56
  %147 = vmatprep.subr.mxu0 0.0
  %148 = vmatpush1.msra.mxu0 %v57
  %149 = vmatprep.subr.mxu0 0.0
  %150 = vmatpush1.msra.mxu0 %v58
  %151 = vmatprep.subr.mxu0 0.0
  %152 = vmatpush1.msra.mxu0 %v59
  %153 = vmatprep.subr.mxu0 0.0
  %154 = vmatpush1.msra.mxu0 %v60
  %155 = vmatprep.subr.mxu0 0.0
  %156 = vmatpush1.msra.mxu0 %v61
  %157 = vmatprep.subr.mxu0 0.0
  %158 = vmatpush1.msra.mxu0 %v62
  %159 = vmatprep.mubr.f32.mxu0 %v24
  %160 = vmatmul.mubr.f32.gmra.mrb[0].mxu0 %v23
  %v161 = vpop.f32.mrb[0].mxu0
  %v162 = vadd.f32 0.0, %v161
  %v163 = vpop.f32.mrb[0].mxu0
  %164 = vmatprep.mubr.f32.mxu0 %v28
  %165 = vmatmul.mubr.f32.gmra.mrb[0].mxu0 %v27
  %v166 = vpop.f32.mrb[0].mxu0
  %v167 = vadd.f32 0.0, %v166
  %v168 = vpop.f32.mrb[0].mxu0
  %169 = vdwg.mxu0
  %170 = vmatprep.subr.mxu0 0.0
  %171 = vmatpush1.msra.mxu0 %v63
  %172 = vmatprep.subr.mxu0 0.0
  %173 = vmatpush1.msra.mxu0 %v64
  %174 = vmatprep.subr.mxu0 0.0
  %175 = vmatpush1.msra.mxu0 %v65
  %176 = vmatprep.subr.mxu0 0.0
  %177 = vmatpush1.msra.mxu0 %v66
  %178 = vmatprep.subr.mxu0 0.0
  %179 = vmatpush1.msra.mxu0 %v67
  %180 = vmatprep.subr.mxu0 0.0
  %181 = vmatpush1.msra.mxu0 %v68
  %182 = vmatprep.subr.mxu0 0.0
  %183 = vmatpush1.msra.mxu0 %v69
  %184 = vmatprep.subr.mxu0 0.0
  %185 = vmatpush1.msra.mxu0 %v70
  %186 = vmatprep.subr.mxu0 0.0
  %187 = vmatpush1.msra.mxu0 %v71
  %188 = vmatprep.subr.mxu0 0.0
  %189 = vmatpush1.msra.mxu0 %v72
  %190 = vmatprep.subr.mxu0 0.0
  %191 = vmatpush1.msra.mxu0 %v73
  %192 = vmatprep.subr.mxu0 0.0
  %193 = vmatpush1.msra.mxu0 %v74
  %194 = vmatprep.subr.mxu0 0.0
  %195 = vmatpush1.msra.mxu0 %v75
  %196 = vmatprep.subr.mxu0 0.0
  %197 = vmatpush1.msra.mxu0 %v76
  %198 = vmatprep.subr.mxu0 0.0
  %199 = vmatpush1.msra.mxu0 %v77
  %200 = vmatprep.subr.mxu0 0.0
  %201 = vmatpush1.msra.mxu0 %v78
  %202 = vmatprep.subr.mxu0 0.0
  %203 = vmatpush1.msra.mxu0 %v79
  %204 = vmatprep.subr.mxu0 0.0
  %205 = vmatpush1.msra.mxu0 %v80
  %206 = vmatprep.subr.mxu0 0.0
  %207 = vmatpush1.msra.mxu0 %v81
  %208 = vmatprep.subr.mxu0 0.0
  %209 = vmatpush1.msra.mxu0 %v82
  %210 = vmatprep.subr.mxu0 0.0
  %211 = vmatpush1.msra.mxu0 %v83
  %212 = vmatprep.subr.mxu0 0.0
  %213 = vmatpush1.msra.mxu0 %v84
  %214 = vmatprep.subr.mxu0 0.0
  %215 = vmatpush1.msra.mxu0 %v85
  %216 = vmatprep.subr.mxu0 0.0
  %217 = vmatpush1.msra.mxu0 %v86
  %218 = vmatprep.subr.mxu0 0.0
  %219 = vmatpush1.msra.mxu0 %v87
  %220 = vmatprep.subr.mxu0 0.0
  %221 = vmatpush1.msra.mxu0 %v88
  %222 = vmatprep.subr.mxu0 0.0
  %223 = vmatpush1.msra.mxu0 %v89
  %224 = vmatprep.subr.mxu0 0.0
  %225 = vmatpush1.msra.mxu0 %v90
  %226 = vmatprep.subr.mxu0 0.0
  %227 = vmatpush1.msra.mxu0 %v91
  %228 = vmatprep.subr.mxu0 0.0
  %229 = vmatpush1.msra.mxu0 %v92
  %230 = vmatprep.subr.mxu0 0.0
  %231 = vmatpush1.msra.mxu0 %v93
  %232 = vmatprep.subr.mxu0 0.0
  %233 = vmatpush1.msra.mxu0 %v94
  %234 = vmatprep.mubr.f32.mxu0 %v26
  %235 = vmatmul.mubr.f32.gmra.mrb[0].mxu0 %v25
  %v236 = vpop.f32.mrb[0].mxu0
  %v237 = vadd.f32 %v162, %v236
  %v238 = vpop.f32.mrb[0].mxu0
  %239 = vmatprep.mubr.f32.mxu0 %v30
  %240 = vmatmul.mubr.f32.gmra.mrb[0].mxu0 %v29
  %v241 = vpop.f32.mrb[0].mxu0
  %v242 = vadd.f32 %v167, %v241
  %v243 = vpop.f32.mrb[0].mxu0
  %244 = vdwg.mxu0
  %v245 = vadd.f32 %v21, %v237
  %v246 = vadd.f32 %v22, %v242
  %vm247 = vcmask 130048
  %248 = vst.msk [vmem:[#allocation2] sm:$0xff] %vm247, %v245
  %249 = vst.msk [vmem:[#allocation2 + $0x8] sm:$0xff] %vm247, %v246
  // Predicated region
  $region18: #{cnnlstm_forward.5} parent=0 // pred_check
    %p250 = pneg %p14
  $region19: #{cnnlstm_forward.5} parent=0 // pred_check_branch
    %252 = sbr.rel (%p250) target = $region21
  $region20: #{cnnlstm_forward.5} parent=0 // pred_region
    %v253 = vld [vmem:[#allocation2] sm:$0xff]
    %v254 = vld [vmem:[#allocation2 + $0x8] sm:$0xff]
    %v255 = vld [vmem:[%s2] sm:$0x1]
    %v257 = vlaneseq
    %v258 = vshrl.u32 %v257, 7
    %v259 = vsub.s32 0, %v258
    %v260 = vrot.slane %v255, %v259
    %v262 = vadd.f32 %v253, %v260
    %v263 = vadd.f32 %v254, %v260
    %264 = vst.msk [vmem:[%s3] sm:$0xff] %vm247, %v262
    %265 = vst.msk [vmem:[%s3 + $0x8] sm:$0xff] %vm247, %v263
  $region21: #{cnnlstm_forward.5} parent=0 // pred_fallthru
    _
  // Predicated region
  $region22: #{cnnlstm_forward.5} parent=0 // pred_check
    _
  $region23: #{cnnlstm_forward.5} parent=0 // pred_check_branch
    %267 = sbr.rel (0) target = $region25
  $region24: #{cnnlstm_forward.5} parent=0 // pred_region
    _
  $region25: #{cnnlstm_forward.5} parent=0 // pred_fallthru
    _
  // Predicated region
  $region26: #{cnnlstm_forward.5} parent=0 // pred_check
    _
  $region27: #{cnnlstm_forward.5} parent=0 // pred_check_branch
    %269 = sbr.rel (0) target = $region29
  $region28: #{cnnlstm_forward.5} parent=0 // pred_region
    _
  $region29: #{cnnlstm_forward.5} parent=0 // pred_fallthru
    _

// kernel: cnnlstm_forward.6
$region0: #{cnnlstm_forward.6}
  #allocation0 [shape = 'u32[]', space=smem, size = 0x4, offset = 0x4, fixed_abs, tag = 'smem constant byte address 0x4 - core index']
  #allocation1 [shape = 'u32[144,128]{1,0:T(1,128)}', space=vmem, size = 0x12000, scoped, tag = 'internal scratch']
  #allocation2 [shape = 'f32[16,128]{1,0:T(8,128)}', space=vmem, size = 0x2000, scoped, tag = 'scratch operand']
  #allocation3 [shape = 'f32[2,48]{1,0:T(2,128)}', space=vmem, size = 0x400, scoped, tag = 'scratch operand']
  %s0 = inlined_call_operand.vmem [shape: f32[16,16], index: 0, kind: input, shape index: {}]
  %s1 = inlined_call_operand.vmem [shape: f32[2,16], index: 1, kind: input, shape index: {}]
  %s2 = inlined_call_operand.vmem [shape: f32[16,128], index: 2, kind: input, shape index: {}]
  %s3 = inlined_call_operand.vmem [shape: f32[32,128], index: 3, kind: input, shape index: {}]
  %s4 = inlined_call_operand.vmem [shape: f32[1,128], index: 4, kind: input, shape index: {}]
  %s5 = inlined_call_operand.vmem [shape: f32[48,128], index: 5, kind: input, shape index: {}]
  %s6 = inlined_call_operand.vmem [shape: f32[1,128], index: 6, kind: input, shape index: {}]
  %s7 = inlined_call_operand.vmem [shape: f32[32,16], index: 7, kind: input, shape index: {}]
  %s8 = inlined_call_operand.vmem [shape: f32[1,16], index: 8, kind: input, shape index: {}]
  %s9 = inlined_call_operand.vmem [shape: f32[8,16], index: 9, kind: output, shape index: {}]
  %s10 = sld [smem:[#allocation0]]
  $region46: #{cnnlstm_forward.6} parent=0
    _
  %s12 = ssub.s32 1, %s10
  %s13 = scalar_select 0, %s12, %s10
  // Predicated region
  $region2: #{cnnlstm_forward.6} parent=0 // pred_check
    _
  $region3: #{cnnlstm_forward.6} parent=0 // pred_check_branch
    %15 = sbr.rel (0) target = $region5
  $region4: #{cnnlstm_forward.6} parent=0 // pred_region
    _
  $region5: #{cnnlstm_forward.6} parent=0 // pred_fallthru
    _
  // Predicated region
  $region6: #{cnnlstm_forward.6} parent=0 // pred_check
    _
  $region7: #{cnnlstm_forward.6} parent=0 // pred_check_branch
    %17 = sbr.rel (0) target = $region9
  $region8: #{cnnlstm_forward.6} parent=0 // pred_region
    _
  $region9: #{cnnlstm_forward.6} parent=0 // pred_fallthru
    _
  // Predicated region
  $region10: #{cnnlstm_forward.6} parent=0 // pred_check
    _
  $region11: #{cnnlstm_forward.6} parent=0 // pred_check_branch
    %19 = sbr.rel (0) target = $region13
  $region12: #{cnnlstm_forward.6} parent=0 // pred_region
    _
  $region13: #{cnnlstm_forward.6} parent=0 // pred_fallthru
    _
  // Predicated region
  $region14: #{cnnlstm_forward.6} parent=0 // pred_check
    _
  $region15: #{cnnlstm_forward.6} parent=0 // pred_check_branch
    %21 = sbr.rel (0) target = $region17
  $region16: #{cnnlstm_forward.6} parent=0 // pred_region
    _
  $region17: #{cnnlstm_forward.6} parent=0 // pred_fallthru
    _
  // Predicated region
  $region18: #{cnnlstm_forward.6} parent=0 // pred_check
    _
  $region19: #{cnnlstm_forward.6} parent=0 // pred_check_branch
    %23 = sbr.rel (0) target = $region21
  $region20: #{cnnlstm_forward.6} parent=0 // pred_region
    _
  $region21: #{cnnlstm_forward.6} parent=0 // pred_fallthru
    _
  // Predicated region
  $region22: #{cnnlstm_forward.6} parent=0 // pred_check
    _
  $region23: #{cnnlstm_forward.6} parent=0 // pred_check_branch
    %25 = sbr.rel (0) target = $region25
  $region24: #{cnnlstm_forward.6} parent=0 // pred_region
    _
  $region25: #{cnnlstm_forward.6} parent=0 // pred_fallthru
    _
  // Predicated region
  $region26: #{cnnlstm_forward.6} parent=0 // pred_check
    _
  $region27: #{cnnlstm_forward.6} parent=0 // pred_check_branch
    %27 = sbr.rel (0) target = $region29
  $region28: #{cnnlstm_forward.6} parent=0 // pred_region
    _
  $region29: #{cnnlstm_forward.6} parent=0 // pred_fallthru
    _
  // Predicated region
  $region30: #{cnnlstm_forward.6} parent=0 // pred_check
    _
  $region31: #{cnnlstm_forward.6} parent=0 // pred_check_branch
    %29 = sbr.rel (0) target = $region33
  $region32: #{cnnlstm_forward.6} parent=0 // pred_region
    _
  $region33: #{cnnlstm_forward.6} parent=0 // pred_fallthru
    _
  // Predicated region
  $region34: #{cnnlstm_forward.6} parent=0 // pred_check
    _
  $region35: #{cnnlstm_forward.6} parent=0 // pred_check_branch
    %31 = sbr.rel (0) target = $region37
  $region36: #{cnnlstm_forward.6} parent=0 // pred_region
    _
  $region37: #{cnnlstm_forward.6} parent=0 // pred_fallthru
    _
  %v32 = vld [vmem:[%s0] sm:$0xff]
  %v33 = vld [vmem:[%s0 + $0x8] sm:$0xff]
  %v34 = vld [vmem:[%s2] sm:$0xff]
  %v35 = vld [vmem:[%s2 + $0x8] sm:$0xff]
  %v36 = vld [vmem:[%s4] sm:$0x1]
  %v38 = vlaneseq
  %v39 = vshrl.u32 %v38, 7
  %v40 = vsub.s32 0, %v39
  %v41 = vrot.slane %v36, %v40
  %vm43 = vcmask 130048
  %v45 = vsel %vm43, %v32, 0
  %v48 = vsel %vm43, %v33, 0
  %50 = vmatprep.subr.mxu0 0.0
  %51 = vmatpush1.msra.mxu0 %v34
  %52 = vmatprep.subr.mxu0 0.0
  %53 = vmatpush1.msra.mxu0 %v35
  %54 = vmatprep.subr.mxu0 0.0
  %55 = vmatpush1.msra.mxu0 0.0
  %56 = vmatprep.subr.mxu0 0.0
  %57 = vmatpush1.msra.mxu0 0.0
  %58 = vmatprep.subr.mxu0 0.0
  %59 = vmatpush1.msra.mxu0 0.0
  %60 = vmatprep.subr.mxu0 0.0
  %61 = vmatpush1.msra.mxu0 0.0
  %62 = vmatprep.subr.mxu0 0.0
  %63 = vmatpush1.msra.mxu0 0.0
  %64 = vmatprep.subr.mxu0 0.0
  %65 = vmatpush1.msra.mxu0 0.0
  %66 = vmatprep.subr.mxu0 0.0
  %67 = vmatpush1.msra.mxu0 0.0
  %68 = vmatprep.subr.mxu0 0.0
  %69 = vmatpush1.msra.mxu0 0.0
  %70 = vmatprep.subr.mxu0 0.0
  %71 = vmatpush1.msra.mxu0 0.0
  %72 = vmatprep.subr.mxu0 0.0
  %73 = vmatpush1.msra.mxu0 0.0
  %74 = vmatprep.subr.mxu0 0.0
  %75 = vmatpush1.msra.mxu0 0.0
  %76 = vmatprep.subr.mxu0 0.0
  %77 = vmatpush1.msra.mxu0 0.0
  %78 = vmatprep.subr.mxu0 0.0
  %79 = vmatpush1.msra.mxu0 0.0
  %80 = vmatprep.subr.mxu0 0.0
  %81 = vmatpush1.msra.mxu0 0.0
  %82 = vmatprep.subr.mxu0 0.0
  %83 = vmatpush1.msra.mxu0 0.0
  %84 = vmatprep.subr.mxu0 0.0
  %85 = vmatpush1.msra.mxu0 0.0
  %86 = vmatprep.subr.mxu0 0.0
  %87 = vmatpush1.msra.mxu0 0.0
  %88 = vmatprep.subr.mxu0 0.0
  %89 = vmatpush1.msra.mxu0 0.0
  %90 = vmatprep.subr.mxu0 0.0
  %91 = vmatpush1.msra.mxu0 0.0
  %92 = vmatprep.subr.mxu0 0.0
  %93 = vmatpush1.msra.mxu0 0.0
  %94 = vmatprep.subr.mxu0 0.0
  %95 = vmatpush1.msra.mxu0 0.0
  %96 = vmatprep.subr.mxu0 0.0
  %97 = vmatpush1.msra.mxu0 0.0
  %98 = vmatprep.subr.mxu0 0.0
  %99 = vmatpush1.msra.mxu0 0.0
  %100 = vmatprep.subr.mxu0 0.0
  %101 = vmatpush1.msra.mxu0 0.0
  %102 = vmatprep.subr.mxu0 0.0
  %103 = vmatpush1.msra.mxu0 0.0
  %104 = vmatprep.subr.mxu0 0.0
  %105 = vmatpush1.msra.mxu0 0.0
  %106 = vmatprep.subr.mxu0 0.0
  %107 = vmatpush1.msra.mxu0 0.0
  %108 = vmatprep.subr.mxu0 0.0
  %109 = vmatpush1.msra.mxu0 0.0
  %110 = vmatprep.subr.mxu0 0.0
  %111 = vmatpush1.msra.mxu0 0.0
  %112 = vmatprep.subr.mxu0 0.0
  %113 = vmatpush1.msra.mxu0 0.0
  %114 = vmatprep.mubr.f32.mxu0 0.0
  %115 = vmatmul.mubr.f32.gmra.mrb[0].mxu0 %v45
  %v116 = vpop.f32.mrb[0].mxu0
  %v117 = vadd.f32 %v41, %v116
  %v118 = vpop.f32.mrb[0].mxu0
  %119 = vmatprep.mubr.f32.mxu0 0.0
  %120 = vmatmul.mubr.f32.gmra.mrb[0].mxu0 %v48
  %v121 = vpop.f32.mrb[0].mxu0
  %v122 = vadd.f32 %v41, %v121
  %v123 = vpop.f32.mrb[0].mxu0
  %124 = vdwg.mxu0
  %125 = vst [vmem:[#allocation2] sm:$0xff] %v117
  %126 = vst [vmem:[#allocation2 + $0x8] sm:$0xff] %v122
  %v127 = vld [vmem:[%s3] sm:$0xff]
  %v128 = vld [vmem:[%s3 + $0x8] sm:$0xff]
  %v129 = vld [vmem:[%s3 + $0x10] sm:$0xff]
  %v130 = vld [vmem:[%s3 + $0x18] sm:$0xff]
  %v131 = vld [vmem:[#allocation2] sm:$0x3]
  %vm132 = vcmask 261120
  %v134 = vsel %vm132, 0.0, 0
  %136 = vmatprep.subr.mxu0 0.0
  %137 = vmatpush1.msra.mxu0 %v127
  %138 = vmatprep.subr.mxu0 0.0
  %139 = vmatpush1.msra.mxu0 %v128
  %140 = vmatprep.subr.mxu0 0.0
  %141 = vmatpush1.msra.mxu0 %v129
  %142 = vmatprep.subr.mxu0 0.0
  %143 = vmatpush1.msra.mxu0 %v130
  %144 = vmatprep.subr.mxu0 0.0
  %145 = vmatpush1.msra.mxu0 0.0
  %146 = vmatprep.subr.mxu0 0.0
  %147 = vmatpush1.msra.mxu0 0.0
  %148 = vmatprep.subr.mxu0 0.0
  %149 = vmatpush1.msra.mxu0 0.0
  %150 = vmatprep.subr.mxu0 0.0
  %151 = vmatpush1.msra.mxu0 0.0
  %152 = vmatprep.subr.mxu0 0.0
  %153 = vmatpush1.msra.mxu0 0.0
  %154 = vmatprep.subr.mxu0 0.0
  %155 = vmatpush1.msra.mxu0 0.0
  %156 = vmatprep.subr.mxu0 0.0
  %157 = vmatpush1.msra.mxu0 0.0
  %158 = vmatprep.subr.mxu0 0.0
  %159 = vmatpush1.msra.mxu0 0.0
  %160 = vmatprep.subr.mxu0 0.0
  %161 = vmatpush1.msra.mxu0 0.0
  %162 = vmatprep.subr.mxu0 0.0
  %163 = vmatpush1.msra.mxu0 0.0
  %164 = vmatprep.subr.mxu0 0.0
  %165 = vmatpush1.msra.mxu0 0.0
  %166 = vmatprep.subr.mxu0 0.0
  %167 = vmatpush1.msra.mxu0 0.0
  %168 = vmatprep.subr.mxu0 0.0
  %169 = vmatpush1.msra.mxu0 0.0
  %170 = vmatprep.subr.mxu0 0.0
  %171 = vmatpush1.msra.mxu0 0.0
  %172 = vmatprep.subr.mxu0 0.0
  %173 = vmatpush1.msra.mxu0 0.0
  %174 = vmatprep.subr.mxu0 0.0
  %175 = vmatpush1.msra.mxu0 0.0
  %176 = vmatprep.subr.mxu0 0.0
  %177 = vmatpush1.msra.mxu0 0.0
  %178 = vmatprep.subr.mxu0 0.0
  %179 = vmatpush1.msra.mxu0 0.0
  %180 = vmatprep.subr.mxu0 0.0
  %181 = vmatpush1.msra.mxu0 0.0
  %182 = vmatprep.subr.mxu0 0.0
  %183 = vmatpush1.msra.mxu0 0.0
  %184 = vmatprep.subr.mxu0 0.0
  %185 = vmatpush1.msra.mxu0 0.0
  %186 = vmatprep.subr.mxu0 0.0
  %187 = vmatpush1.msra.mxu0 0.0
  %188 = vmatprep.subr.mxu0 0.0
  %189 = vmatpush1.msra.mxu0 0.0
  %190 = vmatprep.subr.mxu0 0.0
  %191 = vmatpush1.msra.mxu0 0.0
  %192 = vmatprep.subr.mxu0 0.0
  %193 = vmatpush1.msra.mxu0 0.0
  %194 = vmatprep.subr.mxu0 0.0
  %195 = vmatpush1.msra.mxu0 0.0
  %196 = vmatprep.subr.mxu0 0.0
  %197 = vmatpush1.msra.mxu0 0.0
  %198 = vmatprep.subr.mxu0 0.0
  %199 = vmatpush1.msra.mxu0 0.0
  %200 = vmatprep.mubr.f32.mxu0 0.0
  %201 = vmatmul.mubr.f32.gmra.mrb[0].mxu0 %v134
  %v202 = vpop.f32.mrb[0].mxu0
  %v203 = vadd.f32 0.0, %v202
  %v204 = vpop.f32.mrb[0].mxu0
  %205 = vdwg.mxu0
  %v206 = vadd.f32 %v131, %v203
  %v207 = vxor.u32 %v206, 2147483648
  %v208 = vmul.f32 %v207, 1.442695
  %v209 = vpow.pop %v208
  %v210 = vadd.f32 %v209, 1.0
  %v211 = vrcp.pop %v210
  %v212 = vmul.f32 1.0, %v211
  %v213 = vtanh.pop %v206
  %v214 = vmul.f32 %v212, 0.0
  %216 = vrot.lane.b32.xlu0 %v213, 64
  %v217 = vpop.permute.xlu0 %216
  %v219 = vmul.f32 %v212, %v217
  %221 = vrot.lane.b32.xlu0 %v219, 32
  %v222 = vpop.permute.xlu0 %221
  %v224 = vadd.f32 %v214, %v222
  %v225 = vtanh.pop %v224
  %227 = vrot.lane.b32.xlu0 %v225, 64
  %v228 = vpop.permute.xlu0 %227
  %v230 = vmul.f32 %v212, %v228
  %v231 = vld [vmem:[#allocation2 + $0x2] sm:$0x3]
  %233 = vrot.lane.b32.xlu0 %v230, 32
  %v234 = vpop.permute.xlu0 %233
  %v235 = vsel %vm132, %v234, 0
  %237 = vmatprep.subr.mxu0 0.0
  %238 = vmatpush1.msra.mxu0 %v127
  %239 = vmatprep.subr.mxu0 0.0
  %240 = vmatpush1.msra.mxu0 %v128
  %241 = vmatprep.subr.mxu0 0.0
  %242 = vmatpush1.msra.mxu0 %v129
  %243 = vmatprep.subr.mxu0 0.0
  %244 = vmatpush1.msra.mxu0 %v130
  %245 = vmatprep.subr.mxu0 0.0
  %246 = vmatpush1.msra.mxu0 0.0
  %247 = vmatprep.subr.mxu0 0.0
  %248 = vmatpush1.msra.mxu0 0.0
  %249 = vmatprep.subr.mxu0 0.0
  %250 = vmatpush1.msra.mxu0 0.0
  %251 = vmatprep.subr.mxu0 0.0
  %252 = vmatpush1.msra.mxu0 0.0
  %253 = vmatprep.subr.mxu0 0.0
  %254 = vmatpush1.msra.mxu0 0.0
  %255 = vmatprep.subr.mxu0 0.0
  %256 = vmatpush1.msra.mxu0 0.0
  %257 = vmatprep.subr.mxu0 0.0
  %258 = vmatpush1.msra.mxu0 0.0
  %259 = vmatprep.subr.mxu0 0.0
  %260 = vmatpush1.msra.mxu0 0.0
  %261 = vmatprep.subr.mxu0 0.0
  %262 = vmatpush1.msra.mxu0 0.0
  %263 = vmatprep.subr.mxu0 0.0
  %264 = vmatpush1.msra.mxu0 0.0
  %265 = vmatprep.subr.mxu0 0.0
  %266 = vmatpush1.msra.mxu0 0.0
  %267 = vmatprep.subr.mxu0 0.0
  %268 = vmatpush1.msra.mxu0 0.0
  %269 = vmatprep.subr.mxu0 0.0
  %270 = vmatpush1.msra.mxu0 0.0
  %271 = vmatprep.subr.mxu0 0.0
  %272 = vmatpush1.msra.mxu0 0.0
  %273 = vmatprep.subr.mxu0 0.0
  %274 = vmatpush1.msra.mxu0 0.0
  %275 = vmatprep.subr.mxu0 0.0
  %276 = vmatpush1.msra.mxu0 0.0
  %277 = vmatprep.subr.mxu0 0.0
  %278 = vmatpush1.msra.mxu0 0.0
  %279 = vmatprep.subr.mxu0 0.0
  %280 = vmatpush1.msra.mxu0 0.0
  %281 = vmatprep.subr.mxu0 0.0
  %282 = vmatpush1.msra.mxu0 0.0
  %283 = vmatprep.subr.mxu0 0.0
  %284 = vmatpush1.msra.mxu0 0.0
  %285 = vmatprep.subr.mxu0 0.0
  %286 = vmatpush1.msra.mxu0 0.0
  %287 = vmatprep.subr.mxu0 0.0
  %288 = vmatpush1.msra.mxu0 0.0
  %289 = vmatprep.subr.mxu0 0.0
  %290 = vmatpush1.msra.mxu0 0.0
  %291 = vmatprep.subr.mxu0 0.0
  %292 = vmatpush1.msra.mxu0 0.0
  %293 = vmatprep.subr.mxu0 0.0
  %294 = vmatpush1.msra.mxu0 0.0
  %295 = vmatprep.subr.mxu0 0.0
  %296 = vmatpush1.msra.mxu0 0.0
  %297 = vmatprep.subr.mxu0 0.0
  %298 = vmatpush1.msra.mxu0 0.0
  %299 = vmatprep.subr.mxu0 0.0
  %300 = vmatpush1.msra.mxu0 0.0
  %301 = vmatprep.mubr.f32.mxu0 0.0
  %302 = vmatmul.mubr.f32.gmra.mrb[0].mxu0 %v235
  %v303 = vpop.f32.mrb[0].mxu0
  %v304 = vadd.f32 0.0, %v303
  %v305 = vpop.f32.mrb[0].mxu0
  %306 = vdwg.mxu0
  %v307 = vadd.f32 %v231, %v304
  %v308 = vxor.u32 %v307, 2147483648
  %v309 = vmul.f32 %v308, 1.442695
  %v310 = vpow.pop %v309
  %v311 = vadd.f32 %v310, 1.0
  %v312 = vrcp.pop %v311
  %v313 = vmul.f32 1.0, %v312
  %v314 = vtanh.pop %v307
  %v315 = vmul.f32 %v313, %v224
  %317 = vrot.lane.b32.xlu0 %v314, 64
  %v318 = vpop.permute.xlu0 %317
  %v320 = vmul.f32 %v313, %v318
  %322 = vrot.lane.b32.xlu0 %v320, 32
  %v323 = vpop.permute.xlu0 %322
  %v325 = vadd.f32 %v315, %v323
  %v326 = vtanh.pop %v325
  %328 = vrot.lane.b32.xlu0 %v326, 64
  %v329 = vpop.permute.xlu0 %328
  %v331 = vmul.f32 %v313, %v329
  %v332 = vld [vmem:[#allocation2 + $0x4] sm:$0x3]
  %334 = vrot.lane.b32.xlu0 %v331, 32
  %v335 = vpop.permute.xlu0 %334
  %v336 = vsel %vm132, %v335, 0
  %338 = vmatprep.subr.mxu0 0.0
  %339 = vmatpush1.msra.mxu0 %v127
  %340 = vmatprep.subr.mxu0 0.0
  %341 = vmatpush1.msra.mxu0 %v128
  %342 = vmatprep.subr.mxu0 0.0
  %343 = vmatpush1.msra.mxu0 %v129
  %344 = vmatprep.subr.mxu0 0.0
  %345 = vmatpush1.msra.mxu0 %v130
  %346 = vmatprep.subr.mxu0 0.0
  %347 = vmatpush1.msra.mxu0 0.0
  %348 = vmatprep.subr.mxu0 0.0
  %349 = vmatpush1.msra.mxu0 0.0
  %350 = vmatprep.subr.mxu0 0.0
  %351 = vmatpush1.msra.mxu0 0.0
  %352 = vmatprep.subr.mxu0 0.0
  %353 = vmatpush1.msra.mxu0 0.0
  %354 = vmatprep.subr.mxu0 0.0
  %355 = vmatpush1.msra.mxu0 0.0
  %356 = vmatprep.subr.mxu0 0.0
  %357 = vmatpush1.msra.mxu0 0.0
  %358 = vmatprep.subr.mxu0 0.0
  %359 = vmatpush1.msra.mxu0 0.0
  %360 = vmatprep.subr.mxu0 0.0
  %361 = vmatpush1.msra.mxu0 0.0
  %362 = vmatprep.subr.mxu0 0.0
  %363 = vmatpush1.msra.mxu0 0.0
  %364 = vmatprep.subr.mxu0 0.0
  %365 = vmatpush1.msra.mxu0 0.0
  %366 = vmatprep.subr.mxu0 0.0
  %367 = vmatpush1.msra.mxu0 0.0
  %368 = vmatprep.subr.mxu0 0.0
  %369 = vmatpush1.msra.mxu0 0.0
  %370 = vmatprep.subr.mxu0 0.0
  %371 = vmatpush1.msra.mxu0 0.0
  %372 = vmatprep.subr.mxu0 0.0
  %373 = vmatpush1.msra.mxu0 0.0
  %374 = vmatprep.subr.mxu0 0.0
  %375 = vmatpush1.msra.mxu0 0.0
  %376 = vmatprep.subr.mxu0 0.0
  %377 = vmatpush1.msra.mxu0 0.0
  %378 = vmatprep.subr.mxu0 0.0
  %379 = vmatpush1.msra.mxu0 0.0
  %380 = vmatprep.subr.mxu0 0.0
  %381 = vmatpush1.msra.mxu0 0.0
  %382 = vmatprep.subr.mxu0 0.0
  %383 = vmatpush1.msra.mxu0 0.0
  %384 = vmatprep.subr.mxu0 0.0
  %385 = vmatpush1.msra.mxu0 0.0
  %386 = vmatprep.subr.mxu0 0.0
  %387 = vmatpush1.msra.mxu0 0.0
  %388 = vmatprep.subr.mxu0 0.0
  %389 = vmatpush1.msra.mxu0 0.0
  %390 = vmatprep.subr.mxu0 0.0
  %391 = vmatpush1.msra.mxu0 0.0
  %392 = vmatprep.subr.mxu0 0.0
  %393 = vmatpush1.msra.mxu0 0.0
  %394 = vmatprep.subr.mxu0 0.0
  %395 = vmatpush1.msra.mxu0 0.0
  %396 = vmatprep.subr.mxu0 0.0
  %397 = vmatpush1.msra.mxu0 0.0
  %398 = vmatprep.subr.mxu0 0.0
  %399 = vmatpush1.msra.mxu0 0.0
  %400 = vmatprep.subr.mxu0 0.0
  %401 = vmatpush1.msra.mxu0 0.0
  %402 = vmatprep.mubr.f32.mxu0 0.0
  %403 = vmatmul.mubr.f32.gmra.mrb[0].mxu0 %v336
  %v404 = vpop.f32.mrb[0].mxu0
  %v405 = vadd.f32 0.0, %v404
  %v406 = vpop.f32.mrb[0].mxu0
  %407 = vdwg.mxu0
  %v408 = vadd.f32 %v332, %v405
  %v409 = vxor.u32 %v408, 2147483648
  %v410 = vmul.f32 %v409, 1.442695
  %v411 = vpow.pop %v410
  %v412 = vadd.f32 %v411, 1.0
  %v413 = vrcp.pop %v412
  %v414 = vmul.f32 1.0, %v413
  %v415 = vtanh.pop %v408
  %v416 = vmul.f32 %v414, %v325
  %418 = vrot.lane.b32.xlu0 %v415, 64
  %v419 = vpop.permute.xlu0 %418
  %v421 = vmul.f32 %v414, %v419
  %423 = vrot.lane.b32.xlu0 %v421, 32
  %v424 = vpop.permute.xlu0 %423
  %v426 = vadd.f32 %v416, %v424
  %v427 = vtanh.pop %v426
  %429 = vrot.lane.b32.xlu0 %v427, 64
  %v430 = vpop.permute.xlu0 %429
  %v432 = vmul.f32 %v414, %v430
  %v433 = vld [vmem:[#allocation2 + $0x6] sm:$0x3]
  %435 = vrot.lane.b32.xlu0 %v432, 32
  %v436 = vpop.permute.xlu0 %435
  %v437 = vsel %vm132, %v436, 0
  %439 = vmatprep.subr.mxu0 0.0
  %440 = vmatpush1.msra.mxu0 %v127
  %441 = vmatprep.subr.mxu0 0.0
  %442 = vmatpush1.msra.mxu0 %v128
  %443 = vmatprep.subr.mxu0 0.0
  %444 = vmatpush1.msra.mxu0 %v129
  %445 = vmatprep.subr.mxu0 0.0
  %446 = vmatpush1.msra.mxu0 %v130
  %447 = vmatprep.subr.mxu0 0.0
  %448 = vmatpush1.msra.mxu0 0.0
  %449 = vmatprep.subr.mxu0 0.0
  %450 = vmatpush1.msra.mxu0 0.0
  %451 = vmatprep.subr.mxu0 0.0
  %452 = vmatpush1.msra.mxu0 0.0
  %453 = vmatprep.subr.mxu0 0.0
  %454 = vmatpush1.msra.mxu0 0.0
  %455 = vmatprep.subr.mxu0 0.0
  %456 = vmatpush1.msra.mxu0 0.0
  %457 = vmatprep.subr.mxu0 0.0
  %458 = vmatpush1.msra.mxu0 0.0
  %459 = vmatprep.subr.mxu0 0.0
  %460 = vmatpush1.msra.mxu0 0.0
  %461 = vmatprep.subr.mxu0 0.0
  %462 = vmatpush1.msra.mxu0 0.0
  %463 = vmatprep.subr.mxu0 0.0
  %464 = vmatpush1.msra.mxu0 0.0
  %465 = vmatprep.subr.mxu0 0.0
  %466 = vmatpush1.msra.mxu0 0.0
  %467 = vmatprep.subr.mxu0 0.0
  %468 = vmatpush1.msra.mxu0 0.0
  %469 = vmatprep.subr.mxu0 0.0
  %470 = vmatpush1.msra.mxu0 0.0
  %471 = vmatprep.subr.mxu0 0.0
  %472 = vmatpush1.msra.mxu0 0.0
  %473 = vmatprep.subr.mxu0 0.0
  %474 = vmatpush1.msra.mxu0 0.0
  %475 = vmatprep.subr.mxu0 0.0
  %476 = vmatpush1.msra.mxu0 0.0
  %477 = vmatprep.subr.mxu0 0.0
  %478 = vmatpush1.msra.mxu0 0.0
  %479 = vmatprep.subr.mxu0 0.0
  %480 = vmatpush1.msra.mxu0 0.0
  %481 = vmatprep.subr.mxu0 0.0
  %482 = vmatpush1.msra.mxu0 0.0
  %483 = vmatprep.subr.mxu0 0.0
  %484 = vmatpush1.msra.mxu0 0.0
  %485 = vmatprep.subr.mxu0 0.0
  %486 = vmatpush1.msra.mxu0 0.0
  %487 = vmatprep.subr.mxu0 0.0
  %488 = vmatpush1.msra.mxu0 0.0
  %489 = vmatprep.subr.mxu0 0.0
  %490 = vmatpush1.msra.mxu0 0.0
  %491 = vmatprep.subr.mxu0 0.0
  %492 = vmatpush1.msra.mxu0 0.0
  %493 = vmatprep.subr.mxu0 0.0
  %494 = vmatpush1.msra.mxu0 0.0
  %495 = vmatprep.subr.mxu0 0.0
  %496 = vmatpush1.msra.mxu0 0.0
  %497 = vmatprep.subr.mxu0 0.0
  %498 = vmatpush1.msra.mxu0 0.0
  %499 = vmatprep.subr.mxu0 0.0
  %500 = vmatpush1.msra.mxu0 0.0
  %501 = vmatprep.subr.mxu0 0.0
  %502 = vmatpush1.msra.mxu0 0.0
  %503 = vmatprep.mubr.f32.mxu0 0.0
  %504 = vmatmul.mubr.f32.gmra.mrb[0].mxu0 %v437
  %v505 = vpop.f32.mrb[0].mxu0
  %v506 = vadd.f32 0.0, %v505
  %v507 = vpop.f32.mrb[0].mxu0
  %508 = vdwg.mxu0
  %v509 = vadd.f32 %v433, %v506
  %v510 = vxor.u32 %v509, 2147483648
  %v511 = vmul.f32 %v510, 1.442695
  %v512 = vpow.pop %v511
  %v513 = vadd.f32 %v512, 1.0
  %v514 = vrcp.pop %v513
  %v515 = vmul.f32 1.0, %v514
  %v516 = vtanh.pop %v509
  %v517 = vmul.f32 %v515, %v426
  %519 = vrot.lane.b32.xlu0 %v516, 64
  %v520 = vpop.permute.xlu0 %519
  %v522 = vmul.f32 %v515, %v520
  %524 = vrot.lane.b32.xlu0 %v522, 32
  %v525 = vpop.permute.xlu0 %524
  %v527 = vadd.f32 %v517, %v525
  %v528 = vtanh.pop %v527
  %530 = vrot.lane.b32.xlu0 %v528, 64
  %v531 = vpop.permute.xlu0 %530
  %v533 = vmul.f32 %v515, %v531
  %v534 = vld [vmem:[#allocation2 + $0x8] sm:$0x3]
  %536 = vrot.lane.b32.xlu0 %v533, 32
  %v537 = vpop.permute.xlu0 %536
  %v538 = vsel %vm132, %v537, 0
  %540 = vmatprep.subr.mxu0 0.0
  %541 = vmatpush1.msra.mxu0 %v127
  %542 = vmatprep.subr.mxu0 0.0
  %543 = vmatpush1.msra.mxu0 %v128
  %544 = vmatprep.subr.mxu0 0.0
  %545 = vmatpush1.msra.mxu0 %v129
  %546 = vmatprep.subr.mxu0 0.0
  %547 = vmatpush1.msra.mxu0 %v130
  %548 = vmatprep.subr.mxu0 0.0
  %549 = vmatpush1.msra.mxu0 0.0
  %550 = vmatprep.subr.mxu0 0.0
  %551 = vmatpush1.msra.mxu0 0.0
  %552 = vmatprep.subr.mxu0 0.0
  %553 = vmatpush1.msra.mxu0 0.0
  %554 = vmatprep.subr.mxu0 0.0
  %555 = vmatpush1.msra.mxu0 0.0
  %556 = vmatprep.subr.mxu0 0.0
  %557 = vmatpush1.msra.mxu0 0.0
  %558 = vmatprep.subr.mxu0 0.0
  %559 = vmatpush1.msra.mxu0 0.0
  %560 = vmatprep.subr.mxu0 0.0
  %561 = vmatpush1.msra.mxu0 0.0
  %562 = vmatprep.subr.mxu0 0.0
  %563 = vmatpush1.msra.mxu0 0.0
  %564 = vmatprep.subr.mxu0 0.0
  %565 = vmatpush1.msra.mxu0 0.0
  %566 = vmatprep.subr.mxu0 0.0
  %567 = vmatpush1.msra.mxu0 0.0
  %568 = vmatprep.subr.mxu0 0.0
  %569 = vmatpush1.msra.mxu0 0.0
  %570 = vmatprep.subr.mxu0 0.0
  %571 = vmatpush1.msra.mxu0 0.0
  %572 = vmatprep.subr.mxu0 0.0
  %573 = vmatpush1.msra.mxu0 0.0
  %574 = vmatprep.subr.mxu0 0.0
  %575 = vmatpush1.msra.mxu0 0.0
  %576 = vmatprep.subr.mxu0 0.0
  %577 = vmatpush1.msra.mxu0 0.0
  %578 = vmatprep.subr.mxu0 0.0
  %579 = vmatpush1.msra.mxu0 0.0
  %580 = vmatprep.subr.mxu0 0.0
  %581 = vmatpush1.msra.mxu0 0.0
  %582 = vmatprep.subr.mxu0 0.0
  %583 = vmatpush1.msra.mxu0 0.0
  %584 = vmatprep.subr.mxu0 0.0
  %585 = vmatpush1.msra.mxu0 0.0
  %586 = vmatprep.subr.mxu0 0.0
  %587 = vmatpush1.msra.mxu0 0.0
  %588 = vmatprep.subr.mxu0 0.0
  %589 = vmatpush1.msra.mxu0 0.0
  %590 = vmatprep.subr.mxu0 0.0
  %591 = vmatpush1.msra.mxu0 0.0
  %592 = vmatprep.subr.mxu0 0.0
  %593 = vmatpush1.msra.mxu0 0.0
  %594 = vmatprep.subr.mxu0 0.0
  %595 = vmatpush1.msra.mxu0 0.0
  %596 = vmatprep.subr.mxu0 0.0
  %597 = vmatpush1.msra.mxu0 0.0
  %598 = vmatprep.subr.mxu0 0.0
  %599 = vmatpush1.msra.mxu0 0.0
  %600 = vmatprep.subr.mxu0 0.0
  %601 = vmatpush1.msra.mxu0 0.0
  %602 = vmatprep.subr.mxu0 0.0
  %603 = vmatpush1.msra.mxu0 0.0
  %604 = vmatprep.mubr.f32.mxu0 0.0
  %605 = vmatmul.mubr.f32.gmra.mrb[0].mxu0 %v538
  %v606 = vpop.f32.mrb[0].mxu0
  %v607 = vadd.f32 0.0, %v606
  %v608 = vpop.f32.mrb[0].mxu0
  %609 = vdwg.mxu0
  %v610 = vadd.f32 %v534, %v607
  %v611 = vxor.u32 %v610, 2147483648
  %v612 = vmul.f32 %v611, 1.442695
  %v613 = vpow.pop %v612
  %v614 = vadd.f32 %v613, 1.0
  %v615 = vrcp.pop %v614
  %v616 = vmul.f32 1.0, %v615
  %v617 = vtanh.pop %v610
  %v618 = vmul.f32 %v616, %v527
  %620 = vrot.lane.b32.xlu0 %v617, 64
  %v621 = vpop.permute.xlu0 %620
  %v623 = vmul.f32 %v616, %v621
  %625 = vrot.lane.b32.xlu0 %v623, 32
  %v626 = vpop.permute.xlu0 %625
  %v628 = vadd.f32 %v618, %v626
  %v629 = vtanh.pop %v628
  %631 = vrot.lane.b32.xlu0 %v629, 64
  %v632 = vpop.permute.xlu0 %631
  %v634 = vmul.f32 %v616, %v632
  %v635 = vld [vmem:[#allocation2 + $0xa] sm:$0x3]
  %637 = vrot.lane.b32.xlu0 %v634, 32
  %v638 = vpop.permute.xlu0 %637
  %v639 = vsel %vm132, %v638, 0
  %641 = vmatprep.subr.mxu0 0.0
  %642 = vmatpush1.msra.mxu0 %v127
  %643 = vmatprep.subr.mxu0 0.0
  %644 = vmatpush1.msra.mxu0 %v128
  %645 = vmatprep.subr.mxu0 0.0
  %646 = vmatpush1.msra.mxu0 %v129
  %647 = vmatprep.subr.mxu0 0.0
  %648 = vmatpush1.msra.mxu0 %v130
  %649 = vmatprep.subr.mxu0 0.0
  %650 = vmatpush1.msra.mxu0 0.0
  %651 = vmatprep.subr.mxu0 0.0
  %652 = vmatpush1.msra.mxu0 0.0
  %653 = vmatprep.subr.mxu0 0.0
  %654 = vmatpush1.msra.mxu0 0.0
  %655 = vmatprep.subr.mxu0 0.0
  %656 = vmatpush1.msra.mxu0 0.0
  %657 = vmatprep.subr.mxu0 0.0
  %658 = vmatpush1.msra.mxu0 0.0
  %659 = vmatprep.subr.mxu0 0.0
  %660 = vmatpush1.msra.mxu0 0.0
  %661 = vmatprep.subr.mxu0 0.0
  %662 = vmatpush1.msra.mxu0 0.0
  %663 = vmatprep.subr.mxu0 0.0
  %664 = vmatpush1.msra.mxu0 0.0
  %665 = vmatprep.subr.mxu0 0.0
  %666 = vmatpush1.msra.mxu0 0.0
  %667 = vmatprep.subr.mxu0 0.0
  %668 = vmatpush1.msra.mxu0 0.0
  %669 = vmatprep.subr.mxu0 0.0
  %670 = vmatpush1.msra.mxu0 0.0
  %671 = vmatprep.subr.mxu0 0.0
  %672 = vmatpush1.msra.mxu0 0.0
  %673 = vmatprep.subr.mxu0 0.0
  %674 = vmatpush1.msra.mxu0 0.0
  %675 = vmatprep.subr.mxu0 0.0
  %676 = vmatpush1.msra.mxu0 0.0
  %677 = vmatprep.subr.mxu0 0.0
  %678 = vmatpush1.msra.mxu0 0.0
  %679 = vmatprep.subr.mxu0 0.0
  %680 = vmatpush1.msra.mxu0 0.0
  %681 = vmatprep.subr.mxu0 0.0
  %682 = vmatpush1.msra.mxu0 0.0
  %683 = vmatprep.subr.mxu0 0.0
  %684 = vmatpush1.msra.mxu0 0.0
  %685 = vmatprep.subr.mxu0 0.0
  %686 = vmatpush1.msra.mxu0 0.0
  %687 = vmatprep.subr.mxu0 0.0
  %688 = vmatpush1.msra.mxu0 0.0
  %689 = vmatprep.subr.mxu0 0.0
  %690 = vmatpush1.msra.mxu0 0.0
  %691 = vmatprep.subr.mxu0 0.0
  %692 = vmatpush1.msra.mxu0 0.0
  %693 = vmatprep.subr.mxu0 0.0
  %694 = vmatpush1.msra.mxu0 0.0
  %695 = vmatprep.subr.mxu0 0.0
  %696 = vmatpush1.msra.mxu0 0.0
  %697 = vmatprep.subr.mxu0 0.0
  %698 = vmatpush1.msra.mxu0 0.0
  %699 = vmatprep.subr.mxu0 0.0
  %700 = vmatpush1.msra.mxu0 0.0
  %701 = vmatprep.subr.mxu0 0.0
  %702 = vmatpush1.msra.mxu0 0.0
  %703 = vmatprep.subr.mxu0 0.0
  %704 = vmatpush1.msra.mxu0 0.0
  %705 = vmatprep.mubr.f32.mxu0 0.0
  %706 = vmatmul.mubr.f32.gmra.mrb[0].mxu0 %v639
  %v707 = vpop.f32.mrb[0].mxu0
  %v708 = vadd.f32 0.0, %v707
  %v709 = vpop.f32.mrb[0].mxu0
  %710 = vdwg.mxu0
  %v711 = vadd.f32 %v635, %v708
  %v712 = vxor.u32 %v711, 2147483648
  %v713 = vmul.f32 %v712, 1.442695
  %v714 = vpow.pop %v713
  %v715 = vadd.f32 %v714, 1.0
  %v716 = vrcp.pop %v715
  %v717 = vmul.f32 1.0, %v716
  %v718 = vtanh.pop %v711
  %v719 = vmul.f32 %v717, %v628
  %721 = vrot.lane.b32.xlu0 %v718, 64
  %v722 = vpop.permute.xlu0 %721
  %v724 = vmul.f32 %v717, %v722
  %726 = vrot.lane.b32.xlu0 %v724, 32
  %v727 = vpop.permute.xlu0 %726
  %v729 = vadd.f32 %v719, %v727
  %v730 = vtanh.pop %v729
  %732 = vrot.lane.b32.xlu0 %v730, 64
  %v733 = vpop.permute.xlu0 %732
  %v735 = vmul.f32 %v717, %v733
  %v736 = vld [vmem:[#allocation2 + $0xc] sm:$0x3]
  %738 = vrot.lane.b32.xlu0 %v735, 32
  %v739 = vpop.permute.xlu0 %738
  %v740 = vsel %vm132, %v739, 0
  %742 = vmatprep.subr.mxu0 0.0
  %743 = vmatpush1.msra.mxu0 %v127
  %744 = vmatprep.subr.mxu0 0.0
  %745 = vmatpush1.msra.mxu0 %v128
  %746 = vmatprep.subr.mxu0 0.0
  %747 = vmatpush1.msra.mxu0 %v129
  %748 = vmatprep.subr.mxu0 0.0
  %749 = vmatpush1.msra.mxu0 %v130
  %750 = vmatprep.subr.mxu0 0.0
  %751 = vmatpush1.msra.mxu0 0.0
  %752 = vmatprep.subr.mxu0 0.0
  %753 = vmatpush1.msra.mxu0 0.0
  %754 = vmatprep.subr.mxu0 0.0
  %755 = vmatpush1.msra.mxu0 0.0
  %756 = vmatprep.subr.mxu0 0.0
  %757 = vmatpush1.msra.mxu0 0.0
  %758 = vmatprep.subr.mxu0 0.0
  %759 = vmatpush1.msra.mxu0 0.0
  %760 = vmatprep.subr.mxu0 0.0
  %761 = vmatpush1.msra.mxu0 0.0
  %762 = vmatprep.subr.mxu0 0.0
  %763 = vmatpush1.msra.mxu0 0.0
  %764 = vmatprep.subr.mxu0 0.0
  %765 = vmatpush1.msra.mxu0 0.0
  %766 = vmatprep.subr.mxu0 0.0
  %767 = vmatpush1.msra.mxu0 0.0
  %768 = vmatprep.subr.mxu0 0.0
  %769 = vmatpush1.msra.mxu0 0.0
  %770 = vmatprep.subr.mxu0 0.0
  %771 = vmatpush1.msra.mxu0 0.0
  %772 = vmatprep.subr.mxu0 0.0
  %773 = vmatpush1.msra.mxu0 0.0
  %774 = vmatprep.subr.mxu0 0.0
  %775 = vmatpush1.msra.mxu0 0.0
  %776 = vmatprep.subr.mxu0 0.0
  %777 = vmatpush1.msra.mxu0 0.0
  %778 = vmatprep.subr.mxu0 0.0
  %779 = vmatpush1.msra.mxu0 0.0
  %780 = vmatprep.subr.mxu0 0.0
  %781 = vmatpush1.msra.mxu0 0.0
  %782 = vmatprep.subr.mxu0 0.0
  %783 = vmatpush1.msra.mxu0 0.0
  %784 = vmatprep.subr.mxu0 0.0
  %785 = vmatpush1.msra.mxu0 0.0
  %786 = vmatprep.subr.mxu0 0.0
  %787 = vmatpush1.msra.mxu0 0.0
  %788 = vmatprep.subr.mxu0 0.0
  %789 = vmatpush1.msra.mxu0 0.0
  %790 = vmatprep.subr.mxu0 0.0
  %791 = vmatpush1.msra.mxu0 0.0
  %792 = vmatprep.subr.mxu0 0.0
  %793 = vmatpush1.msra.mxu0 0.0
  %794 = vmatprep.subr.mxu0 0.0
  %795 = vmatpush1.msra.mxu0 0.0
  %796 = vmatprep.subr.mxu0 0.0
  %797 = vmatpush1.msra.mxu0 0.0
  %798 = vmatprep.subr.mxu0 0.0
  %799 = vmatpush1.msra.mxu0 0.0
  %800 = vmatprep.subr.mxu0 0.0
  %801 = vmatpush1.msra.mxu0 0.0
  %802 = vmatprep.subr.mxu0 0.0
  %803 = vmatpush1.msra.mxu0 0.0
  %804 = vmatprep.subr.mxu0 0.0
  %805 = vmatpush1.msra.mxu0 0.0
  %806 = vmatprep.mubr.f32.mxu0 0.0
  %807 = vmatmul.mubr.f32.gmra.mrb[0].mxu0 %v740
  %v808 = vpop.f32.mrb[0].mxu0
  %v809 = vadd.f32 0.0, %v808
  %v810 = vpop.f32.mrb[0].mxu0
  %811 = vdwg.mxu0
  %v812 = vadd.f32 %v736, %v809
  %v813 = vxor.u32 %v812, 2147483648
  %v814 = vmul.f32 %v813, 1.442695
  %v815 = vpow.pop %v814
  %v816 = vadd.f32 %v815, 1.0
  %v817 = vrcp.pop %v816
  %v818 = vmul.f32 1.0, %v817
  %v819 = vtanh.pop %v812
  %v820 = vmul.f32 %v818, %v729
  %822 = vrot.lane.b32.xlu0 %v819, 64
  %v823 = vpop.permute.xlu0 %822
  %v825 = vmul.f32 %v818, %v823
  %827 = vrot.lane.b32.xlu0 %v825, 32
  %v828 = vpop.permute.xlu0 %827
  %v830 = vadd.f32 %v820, %v828
  %v831 = vtanh.pop %v830
  %833 = vrot.lane.b32.xlu0 %v831, 64
  %v834 = vpop.permute.xlu0 %833
  %v836 = vmul.f32 %v818, %v834
  %v837 = vld [vmem:[#allocation2 + $0xe] sm:$0x3]
  %839 = vrot.lane.b32.xlu0 %v836, 32
  %v840 = vpop.permute.xlu0 %839
  %v841 = vsel %vm132, %v840, 0
  %843 = vmatprep.subr.mxu0 0.0
  %844 = vmatpush1.msra.mxu0 %v127
  %845 = vmatprep.subr.mxu0 0.0
  %846 = vmatpush1.msra.mxu0 %v128
  %847 = vmatprep.subr.mxu0 0.0
  %848 = vmatpush1.msra.mxu0 %v129
  %849 = vmatprep.subr.mxu0 0.0
  %850 = vmatpush1.msra.mxu0 %v130
  %851 = vmatprep.subr.mxu0 0.0
  %852 = vmatpush1.msra.mxu0 0.0
  %853 = vmatprep.subr.mxu0 0.0
  %854 = vmatpush1.msra.mxu0 0.0
  %855 = vmatprep.subr.mxu0 0.0
  %856 = vmatpush1.msra.mxu0 0.0
  %857 = vmatprep.subr.mxu0 0.0
  %858 = vmatpush1.msra.mxu0 0.0
  %859 = vmatprep.subr.mxu0 0.0
  %860 = vmatpush1.msra.mxu0 0.0
  %861 = vmatprep.subr.mxu0 0.0
  %862 = vmatpush1.msra.mxu0 0.0
  %863 = vmatprep.subr.mxu0 0.0
  %864 = vmatpush1.msra.mxu0 0.0
  %865 = vmatprep.subr.mxu0 0.0
  %866 = vmatpush1.msra.mxu0 0.0
  %867 = vmatprep.subr.mxu0 0.0
  %868 = vmatpush1.msra.mxu0 0.0
  %869 = vmatprep.subr.mxu0 0.0
  %870 = vmatpush1.msra.mxu0 0.0
  %871 = vmatprep.subr.mxu0 0.0
  %872 = vmatpush1.msra.mxu0 0.0
  %873 = vmatprep.subr.mxu0 0.0
  %874 = vmatpush1.msra.mxu0 0.0
  %875 = vmatprep.subr.mxu0 0.0
  %876 = vmatpush1.msra.mxu0 0.0
  %877 = vmatprep.subr.mxu0 0.0
  %878 = vmatpush1.msra.mxu0 0.0
  %879 = vmatprep.subr.mxu0 0.0
  %880 = vmatpush1.msra.mxu0 0.0
  %881 = vmatprep.subr.mxu0 0.0
  %882 = vmatpush1.msra.mxu0 0.0
  %883 = vmatprep.subr.mxu0 0.0
  %884 = vmatpush1.msra.mxu0 0.0
  %885 = vmatprep.subr.mxu0 0.0
  %886 = vmatpush1.msra.mxu0 0.0
  %887 = vmatprep.subr.mxu0 0.0
  %888 = vmatpush1.msra.mxu0 0.0
  %889 = vmatprep.subr.mxu0 0.0
  %890 = vmatpush1.msra.mxu0 0.0
  %891 = vmatprep.subr.mxu0 0.0
  %892 = vmatpush1.msra.mxu0 0.0
  %893 = vmatprep.subr.mxu0 0.0
  %894 = vmatpush1.msra.mxu0 0.0
  %895 = vmatprep.subr.mxu0 0.0
  %896 = vmatpush1.msra.mxu0 0.0
  %897 = vmatprep.subr.mxu0 0.0
  %898 = vmatpush1.msra.mxu0 0.0
  %899 = vmatprep.subr.mxu0 0.0
  %900 = vmatpush1.msra.mxu0 0.0
  %901 = vmatprep.subr.mxu0 0.0
  %902 = vmatpush1.msra.mxu0 0.0
  %903 = vmatprep.subr.mxu0 0.0
  %904 = vmatpush1.msra.mxu0 0.0
  %905 = vmatprep.subr.mxu0 0.0
  %906 = vmatpush1.msra.mxu0 0.0
  %907 = vmatprep.mubr.f32.mxu0 0.0
  %908 = vmatmul.mubr.f32.gmra.mrb[0].mxu0 %v841
  %v909 = vpop.f32.mrb[0].mxu0
  %v910 = vadd.f32 0.0, %v909
  %v911 = vpop.f32.mrb[0].mxu0
  %912 = vdwg.mxu0
  %v913 = vadd.f32 %v837, %v910
  %v914 = vxor.u32 %v913, 2147483648
  %v915 = vmul.f32 %v914, 1.442695
  %v916 = vpow.pop %v915
  %v917 = vadd.f32 %v916, 1.0
  %v918 = vrcp.pop %v917
  %v919 = vmul.f32 1.0, %v918
  %v920 = vtanh.pop %v913
  %v921 = vmul.f32 %v919, %v830
  %923 = vrot.lane.b32.xlu0 %v920, 64
  %v924 = vpop.permute.xlu0 %923
  %v926 = vmul.f32 %v919, %v924
  %928 = vrot.lane.b32.xlu0 %v926, 32
  %v929 = vpop.permute.xlu0 %928
  %v931 = vadd.f32 %v921, %v929
  %v932 = vtanh.pop %v931
  %934 = vrot.lane.b32.xlu0 %v932, 64
  %v935 = vpop.permute.xlu0 %934
  %v937 = vmul.f32 %v919, %v935
  %v938 = vld [vmem:[%s5] sm:$0xff]
  %v939 = vld [vmem:[%s5 + $0x8] sm:$0xff]
  %v940 = vld [vmem:[%s5 + $0x10] sm:$0xff]
  %v941 = vld [vmem:[%s5 + $0x18] sm:$0xff]
  %v942 = vld [vmem:[%s5 + $0x20] sm:$0xff]
  %v943 = vld [vmem:[%s5 + $0x28] sm:$0xff]
  %v944 = vld [vmem:[%s6] sm:$0x1]
  %v945 = vld [vmem:[%s7] sm:$0xff]
  %v946 = vld [vmem:[%s7 + $0x8] sm:$0xff]
  %v947 = vld [vmem:[%s7 + $0x10] sm:$0xff]
  %v948 = vld [vmem:[%s7 + $0x18] sm:$0xff]
  %v949 = vld [vmem:[%s8] sm:$0x1]
  %v950 = vld [vmem:[%s1] sm:$0x3]
  %vm951 = vcmask 123904
  %952 = vst.msk [vmem:[#allocation3] sm:$0x3] %vm951, %v950
  %954 = vrot.lane.b32.xlu0 %v937, 48
  %v955 = vpop.permute.xlu0 %954
  %vm957 = vcmask 386176
  %958 = vst.msk [vmem:[#allocation3] sm:$0x3] %vm957, %v955
  %v959 = vld [vmem:[#allocation3] sm:$0x3]
  %v961 = vlaneseq
  %v962 = vshrl.u32 %v961, 7
  %v963 = vsub.s32 0, %v962
  %v964 = vrot.slane %v944, %v963
  %vm966 = vcmask 392192
  %v968 = vsel %vm966, %v959, 0
  %970 = vmatprep.subr.mxu0 0.0
  %971 = vmatpush1.msra.mxu0 %v938
  %972 = vmatprep.subr.mxu0 0.0
  %973 = vmatpush1.msra.mxu0 %v939
  %974 = vmatprep.subr.mxu0 0.0
  %975 = vmatpush1.msra.mxu0 %v940
  %976 = vmatprep.subr.mxu0 0.0
  %977 = vmatpush1.msra.mxu0 %v941
  %978 = vmatprep.subr.mxu0 0.0
  %979 = vmatpush1.msra.mxu0 %v942
  %980 = vmatprep.subr.mxu0 0.0
  %981 = vmatpush1.msra.mxu0 %v943
  %982 = vmatprep.subr.mxu0 0.0
  %983 = vmatpush1.msra.mxu0 0.0
  %984 = vmatprep.subr.mxu0 0.0
  %985 = vmatpush1.msra.mxu0 0.0
  %986 = vmatprep.subr.mxu0 0.0
  %987 = vmatpush1.msra.mxu0 0.0
  %988 = vmatprep.subr.mxu0 0.0
  %989 = vmatpush1.msra.mxu0 0.0
  %990 = vmatprep.subr.mxu0 0.0
  %991 = vmatpush1.msra.mxu0 0.0
  %992 = vmatprep.subr.mxu0 0.0
  %993 = vmatpush1.msra.mxu0 0.0
  %994 = vmatprep.subr.mxu0 0.0
  %995 = vmatpush1.msra.mxu0 0.0
  %996 = vmatprep.subr.mxu0 0.0
  %997 = vmatpush1.msra.mxu0 0.0
  %998 = vmatprep.subr.mxu0 0.0
  %999 = vmatpush1.msra.mxu0 0.0
  %1000 = vmatprep.subr.mxu0 0.0
  %1001 = vmatpush1.msra.mxu0 0.0
  %1002 = vmatprep.subr.mxu0 0.0
  %1003 = vmatpush1.msra.mxu0 0.0
  %1004 = vmatprep.subr.mxu0 0.0
  %1005 = vmatpush1.msra.mxu0 0.0
  %1006 = vmatprep.subr.mxu0 0.0
  %1007 = vmatpush1.msra.mxu0 0.0
  %1008 = vmatprep.subr.mxu0 0.0
  %1009 = vmatpush1.msra.mxu0 0.0
  %1010 = vmatprep.subr.mxu0 0.0
  %1011 = vmatpush1.msra.mxu0 0.0
  %1012 = vmatprep.subr.mxu0 0.0
  %1013 = vmatpush1.msra.mxu0 0.0
  %1014 = vmatprep.subr.mxu0 0.0
  %1015 = vmatpush1.msra.mxu0 0.0
  %1016 = vmatprep.subr.mxu0 0.0
  %1017 = vmatpush1.msra.mxu0 0.0
  %1018 = vmatprep.subr.mxu0 0.0
  %1019 = vmatpush1.msra.mxu0 0.0
  %1020 = vmatprep.subr.mxu0 0.0
  %1021 = vmatpush1.msra.mxu0 0.0
  %1022 = vmatprep.subr.mxu0 0.0
  %1023 = vmatpush1.msra.mxu0 0.0
  %1024 = vmatprep.subr.mxu0 0.0
  %1025 = vmatpush1.msra.mxu0 0.0
  %1026 = vmatprep.subr.mxu0 0.0
  %1027 = vmatpush1.msra.mxu0 0.0
  %1028 = vmatprep.subr.mxu0 0.0
  %1029 = vmatpush1.msra.mxu0 0.0
  %1030 = vmatprep.subr.mxu0 0.0
  %1031 = vmatpush1.msra.mxu0 0.0
  %1032 = vmatprep.subr.mxu0 0.0
  %1033 = vmatpush1.msra.mxu0 0.0
  %1034 = vmatprep.mubr.f32.mxu0 0.0
  %1035 = vmatmul.mubr.f32.gmra.mrb[0].mxu0 %v968
  %v1036 = vpop.f32.mrb[0].mxu0
  %v1037 = vadd.f32 %v964, %v1036
  %v1038 = vpop.f32.mrb[0].mxu0
  %1039 = vdwg.mxu0
  %v1040 = vxor.u32 %v1037, 2147483648
  %v1041 = vmul.f32 %v1040, 1.442695
  %v1042 = vpow.pop %v1041
  %v1043 = vadd.f32 %v1042, 1.0
  %v1044 = vrcp.pop %v1043
  %v1045 = vmul.f32 1.0, %v1044
  %v1046 = vtanh.pop %v1037
  %v1047 = vmul.f32 %v1045, %v931
  %1049 = vrot.lane.b32.xlu0 %v1046, 64
  %v1050 = vpop.permute.xlu0 %1049
  %v1052 = vmul.f32 %v1045, %v1050
  %1054 = vrot.lane.b32.xlu0 %v1052, 32
  %v1055 = vpop.permute.xlu0 %1054
  %v1057 = vadd.f32 %v1047, %v1055
  %v1058 = vtanh.pop %v1057
  %1060 = vrot.lane.b32.xlu0 %v1058, 64
  %v1061 = vpop.permute.xlu0 %1060
  %v1063 = vmul.f32 %v1045, %v1061
  %v1065 = vlaneseq
  %v1066 = vshrl.u32 %v1065, 7
  %v1067 = vsub.s32 0, %v1066
  %v1068 = vrot.slane %v949, %v1067
  %1071 = vrot.lane.b32.xlu0 %v1063, 32
  %v1072 = vpop.permute.xlu0 %1071
  %v1073 = vsel %vm132, %v1072, 0
  %1075 = vmatprep.subr.mxu0 0.0
  %1076 = vmatpush1.msra.mxu0 %v945
  %1077 = vmatprep.subr.mxu0 0.0
  %1078 = vmatpush1.msra.mxu0 %v946
  %1079 = vmatprep.subr.mxu0 0.0
  %1080 = vmatpush1.msra.mxu0 %v947
  %1081 = vmatprep.subr.mxu0 0.0
  %1082 = vmatpush1.msra.mxu0 %v948
  %1083 = vmatprep.subr.mxu0 0.0
  %1084 = vmatpush1.msra.mxu0 0.0
  %1085 = vmatprep.subr.mxu0 0.0
  %1086 = vmatpush1.msra.mxu0 0.0
  %1087 = vmatprep.subr.mxu0 0.0
  %1088 = vmatpush1.msra.mxu0 0.0
  %1089 = vmatprep.subr.mxu0 0.0
  %1090 = vmatpush1.msra.mxu0 0.0
  %1091 = vmatprep.subr.mxu0 0.0
  %1092 = vmatpush1.msra.mxu0 0.0
  %1093 = vmatprep.subr.mxu0 0.0
  %1094 = vmatpush1.msra.mxu0 0.0
  %1095 = vmatprep.subr.mxu0 0.0
  %1096 = vmatpush1.msra.mxu0 0.0
  %1097 = vmatprep.subr.mxu0 0.0
  %1098 = vmatpush1.msra.mxu0 0.0
  %1099 = vmatprep.subr.mxu0 0.0
  %1100 = vmatpush1.msra.mxu0 0.0
  %1101 = vmatprep.subr.mxu0 0.0
  %1102 = vmatpush1.msra.mxu0 0.0
  %1103 = vmatprep.subr.mxu0 0.0
  %1104 = vmatpush1.msra.mxu0 0.0
  %1105 = vmatprep.subr.mxu0 0.0
  %1106 = vmatpush1.msra.mxu0 0.0
  %1107 = vmatprep.subr.mxu0 0.0
  %1108 = vmatpush1.msra.mxu0 0.0
  %1109 = vmatprep.subr.mxu0 0.0
  %1110 = vmatpush1.msra.mxu0 0.0
  %1111 = vmatprep.subr.mxu0 0.0
  %1112 = vmatpush1.msra.mxu0 0.0
  %1113 = vmatprep.subr.mxu0 0.0
  %1114 = vmatpush1.msra.mxu0 0.0
  %1115 = vmatprep.subr.mxu0 0.0
  %1116 = vmatpush1.msra.mxu0 0.0
  %1117 = vmatprep.subr.mxu0 0.0
  %1118 = vmatpush1.msra.mxu0 0.0
  %1119 = vmatprep.subr.mxu0 0.0
  %1120 = vmatpush1.msra.mxu0 0.0
  %1121 = vmatprep.subr.mxu0 0.0
  %1122 = vmatpush1.msra.mxu0 0.0
  %1123 = vmatprep.subr.mxu0 0.0
  %1124 = vmatpush1.msra.mxu0 0.0
  %1125 = vmatprep.subr.mxu0 0.0
  %1126 = vmatpush1.msra.mxu0 0.0
  %1127 = vmatprep.subr.mxu0 0.0
  %1128 = vmatpush1.msra.mxu0 0.0
  %1129 = vmatprep.subr.mxu0 0.0
  %1130 = vmatpush1.msra.mxu0 0.0
  %1131 = vmatprep.subr.mxu0 0.0
  %1132 = vmatpush1.msra.mxu0 0.0
  %1133 = vmatprep.subr.mxu0 0.0
  %1134 = vmatpush1.msra.mxu0 0.0
  %1135 = vmatprep.subr.mxu0 0.0
  %1136 = vmatpush1.msra.mxu0 0.0
  %1137 = vmatprep.subr.mxu0 0.0
  %1138 = vmatpush1.msra.mxu0 0.0
  %1139 = vmatprep.mubr.f32.mxu0 0.0
  %1140 = vmatmul.mubr.f32.gmra.mrb[0].mxu0 %v1073
  %v1141 = vpop.f32.mrb[0].mxu0
  %v1142 = vadd.f32 %v1068, %v1141
  %v1143 = vpop.f32.mrb[0].mxu0
  %1144 = vdwg.mxu0
  %1145 = vst.msk [vmem:[%s9] sm:$0x3] %vm951, %v1142
  %1146 = vst.msk [vmem:[#allocation3] sm:$0x3] %vm951, %v1142
  %1147 = vrot.lane.b32.xlu0 %v1063, 48
  %v1148 = vpop.permute.xlu0 %1147
  %1150 = vst.msk [vmem:[#allocation3] sm:$0x3] %vm957, %v1148
  %v1151 = vld [vmem:[#allocation3] sm:$0x3]
  %v1153 = vsel %vm966, %v1151, 0
  %1155 = vmatprep.subr.mxu0 0.0
  %1156 = vmatpush1.msra.mxu0 %v938
  %1157 = vmatprep.subr.mxu0 0.0
  %1158 = vmatpush1.msra.mxu0 %v939
  %1159 = vmatprep.subr.mxu0 0.0
  %1160 = vmatpush1.msra.mxu0 %v940
  %1161 = vmatprep.subr.mxu0 0.0
  %1162 = vmatpush1.msra.mxu0 %v941
  %1163 = vmatprep.subr.mxu0 0.0
  %1164 = vmatpush1.msra.mxu0 %v942
  %1165 = vmatprep.subr.mxu0 0.0
  %1166 = vmatpush1.msra.mxu0 %v943
  %1167 = vmatprep.subr.mxu0 0.0
  %1168 = vmatpush1.msra.mxu0 0.0
  %1169 = vmatprep.subr.mxu0 0.0
  %1170 = vmatpush1.msra.mxu0 0.0
  %1171 = vmatprep.subr.mxu0 0.0
  %1172 = vmatpush1.msra.mxu0 0.0
  %1173 = vmatprep.subr.mxu0 0.0
  %1174 = vmatpush1.msra.mxu0 0.0
  %1175 = vmatprep.subr.mxu0 0.0
  %1176 = vmatpush1.msra.mxu0 0.0
  %1177 = vmatprep.subr.mxu0 0.0
  %1178 = vmatpush1.msra.mxu0 0.0
  %1179 = vmatprep.subr.mxu0 0.0
  %1180 = vmatpush1.msra.mxu0 0.0
  %1181 = vmatprep.subr.mxu0 0.0
  %1182 = vmatpush1.msra.mxu0 0.0
  %1183 = vmatprep.subr.mxu0 0.0
  %1184 = vmatpush1.msra.mxu0 0.0
  %1185 = vmatprep.subr.mxu0 0.0
  %1186 = vmatpush1.msra.mxu0 0.0
  %1187 = vmatprep.subr.mxu0 0.0
  %1188 = vmatpush1.msra.mxu0 0.0
  %1189 = vmatprep.subr.mxu0 0.0
  %1190 = vmatpush1.msra.mxu0 0.0
  %1191 = vmatprep.subr.mxu0 0.0
  %1192 = vmatpush1.msra.mxu0 0.0
  %1193 = vmatprep.subr.mxu0 0.0
  %1194 = vmatpush1.msra.mxu0 0.0
  %1195 = vmatprep.subr.mxu0 0.0
  %1196 = vmatpush1.msra.mxu0 0.0
  %1197 = vmatprep.subr.mxu0 0.0
  %1198 = vmatpush1.msra.mxu0 0.0
  %1199 = vmatprep.subr.mxu0 0.0
  %1200 = vmatpush1.msra.mxu0 0.0
  %1201 = vmatprep.subr.mxu0 0.0
  %1202 = vmatpush1.msra.mxu0 0.0
  %1203 = vmatprep.subr.mxu0 0.0
  %1204 = vmatpush1.msra.mxu0 0.0
  %1205 = vmatprep.subr.mxu0 0.0
  %1206 = vmatpush1.msra.mxu0 0.0
  %1207 = vmatprep.subr.mxu0 0.0
  %1208 = vmatpush1.msra.mxu0 0.0
  %1209 = vmatprep.subr.mxu0 0.0
  %1210 = vmatpush1.msra.mxu0 0.0
  %1211 = vmatprep.subr.mxu0 0.0
  %1212 = vmatpush1.msra.mxu0 0.0
  %1213 = vmatprep.subr.mxu0 0.0
  %1214 = vmatpush1.msra.mxu0 0.0
  %1215 = vmatprep.subr.mxu0 0.0
  %1216 = vmatpush1.msra.mxu0 0.0
  %1217 = vmatprep.subr.mxu0 0.0
  %1218 = vmatpush1.msra.mxu0 0.0
  %1219 = vmatprep.mubr.f32.mxu0 0.0
  %1220 = vmatmul.mubr.f32.gmra.mrb[0].mxu0 %v1153
  %v1221 = vpop.f32.mrb[0].mxu0
  %v1222 = vadd.f32 %v964, %v1221
  %v1223 = vpop.f32.mrb[0].mxu0
  %1224 = vdwg.mxu0
  %v1225 = vxor.u32 %v1222, 2147483648
  %v1226 = vmul.f32 %v1225, 1.442695
  %v1227 = vpow.pop %v1226
  %v1228 = vadd.f32 %v1227, 1.0
  %v1229 = vrcp.pop %v1228
  %v1230 = vmul.f32 1.0, %v1229
  %v1231 = vtanh.pop %v1222
  %v1232 = vmul.f32 %v1230, %v1057
  %1234 = vrot.lane.b32.xlu0 %v1231, 64
  %v1235 = vpop.permute.xlu0 %1234
  %v1237 = vmul.f32 %v1230, %v1235
  %1239 = vrot.lane.b32.xlu0 %v1237, 32
  %v1240 = vpop.permute.xlu0 %1239
  %v1242 = vadd.f32 %v1232, %v1240
  %v1243 = vtanh.pop %v1242
  %1245 = vrot.lane.b32.xlu0 %v1243, 64
  %v1246 = vpop.permute.xlu0 %1245
  %v1248 = vmul.f32 %v1230, %v1246
  %1250 = vrot.lane.b32.xlu0 %v1248, 32
  %v1251 = vpop.permute.xlu0 %1250
  %v1252 = vsel %vm132, %v1251, 0
  %1254 = vmatprep.subr.mxu0 0.0
  %1255 = vmatpush1.msra.mxu0 %v945
  %1256 = vmatprep.subr.mxu0 0.0
  %1257 = vmatpush1.msra.mxu0 %v946
  %1258 = vmatprep.subr.mxu0 0.0
  %1259 = vmatpush1.msra.mxu0 %v947
  %1260 = vmatprep.subr.mxu0 0.0
  %1261 = vmatpush1.msra.mxu0 %v948
  %1262 = vmatprep.subr.mxu0 0.0
  %1263 = vmatpush1.msra.mxu0 0.0
  %1264 = vmatprep.subr.mxu0 0.0
  %1265 = vmatpush1.msra.mxu0 0.0
  %1266 = vmatprep.subr.mxu0 0.0
  %1267 = vmatpush1.msra.mxu0 0.0
  %1268 = vmatprep.subr.mxu0 0.0
  %1269 = vmatpush1.msra.mxu0 0.0
  %1270 = vmatprep.subr.mxu0 0.0
  %1271 = vmatpush1.msra.mxu0 0.0
  %1272 = vmatprep.subr.mxu0 0.0
  %1273 = vmatpush1.msra.mxu0 0.0
  %1274 = vmatprep.subr.mxu0 0.0
  %1275 = vmatpush1.msra.mxu0 0.0
  %1276 = vmatprep.subr.mxu0 0.0
  %1277 = vmatpush1.msra.mxu0 0.0
  %1278 = vmatprep.subr.mxu0 0.0
  %1279 = vmatpush1.msra.mxu0 0.0
  %1280 = vmatprep.subr.mxu0 0.0
  %1281 = vmatpush1.msra.mxu0 0.0
  %1282 = vmatprep.subr.mxu0 0.0
  %1283 = vmatpush1.msra.mxu0 0.0
  %1284 = vmatprep.subr.mxu0 0.0
  %1285 = vmatpush1.msra.mxu0 0.0
  %1286 = vmatprep.subr.mxu0 0.0
  %1287 = vmatpush1.msra.mxu0 0.0
  %1288 = vmatprep.subr.mxu0 0.0
  %1289 = vmatpush1.msra.mxu0 0.0
  %1290 = vmatprep.subr.mxu0 0.0
  %1291 = vmatpush1.msra.mxu0 0.0
  %1292 = vmatprep.subr.mxu0 0.0
  %1293 = vmatpush1.msra.mxu0 0.0
  %1294 = vmatprep.subr.mxu0 0.0
  %1295 = vmatpush1.msra.mxu0 0.0
  %1296 = vmatprep.subr.mxu0 0.0
  %1297 = vmatpush1.msra.mxu0 0.0
  %1298 = vmatprep.subr.mxu0 0.0
  %1299 = vmatpush1.msra.mxu0 0.0
  %1300 = vmatprep.subr.mxu0 0.0
  %1301 = vmatpush1.msra.mxu0 0.0
  %1302 = vmatprep.subr.mxu0 0.0
  %1303 = vmatpush1.msra.mxu0 0.0
  %1304 = vmatprep.subr.mxu0 0.0
  %1305 = vmatpush1.msra.mxu0 0.0
  %1306 = vmatprep.subr.mxu0 0.0
  %1307 = vmatpush1.msra.mxu0 0.0
  %1308 = vmatprep.subr.mxu0 0.0
  %1309 = vmatpush1.msra.mxu0 0.0
  %1310 = vmatprep.subr.mxu0 0.0
  %1311 = vmatpush1.msra.mxu0 0.0
  %1312 = vmatprep.subr.mxu0 0.0
  %1313 = vmatpush1.msra.mxu0 0.0
  %1314 = vmatprep.subr.mxu0 0.0
  %1315 = vmatpush1.msra.mxu0 0.0
  %1316 = vmatprep.subr.mxu0 0.0
  %1317 = vmatpush1.msra.mxu0 0.0
  %1318 = vmatprep.mubr.f32.mxu0 0.0
  %1319 = vmatmul.mubr.f32.gmra.mrb[0].mxu0 %v1252
  %v1320 = vpop.f32.mrb[0].mxu0
  %v1321 = vadd.f32 %v1068, %v1320
  %v1322 = vpop.f32.mrb[0].mxu0
  %1323 = vdwg.mxu0
  %1324 = vst.msk [vmem:[%s9 + $0x2] sm:$0x3] %vm951, %v1321
  %1325 = vst.msk [vmem:[#allocation3] sm:$0x3] %vm951, %v1321
  %1326 = vrot.lane.b32.xlu0 %v1248, 48
  %v1327 = vpop.permute.xlu0 %1326
  %1329 = vst.msk [vmem:[#allocation3] sm:$0x3] %vm957, %v1327
  %v1330 = vld [vmem:[#allocation3] sm:$0x3]
  %v1332 = vsel %vm966, %v1330, 0
  %1334 = vmatprep.subr.mxu0 0.0
  %1335 = vmatpush1.msra.mxu0 %v938
  %1336 = vmatprep.subr.mxu0 0.0
  %1337 = vmatpush1.msra.mxu0 %v939
  %1338 = vmatprep.subr.mxu0 0.0
  %1339 = vmatpush1.msra.mxu0 %v940
  %1340 = vmatprep.subr.mxu0 0.0
  %1341 = vmatpush1.msra.mxu0 %v941
  %1342 = vmatprep.subr.mxu0 0.0
  %1343 = vmatpush1.msra.mxu0 %v942
  %1344 = vmatprep.subr.mxu0 0.0
  %1345 = vmatpush1.msra.mxu0 %v943
  %1346 = vmatprep.subr.mxu0 0.0
  %1347 = vmatpush1.msra.mxu0 0.0
  %1348 = vmatprep.subr.mxu0 0.0
  %1349 = vmatpush1.msra.mxu0 0.0
  %1350 = vmatprep.subr.mxu0 0.0
  %1351 = vmatpush1.msra.mxu0 0.0
  %1352 = vmatprep.subr.mxu0 0.0
  %1353 = vmatpush1.msra.mxu0 0.0
  %1354 = vmatprep.subr.mxu0 0.0
  %1355 = vmatpush1.msra.mxu0 0.0
  %1356 = vmatprep.subr.mxu0 0.0
  %1357 = vmatpush1.msra.mxu0 0.0
  %1358 = vmatprep.subr.mxu0 0.0
  %1359 = vmatpush1.msra.mxu0 0.0
  %1360 = vmatprep.subr.mxu0 0.0
  %1361 = vmatpush1.msra.mxu0 0.0
  %1362 = vmatprep.subr.mxu0 0.0
  %1363 = vmatpush1.msra.mxu0 0.0
  %1364 = vmatprep.subr.mxu0 0.0
  %1365 = vmatpush1.msra.mxu0 0.0
  %1366 = vmatprep.subr.mxu0 0.0
  %1367 = vmatpush1.msra.mxu0 0.0
  %1368 = vmatprep.subr.mxu0 0.0
  %1369 = vmatpush1.msra.mxu0 0.0
  %1370 = vmatprep.subr.mxu0 0.0
  %1371 = vmatpush1.msra.mxu0 0.0
  %1372 = vmatprep.subr.mxu0 0.0
  %1373 = vmatpush1.msra.mxu0 0.0
  %1374 = vmatprep.subr.mxu0 0.0
  %1375 = vmatpush1.msra.mxu0 0.0
  %1376 = vmatprep.subr.mxu0 0.0
  %1377 = vmatpush1.msra.mxu0 0.0
  %1378 = vmatprep.subr.mxu0 0.0
  %1379 = vmatpush1.msra.mxu0 0.0
  %1380 = vmatprep.subr.mxu0 0.0
  %1381 = vmatpush1.msra.mxu0 0.0
  %1382 = vmatprep.subr.mxu0 0.0
  %1383 = vmatpush1.msra.mxu0 0.0
  %1384 = vmatprep.subr.mxu0 0.0
  %1385 = vmatpush1.msra.mxu0 0.0
  %1386 = vmatprep.subr.mxu0 0.0
  %1387 = vmatpush1.msra.mxu0 0.0
  %1388 = vmatprep.subr.mxu0 0.0
  %1389 = vmatpush1.msra.mxu0 0.0
  %1390 = vmatprep.subr.mxu0 0.0
  %1391 = vmatpush1.msra.mxu0 0.0
  %1392 = vmatprep.subr.mxu0 0.0
  %1393 = vmatpush1.msra.mxu0 0.0
  %1394 = vmatprep.subr.mxu0 0.0
  %1395 = vmatpush1.msra.mxu0 0.0
  %1396 = vmatprep.subr.mxu0 0.0
  %1397 = vmatpush1.msra.mxu0 0.0
  %1398 = vmatprep.mubr.f32.mxu0 0.0
  %1399 = vmatmul.mubr.f32.gmra.mrb[0].mxu0 %v1332
  %v1400 = vpop.f32.mrb[0].mxu0
  %v1401 = vadd.f32 %v964, %v1400
  %v1402 = vpop.f32.mrb[0].mxu0
  %1403 = vdwg.mxu0
  %v1404 = vxor.u32 %v1401, 2147483648
  %v1405 = vmul.f32 %v1404, 1.442695
  %v1406 = vpow.pop %v1405
  %v1407 = vadd.f32 %v1406, 1.0
  %v1408 = vrcp.pop %v1407
  %v1409 = vmul.f32 1.0, %v1408
  %v1410 = vtanh.pop %v1401
  %v1411 = vmul.f32 %v1409, %v1242
  %1413 = vrot.lane.b32.xlu0 %v1410, 64
  %v1414 = vpop.permute.xlu0 %1413
  %v1416 = vmul.f32 %v1409, %v1414
  %1418 = vrot.lane.b32.xlu0 %v1416, 32
  %v1419 = vpop.permute.xlu0 %1418
  %v1421 = vadd.f32 %v1411, %v1419
  %v1422 = vtanh.pop %v1421
  %1424 = vrot.lane.b32.xlu0 %v1422, 64
  %v1425 = vpop.permute.xlu0 %1424
  %v1427 = vmul.f32 %v1409, %v1425
  %1429 = vrot.lane.b32.xlu0 %v1427, 32
  %v1430 = vpop.permute.xlu0 %1429
  %v1431 = vsel %vm132, %v1430, 0
  %1433 = vmatprep.subr.mxu0 0.0
  %1434 = vmatpush1.msra.mxu0 %v945
  %1435 = vmatprep.subr.mxu0 0.0
  %1436 = vmatpush1.msra.mxu0 %v946
  %1437 = vmatprep.subr.mxu0 0.0
  %1438 = vmatpush1.msra.mxu0 %v947
  %1439 = vmatprep.subr.mxu0 0.0
  %1440 = vmatpush1.msra.mxu0 %v948
  %1441 = vmatprep.subr.mxu0 0.0
  %1442 = vmatpush1.msra.mxu0 0.0
  %1443 = vmatprep.subr.mxu0 0.0
  %1444 = vmatpush1.msra.mxu0 0.0
  %1445 = vmatprep.subr.mxu0 0.0
  %1446 = vmatpush1.msra.mxu0 0.0
  %1447 = vmatprep.subr.mxu0 0.0
  %1448 = vmatpush1.msra.mxu0 0.0
  %1449 = vmatprep.subr.mxu0 0.0
  %1450 = vmatpush1.msra.mxu0 0.0
  %1451 = vmatprep.subr.mxu0 0.0
  %1452 = vmatpush1.msra.mxu0 0.0
  %1453 = vmatprep.subr.mxu0 0.0
  %1454 = vmatpush1.msra.mxu0 0.0
  %1455 = vmatprep.subr.mxu0 0.0
  %1456 = vmatpush1.msra.mxu0 0.0
  %1457 = vmatprep.subr.mxu0 0.0
  %1458 = vmatpush1.msra.mxu0 0.0
  %1459 = vmatprep.subr.mxu0 0.0
  %1460 = vmatpush1.msra.mxu0 0.0
  %1461 = vmatprep.subr.mxu0 0.0
  %1462 = vmatpush1.msra.mxu0 0.0
  %1463 = vmatprep.subr.mxu0 0.0
  %1464 = vmatpush1.msra.mxu0 0.0
  %1465 = vmatprep.subr.mxu0 0.0
  %1466 = vmatpush1.msra.mxu0 0.0
  %1467 = vmatprep.subr.mxu0 0.0
  %1468 = vmatpush1.msra.mxu0 0.0
  %1469 = vmatprep.subr.mxu0 0.0
  %1470 = vmatpush1.msra.mxu0 0.0
  %1471 = vmatprep.subr.mxu0 0.0
  %1472 = vmatpush1.msra.mxu0 0.0
  %1473 = vmatprep.subr.mxu0 0.0
  %1474 = vmatpush1.msra.mxu0 0.0
  %1475 = vmatprep.subr.mxu0 0.0
  %1476 = vmatpush1.msra.mxu0 0.0
  %1477 = vmatprep.subr.mxu0 0.0
  %1478 = vmatpush1.msra.mxu0 0.0
  %1479 = vmatprep.subr.mxu0 0.0
  %1480 = vmatpush1.msra.mxu0 0.0
  %1481 = vmatprep.subr.mxu0 0.0
  %1482 = vmatpush1.msra.mxu0 0.0
  %1483 = vmatprep.subr.mxu0 0.0
  %1484 = vmatpush1.msra.mxu0 0.0
  %1485 = vmatprep.subr.mxu0 0.0
  %1486 = vmatpush1.msra.mxu0 0.0
  %1487 = vmatprep.subr.mxu0 0.0
  %1488 = vmatpush1.msra.mxu0 0.0
  %1489 = vmatprep.subr.mxu0 0.0
  %1490 = vmatpush1.msra.mxu0 0.0
  %1491 = vmatprep.subr.mxu0 0.0
  %1492 = vmatpush1.msra.mxu0 0.0
  %1493 = vmatprep.subr.mxu0 0.0
  %1494 = vmatpush1.msra.mxu0 0.0
  %1495 = vmatprep.subr.mxu0 0.0
  %1496 = vmatpush1.msra.mxu0 0.0
  %1497 = vmatprep.mubr.f32.mxu0 0.0
  %1498 = vmatmul.mubr.f32.gmra.mrb[0].mxu0 %v1431
  %v1499 = vpop.f32.mrb[0].mxu0
  %v1500 = vadd.f32 %v1068, %v1499
  %v1501 = vpop.f32.mrb[0].mxu0
  %1502 = vdwg.mxu0
  %1503 = vst.msk [vmem:[%s9 + $0x4] sm:$0x3] %vm951, %v1500
  %1504 = vst.msk [vmem:[#allocation3] sm:$0x3] %vm951, %v1500
  %1505 = vrot.lane.b32.xlu0 %v1427, 48
  %v1506 = vpop.permute.xlu0 %1505
  %1508 = vst.msk [vmem:[#allocation3] sm:$0x3] %vm957, %v1506
  %v1509 = vld [vmem:[#allocation3] sm:$0x3]
  %v1511 = vsel %vm966, %v1509, 0
  %1513 = vmatprep.subr.mxu0 0.0
  %1514 = vmatpush1.msra.mxu0 %v938
  %1515 = vmatprep.subr.mxu0 0.0
  %1516 = vmatpush1.msra.mxu0 %v939
  %1517 = vmatprep.subr.mxu0 0.0
  %1518 = vmatpush1.msra.mxu0 %v940
  %1519 = vmatprep.subr.mxu0 0.0
  %1520 = vmatpush1.msra.mxu0 %v941
  %1521 = vmatprep.subr.mxu0 0.0
  %1522 = vmatpush1.msra.mxu0 %v942
  %1523 = vmatprep.subr.mxu0 0.0
  %1524 = vmatpush1.msra.mxu0 %v943
  %1525 = vmatprep.subr.mxu0 0.0
  %1526 = vmatpush1.msra.mxu0 0.0
  %1527 = vmatprep.subr.mxu0 0.0
  %1528 = vmatpush1.msra.mxu0 0.0
  %1529 = vmatprep.subr.mxu0 0.0
  %1530 = vmatpush1.msra.mxu0 0.0
  %1531 = vmatprep.subr.mxu0 0.0
  %1532 = vmatpush1.msra.mxu0 0.0
  %1533 = vmatprep.subr.mxu0 0.0
  %1534 = vmatpush1.msra.mxu0 0.0
  %1535 = vmatprep.subr.mxu0 0.0
  %1536 = vmatpush1.msra.mxu0 0.0
  %1537 = vmatprep.subr.mxu0 0.0
  %1538 = vmatpush1.msra.mxu0 0.0
  %1539 = vmatprep.subr.mxu0 0.0
  %1540 = vmatpush1.msra.mxu0 0.0
  %1541 = vmatprep.subr.mxu0 0.0
  %1542 = vmatpush1.msra.mxu0 0.0
  %1543 = vmatprep.subr.mxu0 0.0
  %1544 = vmatpush1.msra.mxu0 0.0
  %1545 = vmatprep.subr.mxu0 0.0
  %1546 = vmatpush1.msra.mxu0 0.0
  %1547 = vmatprep.subr.mxu0 0.0
  %1548 = vmatpush1.msra.mxu0 0.0
  %1549 = vmatprep.subr.mxu0 0.0
  %1550 = vmatpush1.msra.mxu0 0.0
  %1551 = vmatprep.subr.mxu0 0.0
  %1552 = vmatpush1.msra.mxu0 0.0
  %1553 = vmatprep.subr.mxu0 0.0
  %1554 = vmatpush1.msra.mxu0 0.0
  %1555 = vmatprep.subr.mxu0 0.0
  %1556 = vmatpush1.msra.mxu0 0.0
  %1557 = vmatprep.subr.mxu0 0.0
  %1558 = vmatpush1.msra.mxu0 0.0
  %1559 = vmatprep.subr.mxu0 0.0
  %1560 = vmatpush1.msra.mxu0 0.0
  %1561 = vmatprep.subr.mxu0 0.0
  %1562 = vmatpush1.msra.mxu0 0.0
  %1563 = vmatprep.subr.mxu0 0.0
  %1564 = vmatpush1.msra.mxu0 0.0
  %1565 = vmatprep.subr.mxu0 0.0
  %1566 = vmatpush1.msra.mxu0 0.0
  %1567 = vmatprep.subr.mxu0 0.0
  %1568 = vmatpush1.msra.mxu0 0.0
  %1569 = vmatprep.subr.mxu0 0.0
  %1570 = vmatpush1.msra.mxu0 0.0
  %1571 = vmatprep.subr.mxu0 0.0
  %1572 = vmatpush1.msra.mxu0 0.0
  %1573 = vmatprep.subr.mxu0 0.0
  %1574 = vmatpush1.msra.mxu0 0.0
  %1575 = vmatprep.subr.mxu0 0.0
  %1576 = vmatpush1.msra.mxu0 0.0
  %1577 = vmatprep.mubr.f32.mxu0 0.0
  %1578 = vmatmul.mubr.f32.gmra.mrb[0].mxu0 %v1511
  %v1579 = vpop.f32.mrb[0].mxu0
  %v1580 = vadd.f32 %v964, %v1579
  %v1581 = vpop.f32.mrb[0].mxu0
  %1582 = vdwg.mxu0
  %v1583 = vxor.u32 %v1580, 2147483648
  %v1584 = vmul.f32 %v1583, 1.442695
  %v1585 = vpow.pop %v1584
  %v1586 = vadd.f32 %v1585, 1.0
  %v1587 = vrcp.pop %v1586
  %v1588 = vmul.f32 1.0, %v1587
  %v1589 = vtanh.pop %v1580
  %v1590 = vmul.f32 %v1588, %v1421
  %1592 = vrot.lane.b32.xlu0 %v1589, 64
  %v1593 = vpop.permute.xlu0 %1592
  %v1595 = vmul.f32 %v1588, %v1593
  %1597 = vrot.lane.b32.xlu0 %v1595, 32
  %v1598 = vpop.permute.xlu0 %1597
  %v1600 = vadd.f32 %v1590, %v1598
  %v1601 = vtanh.pop %v1600
  %1603 = vrot.lane.b32.xlu0 %v1601, 64
  %v1604 = vpop.permute.xlu0 %1603
  %v1606 = vmul.f32 %v1588, %v1604
  %1608 = vrot.lane.b32.xlu0 %v1606, 32
  %v1609 = vpop.permute.xlu0 %1608
  %v1610 = vsel %vm132, %v1609, 0
  %1612 = vmatprep.subr.mxu0 0.0
  %1613 = vmatpush1.msra.mxu0 %v945
  %1614 = vmatprep.subr.mxu0 0.0
  %1615 = vmatpush1.msra.mxu0 %v946
  %1616 = vmatprep.subr.mxu0 0.0
  %1617 = vmatpush1.msra.mxu0 %v947
  %1618 = vmatprep.subr.mxu0 0.0
  %1619 = vmatpush1.msra.mxu0 %v948
  %1620 = vmatprep.subr.mxu0 0.0
  %1621 = vmatpush1.msra.mxu0 0.0
  %1622 = vmatprep.subr.mxu0 0.0
  %1623 = vmatpush1.msra.mxu0 0.0
  %1624 = vmatprep.subr.mxu0 0.0
  %1625 = vmatpush1.msra.mxu0 0.0
  %1626 = vmatprep.subr.mxu0 0.0
  %1627 = vmatpush1.msra.mxu0 0.0
  %1628 = vmatprep.subr.mxu0 0.0
  %1629 = vmatpush1.msra.mxu0 0.0
  %1630 = vmatprep.subr.mxu0 0.0
  %1631 = vmatpush1.msra.mxu0 0.0
  %1632 = vmatprep.subr.mxu0 0.0
  %1633 = vmatpush1.msra.mxu0 0.0
  %1634 = vmatprep.subr.mxu0 0.0
  %1635 = vmatpush1.msra.mxu0 0.0
  %1636 = vmatprep.subr.mxu0 0.0
  %1637 = vmatpush1.msra.mxu0 0.0
  %1638 = vmatprep.subr.mxu0 0.0
  %1639 = vmatpush1.msra.mxu0 0.0
  %1640 = vmatprep.subr.mxu0 0.0
  %1641 = vmatpush1.msra.mxu0 0.0
  %1642 = vmatprep.subr.mxu0 0.0
  %1643 = vmatpush1.msra.mxu0 0.0
  %1644 = vmatprep.subr.mxu0 0.0
  %1645 = vmatpush1.msra.mxu0 0.0
  %1646 = vmatprep.subr.mxu0 0.0
  %1647 = vmatpush1.msra.mxu0 0.0
  %1648 = vmatprep.subr.mxu0 0.0
  %1649 = vmatpush1.msra.mxu0 0.0
  %1650 = vmatprep.subr.mxu0 0.0
  %1651 = vmatpush1.msra.mxu0 0.0
  %1652 = vmatprep.subr.mxu0 0.0
  %1653 = vmatpush1.msra.mxu0 0.0
  %1654 = vmatprep.subr.mxu0 0.0
  %1655 = vmatpush1.msra.mxu0 0.0
  %1656 = vmatprep.subr.mxu0 0.0
  %1657 = vmatpush1.msra.mxu0 0.0
  %1658 = vmatprep.subr.mxu0 0.0
  %1659 = vmatpush1.msra.mxu0 0.0
  %1660 = vmatprep.subr.mxu0 0.0
  %1661 = vmatpush1.msra.mxu0 0.0
  %1662 = vmatprep.subr.mxu0 0.0
  %1663 = vmatpush1.msra.mxu0 0.0
  %1664 = vmatprep.subr.mxu0 0.0
  %1665 = vmatpush1.msra.mxu0 0.0
  %1666 = vmatprep.subr.mxu0 0.0
  %1667 = vmatpush1.msra.mxu0 0.0
  %1668 = vmatprep.subr.mxu0 0.0
  %1669 = vmatpush1.msra.mxu0 0.0
  %1670 = vmatprep.subr.mxu0 0.0
  %1671 = vmatpush1.msra.mxu0 0.0
  %1672 = vmatprep.subr.mxu0 0.0
  %1673 = vmatpush1.msra.mxu0 0.0
  %1674 = vmatprep.subr.mxu0 0.0
  %1675 = vmatpush1.msra.mxu0 0.0
  %1676 = vmatprep.mubr.f32.mxu0 0.0
  %1677 = vmatmul.mubr.f32.gmra.mrb[0].mxu0 %v1610
  %v1678 = vpop.f32.mrb[0].mxu0
  %v1679 = vadd.f32 %v1068, %v1678
  %v1680 = vpop.f32.mrb[0].mxu0
  %1681 = vdwg.mxu0
  %1682 = vst.msk [vmem:[%s9 + $0x6] sm:$0x3] %vm951, %v1679
  // Predicated region
  $region38: #{cnnlstm_forward.6} parent=0 // pred_check
    _
  $region39: #{cnnlstm_forward.6} parent=0 // pred_check_branch
    %1684 = sbr.rel (0) target = $region41
  $region40: #{cnnlstm_forward.6} parent=0 // pred_region
    _
  $region41: #{cnnlstm_forward.6} parent=0 // pred_fallthru
    _
  // Predicated region
  $region42: #{cnnlstm_forward.6} parent=0 // pred_check
    _
  $region43: #{cnnlstm_forward.6} parent=0 // pred_check_branch
    %1686 = sbr.rel (0) target = $region45
  $region44: #{cnnlstm_forward.6} parent=0 // pred_region
    _
  $region45: #{cnnlstm_forward.6} parent=0 // pred_fallthru
    _

// kernel: cnnlstm_forward.7
$region0: #{cnnlstm_forward.7}
  #allocation0 [shape = 'u32[]', space=smem, size = 0x4, offset = 0x4, fixed_abs, tag = 'smem constant byte address 0x4 - core index']
  #allocation1 [shape = 'u32[144,128]{1,0:T(1,128)}', space=vmem, size = 0x12000, scoped, tag = 'internal scratch']
  #allocation2 [shape = 'f32[8,512]{1,0:T(8,128)}', space=vmem, size = 0x4000, scoped, tag = 'scratch operand']
  %s0 = inlined_call_operand.vmem [shape: f32[8,16], index: 0, kind: input, shape index: {}]
  %s1 = inlined_call_operand.vmem [shape: f32[16,512], index: 1, kind: input, shape index: {}]
  %s2 = inlined_call_operand.vmem [shape: f32[1,512], index: 2, kind: input, shape index: {}]
  %s3 = inlined_call_operand.vmem [shape: f32[512,768], index: 3, kind: input, shape index: {}]
  %s4 = inlined_call_operand.vmem [shape: f32[1,768], index: 4, kind: input, shape index: {}]
  %s5 = inlined_call_operand.vmem [shape: f32[8,768], index: 5, kind: output, shape index: {}]
  %s6 = sld [smem:[#allocation0]]
  $region80: #{cnnlstm_forward.7} parent=0
    _
  %s8 = ssub.s32 1, %s6
  %s9 = scalar_select 0, %s8, %s6
  $region1: #{cnnlstm_forward.7} parent=0
    #allocation3 [shape = 'u8[1048576]{0}', space=vmem, size = 0x100000, scoped, tag = 'input window, operand 3']
    loop: start=0, step=1, limit=5
    $region2: #{cnnlstm_forward.7} parent=1 // loop_pre_header
      _
    $region3: #{cnnlstm_forward.7} parent=1 // loop_header
      %s11 = sphi 0, %s15
      %p12 = scmp.ge.s32.totalorder %s11, 5
      %s18 = sphi 0, %s30
      %s19 = sphi 0, %s26
      %s20 = sphi 0, %s18
      %s21 = sphi 0, %s19
      %s22 = sphi 0, %s20
      %s23 = sphi 0, %s21
      %s33 = sphi 0, %s35
      %s36 = sphi 0, %s33
      %s37 = sphi 0, %s36
      %s53 = sphi 0, %s37
      %s57 = sphi 0, %s57
      %s59 = sphi 0, %s57
      %s60 = sphi 0, %s59
      %s74 = sphi 0, %s60
      %s78 = sphi 0, %s78
      %s80 = sphi 0, %s78
      %s81 = sphi 0, %s80
      %s95 = sphi 0, %s81
      %s101 = sphi 0, %s103
      %s104 = sphi 0, %s101
      %s105 = sphi 0, %s104
      %s121 = sphi 0, %s105
      %s127 = sphi 0, %s129
      %s130 = sphi 0, %s127
      %s131 = sphi 0, %s130
      %s147 = sphi 0, %s131
      %s155 = sphi 0, %s157
      %s158 = sphi 0, %s155
      %s159 = sphi 0, %s158
      %s175 = sphi 0, %s159
    $region4: #{cnnlstm_forward.7} parent=1 // loop_header_branch
      %14 = sbr.rel (%p12) target = $region8
    $region5: #{cnnlstm_forward.7} parent=1 // loop_body
      %s16 = ssub.s32 %s11, 1
      %s17 = ssub.s32 %s11, 2
      %s24 = sadd.s32 1, %s19
      %p25 = scmp.ge.s32.totalorder %s24, 3
      %s26 = scalar_select %p25, 0, %s24
      %s27 = sadd.s32 1, %s18
      %s28 = scalar_select %p25, %s27, %s18
      %p29 = scmp.ge.s32.totalorder %s28, 1
      %s30 = scalar_select %p29, 0, %s28
      %s31 = ssub.s32 %s18, %s30
      %p32 = scmp.eq.s32.totalorder %s31, 0
      %s34 = sadd.s32 %s33, 1
      %s35 = scalar_select %p32, %s33, %s34
      %p38 = pneg %p32
      %p39 = scmp.eq.s32.totalorder %s11, 2
      %p40 = por %p38, %p39
      %p41 = scmp.ne.s32.totalorder %s33, %s36
      %p42 = scmp.eq.s32.totalorder %s11, 0
      %p43 = por %p41, %p42
      %p44 = scmp.ne.s32.totalorder %s33, %s36
      %p45 = scmp.eq.s32.totalorder %s16, 2
      %p46 = por %p44, %p45
      %p47 = scmp.ne.s32.totalorder %s36, %s37
      %p48 = scmp.eq.s32.totalorder %s16, 0
      %p49 = por %p47, %p48
      %p50 = scmp.ne.s32.totalorder %s36, %s37
      %p51 = scmp.eq.s32.totalorder %s17, 2
      %p52 = por %p50, %p51
      %p54 = scmp.ne.s32.totalorder %s37, %s53
      %p55 = scmp.eq.s32.totalorder %s17, 0
      %p56 = por %p54, %p55
      %s58 = sadd.s32 %s57, 1
      %p61 = scmp.eq.s32.totalorder %s11, 2
      %p62 = scmp.ne.s32.totalorder %s57, %s59
      %p63 = scmp.eq.s32.totalorder %s11, 0
      %p64 = por %p62, %p63
      %p65 = scmp.ne.s32.totalorder %s57, %s59
      %p66 = scmp.eq.s32.totalorder %s16, 2
      %p67 = por %p65, %p66
      %p68 = scmp.ne.s32.totalorder %s59, %s60
      %p69 = scmp.eq.s32.totalorder %s16, 0
      %p70 = por %p68, %p69
      %p71 = scmp.ne.s32.totalorder %s59, %s60
      %p72 = scmp.eq.s32.totalorder %s17, 2
      %p73 = por %p71, %p72
      %p75 = scmp.ne.s32.totalorder %s60, %s74
      %p76 = scmp.eq.s32.totalorder %s17, 0
      %p77 = por %p75, %p76
      %s79 = sadd.s32 %s78, 1
      %p82 = scmp.eq.s32.totalorder %s11, 2
      %p83 = scmp.ne.s32.totalorder %s78, %s80
      %p84 = scmp.eq.s32.totalorder %s11, 0
      %p85 = por %p83, %p84
      %p86 = scmp.ne.s32.totalorder %s78, %s80
      %p87 = scmp.eq.s32.totalorder %s16, 2
      %p88 = por %p86, %p87
      %p89 = scmp.ne.s32.totalorder %s80, %s81
      %p90 = scmp.eq.s32.totalorder %s16, 0
      %p91 = por %p89, %p90
      %p92 = scmp.ne.s32.totalorder %s80, %s81
      %p93 = scmp.eq.s32.totalorder %s17, 2
      %p94 = por %p92, %p93
      %p96 = scmp.ne.s32.totalorder %s81, %s95
      %p97 = scmp.eq.s32.totalorder %s17, 0
      %p98 = por %p96, %p97
      %s99 = ssub.s32 %s19, %s26
      %p100 = scmp.eq.s32.totalorder %s99, 0
      %s102 = sadd.s32 %s101, 1
      %s103 = scalar_select %p100, %s101, %s102
      %p106 = pneg %p100
      %p107 = scmp.eq.s32.totalorder %s11, 2
      %p108 = por %p106, %p107
      %p109 = scmp.ne.s32.totalorder %s101, %s104
      %p110 = scmp.eq.s32.totalorder %s11, 0
      %p111 = por %p109, %p110
      %p112 = scmp.ne.s32.totalorder %s101, %s104
      %p113 = scmp.eq.s32.totalorder %s16, 2
      %p114 = por %p112, %p113
      %p115 = scmp.ne.s32.totalorder %s104, %s105
      %p116 = scmp.eq.s32.totalorder %s16, 0
      %p117 = por %p115, %p116
      %p118 = scmp.ne.s32.totalorder %s104, %s105
      %p119 = scmp.eq.s32.totalorder %s17, 2
      %p120 = por %p118, %p119
      %p122 = scmp.ne.s32.totalorder %s105, %s121
      %p123 = scmp.eq.s32.totalorder %s17, 0
      %p124 = por %p122, %p123
      %s125 = ssub.s32 %s19, %s26
      %p126 = scmp.eq.s32.totalorder %s125, 0
      %s128 = sadd.s32 %s127, 1
      %s129 = scalar_select %p126, %s127, %s128
      %p132 = pneg %p126
      %p133 = scmp.eq.s32.totalorder %s11, 2
      %p134 = por %p132, %p133
      %p135 = scmp.ne.s32.totalorder %s127, %s130
      %p136 = scmp.eq.s32.totalorder %s11, 0
      %p137 = por %p135, %p136
      %p138 = scmp.ne.s32.totalorder %s127, %s130
      %p139 = scmp.eq.s32.totalorder %s16, 2
      %p140 = por %p138, %p139
      %p141 = scmp.ne.s32.totalorder %s130, %s131
      %p142 = scmp.eq.s32.totalorder %s16, 0
      %p143 = por %p141, %p142
      %p144 = scmp.ne.s32.totalorder %s130, %s131
      %p145 = scmp.eq.s32.totalorder %s17, 2
      %p146 = por %p144, %p145
      %p148 = scmp.ne.s32.totalorder %s131, %s147
      %p149 = scmp.eq.s32.totalorder %s17, 0
      %p150 = por %p148, %p149
      %s151 = ssub.s32 %s18, %s30
      %s152 = ssub.s32 %s19, %s26
      %s153 = sor.u32 %s151, %s152
      %p154 = scmp.eq.s32.totalorder %s153, 0
      %s156 = sadd.s32 %s155, 1
      %s157 = scalar_select %p154, %s155, %s156
      %p160 = pneg %p154
      %p161 = scmp.eq.s32.totalorder %s11, 2
      %p162 = por %p160, %p161
      %p163 = scmp.ne.s32.totalorder %s155, %s158
      %p164 = scmp.eq.s32.totalorder %s11, 0
      %p165 = por %p163, %p164
      %p166 = scmp.ne.s32.totalorder %s155, %s158
      %p167 = scmp.eq.s32.totalorder %s16, 2
      %p168 = por %p166, %p167
      %p169 = scmp.ne.s32.totalorder %s158, %s159
      %p170 = scmp.eq.s32.totalorder %s16, 0
      %p171 = por %p169, %p170
      %p172 = scmp.ne.s32.totalorder %s158, %s159
      %p173 = scmp.eq.s32.totalorder %s17, 2
      %p174 = por %p172, %p173
      %p176 = scmp.ne.s32.totalorder %s159, %s175
      %p177 = scmp.eq.s32.totalorder %s17, 0
      %p178 = por %p176, %p177
      %p179 = scmp.le.s32.totalorder 1, %s11
      %p180 = scmp.lt.s32.totalorder %s11, 4
      %p181 = pnand %p179, %p180
      %p182 = pneg %p181
      // Predicated region
      $region9: #{cnnlstm_forward.7} parent=5 // pred_check
        _
      $region10: #{cnnlstm_forward.7} parent=5 // pred_check_branch
        %184 = sbr.rel (%p181) target = $region12
      $region11: #{cnnlstm_forward.7} parent=5 // pred_region
        %s185 = ssub.s32 %s11, 1
        // Predicated region
        $region13: #{cnnlstm_forward.7} parent=11 // pred_check
          %p186 = pneg %p49
        $region14: #{cnnlstm_forward.7} parent=11 // pred_check_branch
          %188 = sbr.rel (%p186) target = $region16
        $region15: #{cnnlstm_forward.7} parent=11 // pred_region
          %p189 = scmp.lt.s32.totalorder %s20, 0
          %s190 = scalar_select %p189, %s20, 0
          %s191 = smul.addr %s190, 8
          %s192 = scalar_lea.vmem %s0, %s191
        $region16: #{cnnlstm_forward.7} parent=11 // pred_fallthru
          _
        // Predicated region
        $region17: #{cnnlstm_forward.7} parent=11 // pred_check
          %p193 = pneg %p70
        $region18: #{cnnlstm_forward.7} parent=11 // pred_check_branch
          %195 = sbr.rel (%p193) target = $region20
        $region19: #{cnnlstm_forward.7} parent=11 // pred_region
          _
        $region20: #{cnnlstm_forward.7} parent=11 // pred_fallthru
          _
        // Predicated region
        $region21: #{cnnlstm_forward.7} parent=11 // pred_check
          %p196 = pneg %p91
        $region22: #{cnnlstm_forward.7} parent=11 // pred_check_branch
          %198 = sbr.rel (%p196) target = $region24
        $region23: #{cnnlstm_forward.7} parent=11 // pred_region
          _
        $region24: #{cnnlstm_forward.7} parent=11 // pred_fallthru
          _
      $region12: #{cnnlstm_forward.7} parent=5 // pred_fallthru
        _
      %p199 = scmp.lt.s32.totalorder %s11, 3
      // Predicated region
      $region25: #{cnnlstm_forward.7} parent=5 // pred_check
        %p200 = pneg %p199
      $region26: #{cnnlstm_forward.7} parent=5 // pred_check_branch
        %202 = sbr.rel (%p200) target = $region28
      $region27: #{cnnlstm_forward.7} parent=5 // pred_region
        // Predicated region
        $region29: #{cnnlstm_forward.7} parent=27 // pred_check
          %p203 = pneg %p111
        $region30: #{cnnlstm_forward.7} parent=27 // pred_check_branch
          %205 = sbr.rel (%p203) target = $region32
        $region31: #{cnnlstm_forward.7} parent=27 // pred_region
          %s206 = sand.u32 %s101, 1
          %s207 = sand.u32 %s101, 1
          %s208 = smul.addr %s207, 1024
          %s209 = scalar_lea.vmem [#allocation3], %s208
          %s210 = smul.u32 2, %s19
          %s211 = smul.addr %s210, 8
          %s212 = scalar_lea.vmem %s3, %s211
          // Predicated region
          $region33: #{cnnlstm_forward.7} parent=31 // pred_check
            _
          $region34: #{cnnlstm_forward.7} parent=31 // pred_check_branch
            %214 = sbr.rel (0) target = $region36
          $region35: #{cnnlstm_forward.7} parent=31 // pred_region
            // Predicated region
            $region37: #{cnnlstm_forward.7} parent=35 // pred_check
              _
            $region38: #{cnnlstm_forward.7} parent=35 // pred_check_branch
              %216 = sbr.rel (0) target = $region40
            $region39: #{cnnlstm_forward.7} parent=35 // pred_region
              loop: start=0, step=1, limit=1
              $region41: #{cnnlstm_forward.7} parent=39 // loop_pre_header
                _
              $region42: #{cnnlstm_forward.7} parent=39 // loop_header
                %s218 = sphi 0, %s222
                %p219 = scmp.ge.s32.totalorder %s218, 1
                %s223 = sphi %s212, %s212
                %s224 = sphi %s209, %s209
              $region43: #{cnnlstm_forward.7} parent=39 // loop_header_branch
                %221 = sbr.rel (%p219) target = $region47
              $region44: #{cnnlstm_forward.7} parent=39 // loop_body
                %v225 = vld [vmem:[%s223] sm:$0xff]
                %226 = vst [vmem:[%s224] sm:$0xff] %v225
                %v227 = vld [vmem:[%s223 + $0x8] sm:$0xff]
                %228 = vst [vmem:[%s224 + $0x8] sm:$0xff] %v227
                %v229 = vld [vmem:[%s223 + $0x30] sm:$0xff]
                %230 = vst [vmem:[%s224 + $0x10] sm:$0xff] %v229
                %v231 = vld [vmem:[%s223 + $0x38] sm:$0xff]
                %232 = vst [vmem:[%s224 + $0x18] sm:$0xff] %v231
                %v233 = vld [vmem:[%s223 + $0x60] sm:$0xff]
                %234 = vst [vmem:[%s224 + $0x20] sm:$0xff] %v233
                %v235 = vld [vmem:[%s223 + $0x68] sm:$0xff]
                %236 = vst [vmem:[%s224 + $0x28] sm:$0xff] %v235
                %v237 = vld [vmem:[%s223 + $0x90] sm:$0xff]
                %238 = vst [vmem:[%s224 + $0x30] sm:$0xff] %v237
                %v239 = vld [vmem:[%s223 + $0x98] sm:$0xff]
                %240 = vst [vmem:[%s224 + $0x38] sm:$0xff] %v239
                %v241 = vld [vmem:[%s223 + $0xc0] sm:$0xff]
                %242 = vst [vmem:[%s224 + $0x40] sm:$0xff] %v241
                %v243 = vld [vmem:[%s223 + $0xc8] sm:$0xff]
                %244 = vst [vmem:[%s224 + $0x48] sm:$0xff] %v243
                %v245 = vld [vmem:[%s223 + $0xf0] sm:$0xff]
                %246 = vst [vmem:[%s224 + $0x50] sm:$0xff] %v245
                %v247 = vld [vmem:[%s223 + $0xf8] sm:$0xff]
                %248 = vst [vmem:[%s224 + $0x58] sm:$0xff] %v247
                %v249 = vld [vmem:[%s223 + $0x120] sm:$0xff]
                %250 = vst [vmem:[%s224 + $0x60] sm:$0xff] %v249
                %v251 = vld [vmem:[%s223 + $0x128] sm:$0xff]
                %252 = vst [vmem:[%s224 + $0x68] sm:$0xff] %v251
                %v253 = vld [vmem:[%s223 + $0x150] sm:$0xff]
                %254 = vst [vmem:[%s224 + $0x70] sm:$0xff] %v253
                %v255 = vld [vmem:[%s223 + $0x158] sm:$0xff]
                %256 = vst [vmem:[%s224 + $0x78] sm:$0xff] %v255
                %v257 = vld [vmem:[%s223 + $0x180] sm:$0xff]
                %258 = vst [vmem:[%s224 + $0x80] sm:$0xff] %v257
                %v259 = vld [vmem:[%s223 + $0x188] sm:$0xff]
                %260 = vst [vmem:[%s224 + $0x88] sm:$0xff] %v259
                %v261 = vld [vmem:[%s223 + $0x1b0] sm:$0xff]
                %262 = vst [vmem:[%s224 + $0x90] sm:$0xff] %v261
                %v263 = vld [vmem:[%s223 + $0x1b8] sm:$0xff]
                %264 = vst [vmem:[%s224 + $0x98] sm:$0xff] %v263
                %v265 = vld [vmem:[%s223 + $0x1e0] sm:$0xff]
                %266 = vst [vmem:[%s224 + $0xa0] sm:$0xff] %v265
                %v267 = vld [vmem:[%s223 + $0x1e8] sm:$0xff]
                %268 = vst [vmem:[%s224 + $0xa8] sm:$0xff] %v267
                %v269 = vld [vmem:[%s223 + $0x210] sm:$0xff]
                %270 = vst [vmem:[%s224 + $0xb0] sm:$0xff] %v269
                %v271 = vld [vmem:[%s223 + $0x218] sm:$0xff]
                %272 = vst [vmem:[%s224 + $0xb8] sm:$0xff] %v271
                %v273 = vld [vmem:[%s223 + $0x240] sm:$0xff]
                %274 = vst [vmem:[%s224 + $0xc0] sm:$0xff] %v273
                %v275 = vld [vmem:[%s223 + $0x248] sm:$0xff]
                %276 = vst [vmem:[%s224 + $0xc8] sm:$0xff] %v275
                %v277 = vld [vmem:[%s223 + $0x270] sm:$0xff]
                %278 = vst [vmem:[%s224 + $0xd0] sm:$0xff] %v277
                %v279 = vld [vmem:[%s223 + $0x278] sm:$0xff]
                %280 = vst [vmem:[%s224 + $0xd8] sm:$0xff] %v279
                %v281 = vld [vmem:[%s223 + $0x2a0] sm:$0xff]
                %282 = vst [vmem:[%s224 + $0xe0] sm:$0xff] %v281
                %v283 = vld [vmem:[%s223 + $0x2a8] sm:$0xff]
                %284 = vst [vmem:[%s224 + $0xe8] sm:$0xff] %v283
                %v285 = vld [vmem:[%s223 + $0x2d0] sm:$0xff]
                %286 = vst [vmem:[%s224 + $0xf0] sm:$0xff] %v285
                %v287 = vld [vmem:[%s223 + $0x2d8] sm:$0xff]
                %288 = vst [vmem:[%s224 + $0xf8] sm:$0xff] %v287
                %v289 = vld [vmem:[%s223 + $0x300] sm:$0xff]
                %290 = vst [vmem:[%s224 + $0x100] sm:$0xff] %v289
                %v291 = vld [vmem:[%s223 + $0x308] sm:$0xff]
                %292 = vst [vmem:[%s224 + $0x108] sm:$0xff] %v291
                %v293 = vld [vmem:[%s223 + $0x330] sm:$0xff]
                %294 = vst [vmem:[%s224 + $0x110] sm:$0xff] %v293
                %v295 = vld [vmem:[%s223 + $0x338] sm:$0xff]
                %296 = vst [vmem:[%s224 + $0x118] sm:$0xff] %v295
                %v297 = vld [vmem:[%s223 + $0x360] sm:$0xff]
                %298 = vst [vmem:[%s224 + $0x120] sm:$0xff] %v297
                %v299 = vld [vmem:[%s223 + $0x368] sm:$0xff]
                %300 = vst [vmem:[%s224 + $0x128] sm:$0xff] %v299
                %v301 = vld [vmem:[%s223 + $0x390] sm:$0xff]
                %302 = vst [vmem:[%s224 + $0x130] sm:$0xff] %v301
                %v303 = vld [vmem:[%s223 + $0x398] sm:$0xff]
                %304 = vst [vmem:[%s224 + $0x138] sm:$0xff] %v303
                %v305 = vld [vmem:[%s223 + $0x3c0] sm:$0xff]
                %306 = vst [vmem:[%s224 + $0x140] sm:$0xff] %v305
                %v307 = vld [vmem:[%s223 + $0x3c8] sm:$0xff]
                %308 = vst [vmem:[%s224 + $0x148] sm:$0xff] %v307
                %v309 = vld [vmem:[%s223 + $0x3f0] sm:$0xff]
                %310 = vst [vmem:[%s224 + $0x150] sm:$0xff] %v309
                %v311 = vld [vmem:[%s223 + $0x3f8] sm:$0xff]
                %312 = vst [vmem:[%s224 + $0x158] sm:$0xff] %v311
                %v313 = vld [vmem:[%s223 + $0x420] sm:$0xff]
                %314 = vst [vmem:[%s224 + $0x160] sm:$0xff] %v313
                %v315 = vld [vmem:[%s223 + $0x428] sm:$0xff]
                %316 = vst [vmem:[%s224 + $0x168] sm:$0xff] %v315
                %v317 = vld [vmem:[%s223 + $0x450] sm:$0xff]
                %318 = vst [vmem:[%s224 + $0x170] sm:$0xff] %v317
                %v319 = vld [vmem:[%s223 + $0x458] sm:$0xff]
                %320 = vst [vmem:[%s224 + $0x178] sm:$0xff] %v319
                %v321 = vld [vmem:[%s223 + $0x480] sm:$0xff]
                %322 = vst [vmem:[%s224 + $0x180] sm:$0xff] %v321
                %v323 = vld [vmem:[%s223 + $0x488] sm:$0xff]
                %324 = vst [vmem:[%s224 + $0x188] sm:$0xff] %v323
                %v325 = vld [vmem:[%s223 + $0x4b0] sm:$0xff]
                %326 = vst [vmem:[%s224 + $0x190] sm:$0xff] %v325
                %v327 = vld [vmem:[%s223 + $0x4b8] sm:$0xff]
                %328 = vst [vmem:[%s224 + $0x198] sm:$0xff] %v327
                %v329 = vld [vmem:[%s223 + $0x4e0] sm:$0xff]
                %330 = vst [vmem:[%s224 + $0x1a0] sm:$0xff] %v329
                %v331 = vld [vmem:[%s223 + $0x4e8] sm:$0xff]
                %332 = vst [vmem:[%s224 + $0x1a8] sm:$0xff] %v331
                %v333 = vld [vmem:[%s223 + $0x510] sm:$0xff]
                %334 = vst [vmem:[%s224 + $0x1b0] sm:$0xff] %v333
                %v335 = vld [vmem:[%s223 + $0x518] sm:$0xff]
                %336 = vst [vmem:[%s224 + $0x1b8] sm:$0xff] %v335
                %v337 = vld [vmem:[%s223 + $0x540] sm:$0xff]
                %338 = vst [vmem:[%s224 + $0x1c0] sm:$0xff] %v337
                %v339 = vld [vmem:[%s223 + $0x548] sm:$0xff]
                %340 = vst [vmem:[%s224 + $0x1c8] sm:$0xff] %v339
                %v341 = vld [vmem:[%s223 + $0x570] sm:$0xff]
                %342 = vst [vmem:[%s224 + $0x1d0] sm:$0xff] %v341
                %v343 = vld [vmem:[%s223 + $0x578] sm:$0xff]
                %344 = vst [vmem:[%s224 + $0x1d8] sm:$0xff] %v343
                %v345 = vld [vmem:[%s223 + $0x5a0] sm:$0xff]
                %346 = vst [vmem:[%s224 + $0x1e0] sm:$0xff] %v345
                %v347 = vld [vmem:[%s223 + $0x5a8] sm:$0xff]
                %348 = vst [vmem:[%s224 + $0x1e8] sm:$0xff] %v347
                %v349 = vld [vmem:[%s223 + $0x5d0] sm:$0xff]
                %350 = vst [vmem:[%s224 + $0x1f0] sm:$0xff] %v349
                %v351 = vld [vmem:[%s223 + $0x5d8] sm:$0xff]
                %352 = vst [vmem:[%s224 + $0x1f8] sm:$0xff] %v351
                %v353 = vld [vmem:[%s223 + $0x600] sm:$0xff]
                %354 = vst [vmem:[%s224 + $0x200] sm:$0xff] %v353
                %v355 = vld [vmem:[%s223 + $0x608] sm:$0xff]
                %356 = vst [vmem:[%s224 + $0x208] sm:$0xff] %v355
                %v357 = vld [vmem:[%s223 + $0x630] sm:$0xff]
                %358 = vst [vmem:[%s224 + $0x210] sm:$0xff] %v357
                %v359 = vld [vmem:[%s223 + $0x638] sm:$0xff]
                %360 = vst [vmem:[%s224 + $0x218] sm:$0xff] %v359
                %v361 = vld [vmem:[%s223 + $0x660] sm:$0xff]
                %362 = vst [vmem:[%s224 + $0x220] sm:$0xff] %v361
                %v363 = vld [vmem:[%s223 + $0x668] sm:$0xff]
                %364 = vst [vmem:[%s224 + $0x228] sm:$0xff] %v363
                %v365 = vld [vmem:[%s223 + $0x690] sm:$0xff]
                %366 = vst [vmem:[%s224 + $0x230] sm:$0xff] %v365
                %v367 = vld [vmem:[%s223 + $0x698] sm:$0xff]
                %368 = vst [vmem:[%s224 + $0x238] sm:$0xff] %v367
                %v369 = vld [vmem:[%s223 + $0x6c0] sm:$0xff]
                %370 = vst [vmem:[%s224 + $0x240] sm:$0xff] %v369
                %v371 = vld [vmem:[%s223 + $0x6c8] sm:$0xff]
                %372 = vst [vmem:[%s224 + $0x248] sm:$0xff] %v371
                %v373 = vld [vmem:[%s223 + $0x6f0] sm:$0xff]
                %374 = vst [vmem:[%s224 + $0x250] sm:$0xff] %v373
                %v375 = vld [vmem:[%s223 + $0x6f8] sm:$0xff]
                %376 = vst [vmem:[%s224 + $0x258] sm:$0xff] %v375
                %v377 = vld [vmem:[%s223 + $0x720] sm:$0xff]
                %378 = vst [vmem:[%s224 + $0x260] sm:$0xff] %v377
                %v379 = vld [vmem:[%s223 + $0x728] sm:$0xff]
                %380 = vst [vmem:[%s224 + $0x268] sm:$0xff] %v379
                %v381 = vld [vmem:[%s223 + $0x750] sm:$0xff]
                %382 = vst [vmem:[%s224 + $0x270] sm:$0xff] %v381
                %v383 = vld [vmem:[%s223 + $0x758] sm:$0xff]
                %384 = vst [vmem:[%s224 + $0x278] sm:$0xff] %v383
                %v385 = vld [vmem:[%s223 + $0x780] sm:$0xff]
                %386 = vst [vmem:[%s224 + $0x280] sm:$0xff] %v385
                %v387 = vld [vmem:[%s223 + $0x788] sm:$0xff]
                %388 = vst [vmem:[%s224 + $0x288] sm:$0xff] %v387
                %v389 = vld [vmem:[%s223 + $0x7b0] sm:$0xff]
                %390 = vst [vmem:[%s224 + $0x290] sm:$0xff] %v389
                %v391 = vld [vmem:[%s223 + $0x7b8] sm:$0xff]
                %392 = vst [vmem:[%s224 + $0x298] sm:$0xff] %v391
                %v393 = vld [vmem:[%s223 + $0x7e0] sm:$0xff]
                %394 = vst [vmem:[%s224 + $0x2a0] sm:$0xff] %v393
                %v395 = vld [vmem:[%s223 + $0x7e8] sm:$0xff]
                %396 = vst [vmem:[%s224 + $0x2a8] sm:$0xff] %v395
                %v397 = vld [vmem:[%s223 + $0x810] sm:$0xff]
                %398 = vst [vmem:[%s224 + $0x2b0] sm:$0xff] %v397
                %v399 = vld [vmem:[%s223 + $0x818] sm:$0xff]
                %400 = vst [vmem:[%s224 + $0x2b8] sm:$0xff] %v399
                %v401 = vld [vmem:[%s223 + $0x840] sm:$0xff]
                %402 = vst [vmem:[%s224 + $0x2c0] sm:$0xff] %v401
                %v403 = vld [vmem:[%s223 + $0x848] sm:$0xff]
                %404 = vst [vmem:[%s224 + $0x2c8] sm:$0xff] %v403
                %v405 = vld [vmem:[%s223 + $0x870] sm:$0xff]
                %406 = vst [vmem:[%s224 + $0x2d0] sm:$0xff] %v405
                %v407 = vld [vmem:[%s223 + $0x878] sm:$0xff]
                %408 = vst [vmem:[%s224 + $0x2d8] sm:$0xff] %v407
                %v409 = vld [vmem:[%s223 + $0x8a0] sm:$0xff]
                %410 = vst [vmem:[%s224 + $0x2e0] sm:$0xff] %v409
                %v411 = vld [vmem:[%s223 + $0x8a8] sm:$0xff]
                %412 = vst [vmem:[%s224 + $0x2e8] sm:$0xff] %v411
                %v413 = vld [vmem:[%s223 + $0x8d0] sm:$0xff]
                %414 = vst [vmem:[%s224 + $0x2f0] sm:$0xff] %v413
                %v415 = vld [vmem:[%s223 + $0x8d8] sm:$0xff]
                %416 = vst [vmem:[%s224 + $0x2f8] sm:$0xff] %v415
                %v417 = vld [vmem:[%s223 + $0x900] sm:$0xff]
                %418 = vst [vmem:[%s224 + $0x300] sm:$0xff] %v417
                %v419 = vld [vmem:[%s223 + $0x908] sm:$0xff]
                %420 = vst [vmem:[%s224 + $0x308] sm:$0xff] %v419
                %v421 = vld [vmem:[%s223 + $0x930] sm:$0xff]
                %422 = vst [vmem:[%s224 + $0x310] sm:$0xff] %v421
                %v423 = vld [vmem:[%s223 + $0x938] sm:$0xff]
                %424 = vst [vmem:[%s224 + $0x318] sm:$0xff] %v423
                %v425 = vld [vmem:[%s223 + $0x960] sm:$0xff]
                %426 = vst [vmem:[%s224 + $0x320] sm:$0xff] %v425
                %v427 = vld [vmem:[%s223 + $0x968] sm:$0xff]
                %428 = vst [vmem:[%s224 + $0x328] sm:$0xff] %v427
                %v429 = vld [vmem:[%s223 + $0x990] sm:$0xff]
                %430 = vst [vmem:[%s224 + $0x330] sm:$0xff] %v429
                %v431 = vld [vmem:[%s223 + $0x998] sm:$0xff]
                %432 = vst [vmem:[%s224 + $0x338] sm:$0xff] %v431
                %v433 = vld [vmem:[%s223 + $0x9c0] sm:$0xff]
                %434 = vst [vmem:[%s224 + $0x340] sm:$0xff] %v433
                %v435 = vld [vmem:[%s223 + $0x9c8] sm:$0xff]
                %436 = vst [vmem:[%s224 + $0x348] sm:$0xff] %v435
                %v437 = vld [vmem:[%s223 + $0x9f0] sm:$0xff]
                %438 = vst [vmem:[%s224 + $0x350] sm:$0xff] %v437
                %v439 = vld [vmem:[%s223 + $0x9f8] sm:$0xff]
                %440 = vst [vmem:[%s224 + $0x358] sm:$0xff] %v439
                %v441 = vld [vmem:[%s223 + $0xa20] sm:$0xff]
                %442 = vst [vmem:[%s224 + $0x360] sm:$0xff] %v441
                %v443 = vld [vmem:[%s223 + $0xa28] sm:$0xff]
                %444 = vst [vmem:[%s224 + $0x368] sm:$0xff] %v443
                %v445 = vld [vmem:[%s223 + $0xa50] sm:$0xff]
                %446 = vst [vmem:[%s224 + $0x370] sm:$0xff] %v445
                %v447 = vld [vmem:[%s223 + $0xa58] sm:$0xff]
                %448 = vst [vmem:[%s224 + $0x378] sm:$0xff] %v447
                %v449 = vld [vmem:[%s223 + $0xa80] sm:$0xff]
                %450 = vst [vmem:[%s224 + $0x380] sm:$0xff] %v449
                %v451 = vld [vmem:[%s223 + $0xa88] sm:$0xff]
                %452 = vst [vmem:[%s224 + $0x388] sm:$0xff] %v451
                %v453 = vld [vmem:[%s223 + $0xab0] sm:$0xff]
                %454 = vst [vmem:[%s224 + $0x390] sm:$0xff] %v453
                %v455 = vld [vmem:[%s223 + $0xab8] sm:$0xff]
                %456 = vst [vmem:[%s224 + $0x398] sm:$0xff] %v455
                %v457 = vld [vmem:[%s223 + $0xae0] sm:$0xff]
                %458 = vst [vmem:[%s224 + $0x3a0] sm:$0xff] %v457
                %v459 = vld [vmem:[%s223 + $0xae8] sm:$0xff]
                %460 = vst [vmem:[%s224 + $0x3a8] sm:$0xff] %v459
                %v461 = vld [vmem:[%s223 + $0xb10] sm:$0xff]
                %462 = vst [vmem:[%s224 + $0x3b0] sm:$0xff] %v461
                %v463 = vld [vmem:[%s223 + $0xb18] sm:$0xff]
                %464 = vst [vmem:[%s224 + $0x3b8] sm:$0xff] %v463
                %v465 = vld [vmem:[%s223 + $0xb40] sm:$0xff]
                %466 = vst [vmem:[%s224 + $0x3c0] sm:$0xff] %v465
                %v467 = vld [vmem:[%s223 + $0xb48] sm:$0xff]
                %468 = vst [vmem:[%s224 + $0x3c8] sm:$0xff] %v467
                %v469 = vld [vmem:[%s223 + $0xb70] sm:$0xff]
                %470 = vst [vmem:[%s224 + $0x3d0] sm:$0xff] %v469
                %v471 = vld [vmem:[%s223 + $0xb78] sm:$0xff]
                %472 = vst [vmem:[%s224 + $0x3d8] sm:$0xff] %v471
                %v473 = vld [vmem:[%s223 + $0xba0] sm:$0xff]
                %474 = vst [vmem:[%s224 + $0x3e0] sm:$0xff] %v473
                %v475 = vld [vmem:[%s223 + $0xba8] sm:$0xff]
                %476 = vst [vmem:[%s224 + $0x3e8] sm:$0xff] %v475
                %v477 = vld [vmem:[%s223 + $0xbd0] sm:$0xff]
                %478 = vst [vmem:[%s224 + $0x3f0] sm:$0xff] %v477
                %v479 = vld [vmem:[%s223 + $0xbd8] sm:$0xff]
                %480 = vst [vmem:[%s224 + $0x3f8] sm:$0xff] %v479
              $region45: #{cnnlstm_forward.7} parent=39 // loop_footer
                %s222 = sadd.s32 1, %s218
              $region46: #{cnnlstm_forward.7} parent=39 // loop_footer_branch
                %217 = sbr.rel target = $region42
              $region47: #{cnnlstm_forward.7} parent=39 // loop_exit
                _
            $region40: #{cnnlstm_forward.7} parent=35 // pred_fallthru
              _
            // Predicated region
            $region48: #{cnnlstm_forward.7} parent=35 // pred_check
              _
            $region49: #{cnnlstm_forward.7} parent=35 // pred_check_branch
              %482 = sbr.rel target = $region51
            $region50: #{cnnlstm_forward.7} parent=35 // pred_region
              _
            $region51: #{cnnlstm_forward.7} parent=35 // pred_fallthru
              _
          $region36: #{cnnlstm_forward.7} parent=31 // pred_fallthru
            _
          %483 = vnop
        $region32: #{cnnlstm_forward.7} parent=27 // pred_fallthru
          _
        // Predicated region
        $region52: #{cnnlstm_forward.7} parent=27 // pred_check
          %p484 = pneg %p137
        $region53: #{cnnlstm_forward.7} parent=27 // pred_check_branch
          %486 = sbr.rel (%p484) target = $region55
        $region54: #{cnnlstm_forward.7} parent=27 // pred_region
          %s487 = smul.u32 2, %s19
          %p488 = scmp.lt.s32.totalorder %s487, 5
          %s489 = scalar_select %p488, %s487, 5
          %s490 = scalar_lea.vmem %s4, %s489
          %s491 = smul.u32 2, %s19
        $region55: #{cnnlstm_forward.7} parent=27 // pred_fallthru
          _
      $region28: #{cnnlstm_forward.7} parent=5 // pred_fallthru
        _
      %p492 = scmp.le.s32.totalorder 1, %s11
      %p493 = scmp.lt.s32.totalorder %s11, 4
      %p494 = pnand %p492, %p493
      %p495 = pneg %p494
      // Predicated region
      $region56: #{cnnlstm_forward.7} parent=5 // pred_check
        _
      $region57: #{cnnlstm_forward.7} parent=5 // pred_check_branch
        %497 = sbr.rel (%p494) target = $region59
      $region58: #{cnnlstm_forward.7} parent=5 // pred_region
        %s498 = ssub.s32 %s11, 1
        %s499 = sand.u32 %s104, 1
        %s500 = sand.u32 %s104, 1
        %s501 = smul.addr %s500, 1024
        %s502 = scalar_lea.vmem [#allocation3], %s501
        // Predicated region
        $region60: #{cnnlstm_forward.7} parent=58 // pred_check
          %p503 = pneg %p117
        $region61: #{cnnlstm_forward.7} parent=58 // pred_check_branch
          %505 = sbr.rel (%p503) target = $region63
        $region62: #{cnnlstm_forward.7} parent=58 // pred_region
          _
        $region63: #{cnnlstm_forward.7} parent=58 // pred_fallthru
          _
        %p506 = scmp.lt.s32.totalorder %s20, 0
        %s507 = scalar_select %p506, %s20, 0
        %s508 = smul.addr %s507, 8
        %s509 = scalar_lea.vmem %s0, %s508
        %p510 = pneg %p49
        %p511 = pneg %p46
        %p512 = pneg %p70
        %p513 = pneg %p67
        %p514 = pneg %p91
        %p515 = pneg %p88
        %s516 = sand.u32 %s104, 1
        %s517 = sand.u32 %s104, 1
        %s518 = smul.addr %s517, 1024
        %s519 = scalar_lea.vmem [#allocation3], %s518
        %p520 = pneg %p117
        %p521 = pneg %p114
        %s522 = smul.u32 2, %s21
        %p523 = scmp.lt.s32.totalorder %s522, 5
        %s524 = scalar_select %p523, %s522, 5
        %s525 = scalar_lea.vmem %s4, %s524
        %p526 = pneg %p143
        %p527 = pneg %p140
        %p528 = pneg %p171
        %p529 = pneg %p168
        %s530 = smul.u32 2, %s21
        %p531 = scmp.lt.s32.totalorder %s20, 0
        %s532 = scalar_select %p531, %s20, 0
        %p533 = scmp.lt.s32.totalorder %s530, 5
        %s534 = scalar_select %p533, %s530, 5
        %s535 = smul.addr %s532, 6
        %s536 = sadd.s32 %s534, %s535
        %s537 = smul.addr %s536, 8
        %s538 = scalar_lea.vmem %s5, %s537
        %p539 = scmp.lt.s32.totalorder %s20, 0
        %s540 = scalar_select %p539, %s20, 0
        %s541 = smul.addr %s540, 8
        %s542 = scalar_lea.vmem %s0, %s541
        %s543 = smul.u32 2, %s21
        %s544 = smul.u32 2, %s21
        %p545 = scmp.lt.s32.totalorder %s544, 5
        %s546 = scalar_select %p545, %s544, 5
        %s547 = scalar_lea.vmem %s4, %s546
        %s548 = smul.u32 2, %s21
        %s549 = smul.u32 2, %s21
        %p550 = scmp.lt.s32.totalorder %s20, 0
        %s551 = scalar_select %p550, %s20, 0
        %p552 = scmp.lt.s32.totalorder %s549, 5
        %s553 = scalar_select %p552, %s549, 5
        %s554 = smul.addr %s551, 6
        %s555 = sadd.s32 %s553, %s554
        %s556 = smul.addr %s555, 8
        %s557 = scalar_lea.vmem %s5, %s556
        %s558 = smul.u32 2, %s21
        %p559 = scmp.eq.s32.totalorder %s21, 0
        // Predicated region
        $region64: #{cnnlstm_forward.7} parent=58 // pred_check
          %p560 = pneg %p559
        $region65: #{cnnlstm_forward.7} parent=58 // pred_check_branch
          %562 = sbr.rel (%p560) target = $region67
        $region66: #{cnnlstm_forward.7} parent=58 // pred_region
          %v563 = vld [vmem:[%s542] sm:$0xff]
          %v564 = vld [vmem:[%s1] sm:$0xff]
          %v565 = vld [vmem:[%s1 + $0x8] sm:$0xff]
          %v566 = vld [vmem:[%s1 + $0x10] sm:$0xff]
          %v567 = vld [vmem:[%s1 + $0x18] sm:$0xff]
          %v568 = vld [vmem:[%s1 + $0x20] sm:$0xff]
          %v569 = vld [vmem:[%s1 + $0x28] sm:$0xff]
          %v570 = vld [vmem:[%s1 + $0x30] sm:$0xff]
          %v571 = vld [vmem:[%s1 + $0x38] sm:$0xff]
          %v572 = vld [vmem:[%s2] sm:$0xf]
          %v574 = vlaneseq
          %v575 = vshrl.u32 %v574, 7
          %v576 = vsub.s32 0, %v575
          %v577 = vrot.slane %v572, %v576
          %v578 = vlaneseq
          %v579 = vshrl.u32 %v578, 7
          %v580 = vsub.s32 1, %v579
          %v581 = vrot.slane %v572, %v580
          %v582 = vlaneseq
          %v583 = vshrl.u32 %v582, 7
          %v584 = vsub.s32 2, %v583
          %v585 = vrot.slane %v572, %v584
          %v586 = vlaneseq
          %v587 = vshrl.u32 %v586, 7
          %v588 = vsub.s32 3, %v587
          %v589 = vrot.slane %v572, %v588
          %vm594 = vcmask 130048
          %v596 = vsel %vm594, %v563, 0
          %598 = vmatprep.subr.mxu0 %v565
          %599 = vmatpush1.msra.mxu0 %v564
          %600 = vmatprep.subr.mxu0 %v569
          %601 = vmatpush1.msra.mxu0 %v568
          %602 = vmatprep.subr.mxu0 0.0
          %603 = vmatpush1.msra.mxu0 0.0
          %604 = vmatprep.subr.mxu0 0.0
          %605 = vmatpush1.msra.mxu0 0.0
          %606 = vmatprep.subr.mxu0 0.0
          %607 = vmatpush1.msra.mxu0 0.0
          %608 = vmatprep.subr.mxu0 0.0
          %609 = vmatpush1.msra.mxu0 0.0
          %610 = vmatprep.subr.mxu0 0.0
          %611 = vmatpush1.msra.mxu0 0.0
          %612 = vmatprep.subr.mxu0 0.0
          %613 = vmatpush1.msra.mxu0 0.0
          %614 = vmatprep.subr.mxu0 0.0
          %615 = vmatpush1.msra.mxu0 0.0
          %616 = vmatprep.subr.mxu0 0.0
          %617 = vmatpush1.msra.mxu0 0.0
          %618 = vmatprep.subr.mxu0 0.0
          %619 = vmatpush1.msra.mxu0 0.0
          %620 = vmatprep.subr.mxu0 0.0
          %621 = vmatpush1.msra.mxu0 0.0
          %622 = vmatprep.subr.mxu0 0.0
          %623 = vmatpush1.msra.mxu0 0.0
          %624 = vmatprep.subr.mxu0 0.0
          %625 = vmatpush1.msra.mxu0 0.0
          %626 = vmatprep.subr.mxu0 0.0
          %627 = vmatpush1.msra.mxu0 0.0
          %628 = vmatprep.subr.mxu0 0.0
          %629 = vmatpush1.msra.mxu0 0.0
          %630 = vmatprep.subr.mxu0 0.0
          %631 = vmatpush1.msra.mxu0 0.0
          %632 = vmatprep.subr.mxu0 0.0
          %633 = vmatpush1.msra.mxu0 0.0
          %634 = vmatprep.subr.mxu0 0.0
          %635 = vmatpush1.msra.mxu0 0.0
          %636 = vmatprep.subr.mxu0 0.0
          %637 = vmatpush1.msra.mxu0 0.0
          %638 = vmatprep.subr.mxu0 0.0
          %639 = vmatpush1.msra.mxu0 0.0
          %640 = vmatprep.subr.mxu0 0.0
          %641 = vmatpush1.msra.mxu0 0.0
          %642 = vmatprep.subr.mxu0 0.0
          %643 = vmatpush1.msra.mxu0 0.0
          %644 = vmatprep.subr.mxu0 0.0
          %645 = vmatpush1.msra.mxu0 0.0
          %646 = vmatprep.subr.mxu0 0.0
          %647 = vmatpush1.msra.mxu0 0.0
          %648 = vmatprep.subr.mxu0 0.0
          %649 = vmatpush1.msra.mxu0 0.0
          %650 = vmatprep.subr.mxu0 0.0
          %651 = vmatpush1.msra.mxu0 0.0
          %652 = vmatprep.subr.mxu0 0.0
          %653 = vmatpush1.msra.mxu0 0.0
          %654 = vmatprep.subr.mxu0 0.0
          %655 = vmatpush1.msra.mxu0 0.0
          %656 = vmatprep.subr.mxu0 0.0
          %657 = vmatpush1.msra.mxu0 0.0
          %658 = vmatprep.subr.mxu0 0.0
          %659 = vmatpush1.msra.mxu0 0.0
          %660 = vmatprep.subr.mxu0 0.0
          %661 = vmatpush1.msra.mxu0 0.0
          %662 = vmatprep.mubr.f32.mxu0 0.0
          %663 = vmatmul.mubr.f32.gmra.mrb[0].mxu0 %v596
          %v664 = vpop.f32.mrb[0].mxu0
          %v665 = vadd.f32 %v577, %v664
          %v666 = vpop.f32.mrb[0].mxu0
          %v667 = vadd.f32 %v581, %v666
          %668 = vdwg.mxu0
          %669 = vmatprep.subr.mxu0 %v567
          %670 = vmatpush1.msra.mxu0 %v566
          %671 = vmatprep.subr.mxu0 %v571
          %672 = vmatpush1.msra.mxu0 %v570
          %673 = vmatprep.subr.mxu0 0.0
          %674 = vmatpush1.msra.mxu0 0.0
          %675 = vmatprep.subr.mxu0 0.0
          %676 = vmatpush1.msra.mxu0 0.0
          %677 = vmatprep.subr.mxu0 0.0
          %678 = vmatpush1.msra.mxu0 0.0
          %679 = vmatprep.subr.mxu0 0.0
          %680 = vmatpush1.msra.mxu0 0.0
          %681 = vmatprep.subr.mxu0 0.0
          %682 = vmatpush1.msra.mxu0 0.0
          %683 = vmatprep.subr.mxu0 0.0
          %684 = vmatpush1.msra.mxu0 0.0
          %685 = vmatprep.subr.mxu0 0.0
          %686 = vmatpush1.msra.mxu0 0.0
          %687 = vmatprep.subr.mxu0 0.0
          %688 = vmatpush1.msra.mxu0 0.0
          %689 = vmatprep.subr.mxu0 0.0
          %690 = vmatpush1.msra.mxu0 0.0
          %691 = vmatprep.subr.mxu0 0.0
          %692 = vmatpush1.msra.mxu0 0.0
          %693 = vmatprep.subr.mxu0 0.0
          %694 = vmatpush1.msra.mxu0 0.0
          %695 = vmatprep.subr.mxu0 0.0
          %696 = vmatpush1.msra.mxu0 0.0
          %697 = vmatprep.subr.mxu0 0.0
          %698 = vmatpush1.msra.mxu0 0.0
          %699 = vmatprep.subr.mxu0 0.0
          %700 = vmatpush1.msra.mxu0 0.0
          %701 = vmatprep.subr.mxu0 0.0
          %702 = vmatpush1.msra.mxu0 0.0
          %703 = vmatprep.subr.mxu0 0.0
          %704 = vmatpush1.msra.mxu0 0.0
          %705 = vmatprep.subr.mxu0 0.0
          %706 = vmatpush1.msra.mxu0 0.0
          %707 = vmatprep.subr.mxu0 0.0
          %708 = vmatpush1.msra.mxu0 0.0
          %709 = vmatprep.subr.mxu0 0.0
          %710 = vmatpush1.msra.mxu0 0.0
          %711 = vmatprep.subr.mxu0 0.0
          %712 = vmatpush1.msra.mxu0 0.0
          %713 = vmatprep.subr.mxu0 0.0
          %714 = vmatpush1.msra.mxu0 0.0
          %715 = vmatprep.subr.mxu0 0.0
          %716 = vmatpush1.msra.mxu0 0.0
          %717 = vmatprep.subr.mxu0 0.0
          %718 = vmatpush1.msra.mxu0 0.0
          %719 = vmatprep.subr.mxu0 0.0
          %720 = vmatpush1.msra.mxu0 0.0
          %721 = vmatprep.subr.mxu0 0.0
          %722 = vmatpush1.msra.mxu0 0.0
          %723 = vmatprep.subr.mxu0 0.0
          %724 = vmatpush1.msra.mxu0 0.0
          %725 = vmatprep.subr.mxu0 0.0
          %726 = vmatpush1.msra.mxu0 0.0
          %727 = vmatprep.subr.mxu0 0.0
          %728 = vmatpush1.msra.mxu0 0.0
          %729 = vmatprep.subr.mxu0 0.0
          %730 = vmatpush1.msra.mxu0 0.0
          %731 = vmatprep.subr.mxu0 0.0
          %732 = vmatpush1.msra.mxu0 0.0
          %733 = vmatprep.mubr.f32.mxu0 0.0
          %734 = vmatmul.mubr.f32.gmra.mrb[0].mxu0 %v596
          %v735 = vpop.f32.mrb[0].mxu0
          %v736 = vadd.f32 %v585, %v735
          %v737 = vpop.f32.mrb[0].mxu0
          %v738 = vadd.f32 %v589, %v737
          %739 = vdwg.mxu0
          %v740 = vmax.f32 %v665, 0.0
          %v741 = vmax.f32 %v667, 0.0
          %v742 = vmax.f32 %v736, 0.0
          %v743 = vmax.f32 %v738, 0.0
          %744 = vst [vmem:[#allocation2] sm:$0xff] %v740
          %745 = vst [vmem:[#allocation2 + $0x8] sm:$0xff] %v741
          %746 = vst [vmem:[#allocation2 + $0x10] sm:$0xff] %v742
          %747 = vst [vmem:[#allocation2 + $0x18] sm:$0xff] %v743
        $region67: #{cnnlstm_forward.7} parent=58 // pred_fallthru
          _
        %v748 = vld [vmem:[#allocation2] sm:$0xff]
        %v749 = vld [vmem:[#allocation2 + $0x8] sm:$0xff]
        %v750 = vld [vmem:[#allocation2 + $0x10] sm:$0xff]
        %v751 = vld [vmem:[#allocation2 + $0x18] sm:$0xff]
        %v752 = vld [vmem:[%s502] sm:$0xff]
        %v753 = vld [vmem:[%s502 + $0x8] sm:$0xff]
        %v754 = vld [vmem:[%s502 + $0x10] sm:$0xff]
        %v755 = vld [vmem:[%s502 + $0x18] sm:$0xff]
        %v756 = vld [vmem:[%s502 + $0x20] sm:$0xff]
        %v757 = vld [vmem:[%s502 + $0x28] sm:$0xff]
        %v758 = vld [vmem:[%s502 + $0x30] sm:$0xff]
        %v759 = vld [vmem:[%s502 + $0x38] sm:$0xff]
        %v760 = vld [vmem:[%s502 + $0x40] sm:$0xff]
        %v761 = vld [vmem:[%s502 + $0x48] sm:$0xff]
        %v762 = vld [vmem:[%s502 + $0x50] sm:$0xff]
        %v763 = vld [vmem:[%s502 + $0x58] sm:$0xff]
        %v764 = vld [vmem:[%s502 + $0x60] sm:$0xff]
        %v765 = vld [vmem:[%s502 + $0x68] sm:$0xff]
        %v766 = vld [vmem:[%s502 + $0x70] sm:$0xff]
        %v767 = vld [vmem:[%s502 + $0x78] sm:$0xff]
        %v768 = vld [vmem:[%s502 + $0x80] sm:$0xff]
        %v769 = vld [vmem:[%s502 + $0x88] sm:$0xff]
        %v770 = vld [vmem:[%s502 + $0x90] sm:$0xff]
        %v771 = vld [vmem:[%s502 + $0x98] sm:$0xff]
        %v772 = vld [vmem:[%s502 + $0xa0] sm:$0xff]
        %v773 = vld [vmem:[%s502 + $0xa8] sm:$0xff]
        %v774 = vld [vmem:[%s502 + $0xb0] sm:$0xff]
        %v775 = vld [vmem:[%s502 + $0xb8] sm:$0xff]
        %v776 = vld [vmem:[%s502 + $0xc0] sm:$0xff]
        %v777 = vld [vmem:[%s502 + $0xc8] sm:$0xff]
        %v778 = vld [vmem:[%s502 + $0xd0] sm:$0xff]
        %v779 = vld [vmem:[%s502 + $0xd8] sm:$0xff]
        %v780 = vld [vmem:[%s502 + $0xe0] sm:$0xff]
        %v781 = vld [vmem:[%s502 + $0xe8] sm:$0xff]
        %v782 = vld [vmem:[%s502 + $0xf0] sm:$0xff]
        %v783 = vld [vmem:[%s502 + $0xf8] sm:$0xff]
        %v784 = vld [vmem:[%s502 + $0x100] sm:$0xff]
        %v785 = vld [vmem:[%s502 + $0x108] sm:$0xff]
        %v786 = vld [vmem:[%s502 + $0x110] sm:$0xff]
        %v787 = vld [vmem:[%s502 + $0x118] sm:$0xff]
        %v788 = vld [vmem:[%s502 + $0x120] sm:$0xff]
        %v789 = vld [vmem:[%s502 + $0x128] sm:$0xff]
        %v790 = vld [vmem:[%s502 + $0x130] sm:$0xff]
        %v791 = vld [vmem:[%s502 + $0x138] sm:$0xff]
        %v792 = vld [vmem:[%s502 + $0x140] sm:$0xff]
        %v793 = vld [vmem:[%s502 + $0x148] sm:$0xff]
        %v794 = vld [vmem:[%s502 + $0x150] sm:$0xff]
        %v795 = vld [vmem:[%s502 + $0x158] sm:$0xff]
        %v796 = vld [vmem:[%s502 + $0x160] sm:$0xff]
        %v797 = vld [vmem:[%s502 + $0x168] sm:$0xff]
        %v798 = vld [vmem:[%s502 + $0x170] sm:$0xff]
        %v799 = vld [vmem:[%s502 + $0x178] sm:$0xff]
        %v800 = vld [vmem:[%s502 + $0x180] sm:$0xff]
        %v801 = vld [vmem:[%s502 + $0x188] sm:$0xff]
        %v802 = vld [vmem:[%s502 + $0x190] sm:$0xff]
        %v803 = vld [vmem:[%s502 + $0x198] sm:$0xff]
        %v804 = vld [vmem:[%s502 + $0x1a0] sm:$0xff]
        %v805 = vld [vmem:[%s502 + $0x1a8] sm:$0xff]
        %v806 = vld [vmem:[%s502 + $0x1b0] sm:$0xff]
        %v807 = vld [vmem:[%s502 + $0x1b8] sm:$0xff]
        %v808 = vld [vmem:[%s502 + $0x1c0] sm:$0xff]
        %v809 = vld [vmem:[%s502 + $0x1c8] sm:$0xff]
        %v810 = vld [vmem:[%s502 + $0x1d0] sm:$0xff]
        %v811 = vld [vmem:[%s502 + $0x1d8] sm:$0xff]
        %v812 = vld [vmem:[%s502 + $0x1e0] sm:$0xff]
        %v813 = vld [vmem:[%s502 + $0x1e8] sm:$0xff]
        %v814 = vld [vmem:[%s502 + $0x1f0] sm:$0xff]
        %v815 = vld [vmem:[%s502 + $0x1f8] sm:$0xff]
        %v816 = vld [vmem:[%s502 + $0x200] sm:$0xff]
        %v817 = vld [vmem:[%s502 + $0x208] sm:$0xff]
        %v818 = vld [vmem:[%s502 + $0x210] sm:$0xff]
        %v819 = vld [vmem:[%s502 + $0x218] sm:$0xff]
        %v820 = vld [vmem:[%s502 + $0x220] sm:$0xff]
        %v821 = vld [vmem:[%s502 + $0x228] sm:$0xff]
        %v822 = vld [vmem:[%s502 + $0x230] sm:$0xff]
        %v823 = vld [vmem:[%s502 + $0x238] sm:$0xff]
        %v824 = vld [vmem:[%s502 + $0x240] sm:$0xff]
        %v825 = vld [vmem:[%s502 + $0x248] sm:$0xff]
        %v826 = vld [vmem:[%s502 + $0x250] sm:$0xff]
        %v827 = vld [vmem:[%s502 + $0x258] sm:$0xff]
        %v828 = vld [vmem:[%s502 + $0x260] sm:$0xff]
        %v829 = vld [vmem:[%s502 + $0x268] sm:$0xff]
        %v830 = vld [vmem:[%s502 + $0x270] sm:$0xff]
        %v831 = vld [vmem:[%s502 + $0x278] sm:$0xff]
        %v832 = vld [vmem:[%s502 + $0x280] sm:$0xff]
        %v833 = vld [vmem:[%s502 + $0x288] sm:$0xff]
        %v834 = vld [vmem:[%s502 + $0x290] sm:$0xff]
        %v835 = vld [vmem:[%s502 + $0x298] sm:$0xff]
        %v836 = vld [vmem:[%s502 + $0x2a0] sm:$0xff]
        %v837 = vld [vmem:[%s502 + $0x2a8] sm:$0xff]
        %v838 = vld [vmem:[%s502 + $0x2b0] sm:$0xff]
        %v839 = vld [vmem:[%s502 + $0x2b8] sm:$0xff]
        %v840 = vld [vmem:[%s502 + $0x2c0] sm:$0xff]
        %v841 = vld [vmem:[%s502 + $0x2c8] sm:$0xff]
        %v842 = vld [vmem:[%s502 + $0x2d0] sm:$0xff]
        %v843 = vld [vmem:[%s502 + $0x2d8] sm:$0xff]
        %v844 = vld [vmem:[%s502 + $0x2e0] sm:$0xff]
        %v845 = vld [vmem:[%s502 + $0x2e8] sm:$0xff]
        %v846 = vld [vmem:[%s502 + $0x2f0] sm:$0xff]
        %v847 = vld [vmem:[%s502 + $0x2f8] sm:$0xff]
        %v848 = vld [vmem:[%s502 + $0x300] sm:$0xff]
        %v849 = vld [vmem:[%s502 + $0x308] sm:$0xff]
        %v850 = vld [vmem:[%s502 + $0x310] sm:$0xff]
        %v851 = vld [vmem:[%s502 + $0x318] sm:$0xff]
        %v852 = vld [vmem:[%s502 + $0x320] sm:$0xff]
        %v853 = vld [vmem:[%s502 + $0x328] sm:$0xff]
        %v854 = vld [vmem:[%s502 + $0x330] sm:$0xff]
        %v855 = vld [vmem:[%s502 + $0x338] sm:$0xff]
        %v856 = vld [vmem:[%s502 + $0x340] sm:$0xff]
        %v857 = vld [vmem:[%s502 + $0x348] sm:$0xff]
        %v858 = vld [vmem:[%s502 + $0x350] sm:$0xff]
        %v859 = vld [vmem:[%s502 + $0x358] sm:$0xff]
        %v860 = vld [vmem:[%s502 + $0x360] sm:$0xff]
        %v861 = vld [vmem:[%s502 + $0x368] sm:$0xff]
        %v862 = vld [vmem:[%s502 + $0x370] sm:$0xff]
        %v863 = vld [vmem:[%s502 + $0x378] sm:$0xff]
        %v864 = vld [vmem:[%s502 + $0x380] sm:$0xff]
        %v865 = vld [vmem:[%s502 + $0x388] sm:$0xff]
        %v866 = vld [vmem:[%s502 + $0x390] sm:$0xff]
        %v867 = vld [vmem:[%s502 + $0x398] sm:$0xff]
        %v868 = vld [vmem:[%s502 + $0x3a0] sm:$0xff]
        %v869 = vld [vmem:[%s502 + $0x3a8] sm:$0xff]
        %v870 = vld [vmem:[%s502 + $0x3b0] sm:$0xff]
        %v871 = vld [vmem:[%s502 + $0x3b8] sm:$0xff]
        %v872 = vld [vmem:[%s502 + $0x3c0] sm:$0xff]
        %v873 = vld [vmem:[%s502 + $0x3c8] sm:$0xff]
        %v874 = vld [vmem:[%s502 + $0x3d0] sm:$0xff]
        %v875 = vld [vmem:[%s502 + $0x3d8] sm:$0xff]
        %v876 = vld [vmem:[%s502 + $0x3e0] sm:$0xff]
        %v877 = vld [vmem:[%s502 + $0x3e8] sm:$0xff]
        %v878 = vld [vmem:[%s502 + $0x3f0] sm:$0xff]
        %v879 = vld [vmem:[%s502 + $0x3f8] sm:$0xff]
        %v880 = vld [vmem:[%s547] sm:$0x3]
        %v882 = vlaneseq
        %v883 = vshrl.u32 %v882, 7
        %v884 = vsub.s32 0, %v883
        %v885 = vrot.slane %v880, %v884
        %v886 = vlaneseq
        %v887 = vshrl.u32 %v886, 7
        %v888 = vsub.s32 1, %v887
        %v889 = vrot.slane %v880, %v888
        %892 = vmatprep.subr.mxu0 %v753
        %893 = vmatpush1.msra.mxu0 %v752
        %894 = vmatprep.subr.mxu0 %v755
        %895 = vmatpush1.msra.mxu0 %v754
        %896 = vmatprep.subr.mxu0 %v757
        %897 = vmatpush1.msra.mxu0 %v756
        %898 = vmatprep.subr.mxu0 %v759
        %899 = vmatpush1.msra.mxu0 %v758
        %900 = vmatprep.subr.mxu0 %v761
        %901 = vmatpush1.msra.mxu0 %v760
        %902 = vmatprep.subr.mxu0 %v763
        %903 = vmatpush1.msra.mxu0 %v762
        %904 = vmatprep.subr.mxu0 %v765
        %905 = vmatpush1.msra.mxu0 %v764
        %906 = vmatprep.subr.mxu0 %v767
        %907 = vmatpush1.msra.mxu0 %v766
        %908 = vmatprep.subr.mxu0 %v769
        %909 = vmatpush1.msra.mxu0 %v768
        %910 = vmatprep.subr.mxu0 %v771
        %911 = vmatpush1.msra.mxu0 %v770
        %912 = vmatprep.subr.mxu0 %v773
        %913 = vmatpush1.msra.mxu0 %v772
        %914 = vmatprep.subr.mxu0 %v775
        %915 = vmatpush1.msra.mxu0 %v774
        %916 = vmatprep.subr.mxu0 %v777
        %917 = vmatpush1.msra.mxu0 %v776
        %918 = vmatprep.subr.mxu0 %v779
        %919 = vmatpush1.msra.mxu0 %v778
        %920 = vmatprep.subr.mxu0 %v781
        %921 = vmatpush1.msra.mxu0 %v780
        %922 = vmatprep.subr.mxu0 %v783
        %923 = vmatpush1.msra.mxu0 %v782
        %924 = vmatprep.subr.mxu0 %v785
        %925 = vmatpush1.msra.mxu0 %v784
        %926 = vmatprep.subr.mxu0 %v787
        %927 = vmatpush1.msra.mxu0 %v786
        %928 = vmatprep.subr.mxu0 %v789
        %929 = vmatpush1.msra.mxu0 %v788
        %930 = vmatprep.subr.mxu0 %v791
        %931 = vmatpush1.msra.mxu0 %v790
        %932 = vmatprep.subr.mxu0 %v793
        %933 = vmatpush1.msra.mxu0 %v792
        %934 = vmatprep.subr.mxu0 %v795
        %935 = vmatpush1.msra.mxu0 %v794
        %936 = vmatprep.subr.mxu0 %v797
        %937 = vmatpush1.msra.mxu0 %v796
        %938 = vmatprep.subr.mxu0 %v799
        %939 = vmatpush1.msra.mxu0 %v798
        %940 = vmatprep.subr.mxu0 %v801
        %941 = vmatpush1.msra.mxu0 %v800
        %942 = vmatprep.subr.mxu0 %v803
        %943 = vmatpush1.msra.mxu0 %v802
        %944 = vmatprep.subr.mxu0 %v805
        %945 = vmatpush1.msra.mxu0 %v804
        %946 = vmatprep.subr.mxu0 %v807
        %947 = vmatpush1.msra.mxu0 %v806
        %948 = vmatprep.subr.mxu0 %v809
        %949 = vmatpush1.msra.mxu0 %v808
        %950 = vmatprep.subr.mxu0 %v811
        %951 = vmatpush1.msra.mxu0 %v810
        %952 = vmatprep.subr.mxu0 %v813
        %953 = vmatpush1.msra.mxu0 %v812
        %954 = vmatprep.subr.mxu0 %v815
        %955 = vmatpush1.msra.mxu0 %v814
        %956 = vmatprep.mubr.f32.mxu0 %v749
        %957 = vmatmul.mubr.f32.gmra.mrb[0].mxu0 %v748
        %v958 = vpop.f32.mrb[0].mxu0
        %v959 = vadd.f32 %v885, %v958
        %v960 = vpop.f32.mrb[0].mxu0
        %v961 = vadd.f32 %v889, %v960
        %962 = vdwg.mxu0
        %963 = vmatprep.subr.mxu0 %v817
        %964 = vmatpush1.msra.mxu0 %v816
        %965 = vmatprep.subr.mxu0 %v819
        %966 = vmatpush1.msra.mxu0 %v818
        %967 = vmatprep.subr.mxu0 %v821
        %968 = vmatpush1.msra.mxu0 %v820
        %969 = vmatprep.subr.mxu0 %v823
        %970 = vmatpush1.msra.mxu0 %v822
        %971 = vmatprep.subr.mxu0 %v825
        %972 = vmatpush1.msra.mxu0 %v824
        %973 = vmatprep.subr.mxu0 %v827
        %974 = vmatpush1.msra.mxu0 %v826
        %975 = vmatprep.subr.mxu0 %v829
        %976 = vmatpush1.msra.mxu0 %v828
        %977 = vmatprep.subr.mxu0 %v831
        %978 = vmatpush1.msra.mxu0 %v830
        %979 = vmatprep.subr.mxu0 %v833
        %980 = vmatpush1.msra.mxu0 %v832
        %981 = vmatprep.subr.mxu0 %v835
        %982 = vmatpush1.msra.mxu0 %v834
        %983 = vmatprep.subr.mxu0 %v837
        %984 = vmatpush1.msra.mxu0 %v836
        %985 = vmatprep.subr.mxu0 %v839
        %986 = vmatpush1.msra.mxu0 %v838
        %987 = vmatprep.subr.mxu0 %v841
        %988 = vmatpush1.msra.mxu0 %v840
        %989 = vmatprep.subr.mxu0 %v843
        %990 = vmatpush1.msra.mxu0 %v842
        %991 = vmatprep.subr.mxu0 %v845
        %992 = vmatpush1.msra.mxu0 %v844
        %993 = vmatprep.subr.mxu0 %v847
        %994 = vmatpush1.msra.mxu0 %v846
        %995 = vmatprep.subr.mxu0 %v849
        %996 = vmatpush1.msra.mxu0 %v848
        %997 = vmatprep.subr.mxu0 %v851
        %998 = vmatpush1.msra.mxu0 %v850
        %999 = vmatprep.subr.mxu0 %v853
        %1000 = vmatpush1.msra.mxu0 %v852
        %1001 = vmatprep.subr.mxu0 %v855
        %1002 = vmatpush1.msra.mxu0 %v854
        %1003 = vmatprep.subr.mxu0 %v857
        %1004 = vmatpush1.msra.mxu0 %v856
        %1005 = vmatprep.subr.mxu0 %v859
        %1006 = vmatpush1.msra.mxu0 %v858
        %1007 = vmatprep.subr.mxu0 %v861
        %1008 = vmatpush1.msra.mxu0 %v860
        %1009 = vmatprep.subr.mxu0 %v863
        %1010 = vmatpush1.msra.mxu0 %v862
        %1011 = vmatprep.subr.mxu0 %v865
        %1012 = vmatpush1.msra.mxu0 %v864
        %1013 = vmatprep.subr.mxu0 %v867
        %1014 = vmatpush1.msra.mxu0 %v866
        %1015 = vmatprep.subr.mxu0 %v869
        %1016 = vmatpush1.msra.mxu0 %v868
        %1017 = vmatprep.subr.mxu0 %v871
        %1018 = vmatpush1.msra.mxu0 %v870
        %1019 = vmatprep.subr.mxu0 %v873
        %1020 = vmatpush1.msra.mxu0 %v872
        %1021 = vmatprep.subr.mxu0 %v875
        %1022 = vmatpush1.msra.mxu0 %v874
        %1023 = vmatprep.subr.mxu0 %v877
        %1024 = vmatpush1.msra.mxu0 %v876
        %1025 = vmatprep.subr.mxu0 %v879
        %1026 = vmatpush1.msra.mxu0 %v878
        %1027 = vmatprep.mubr.f32.mxu0 %v751
        %1028 = vmatmul.mubr.f32.gmra.mrb[0].mxu0 %v750
        %v1029 = vpop.f32.mrb[0].mxu0
        %v1030 = vadd.f32 %v959, %v1029
        %v1031 = vpop.f32.mrb[0].mxu0
        %v1032 = vadd.f32 %v961, %v1031
        %1033 = vdwg.mxu0
        %v1034 = vxor.u32 %v1030, 2147483648
        %v1035 = vxor.u32 %v1032, 2147483648
        %v1036 = vmul.f32 %v1034, 1.442695
        %v1037 = vpow.pop %v1036
        %v1038 = vmul.f32 %v1035, 1.442695
        %v1039 = vpow.pop %v1038
        %v1040 = vadd.f32 %v1037, 1.0
        %v1041 = vadd.f32 %v1039, 1.0
        %v1042 = vrcp.pop %v1040
        %v1043 = vmul.f32 1.0, %v1042
        %v1044 = vrcp.pop %v1041
        %v1045 = vmul.f32 1.0, %v1044
        %1046 = vst [vmem:[%s557] sm:$0xff] %v1043
        %1047 = vst [vmem:[%s557 + $0x8] sm:$0xff] %v1045
        %s1048 = smul.u32 2, %s21
        %p1049 = scmp.lt.s32.totalorder %s20, 0
        %s1050 = scalar_select %p1049, %s20, 0
        %p1051 = scmp.lt.s32.totalorder %s1048, 5
        %s1052 = scalar_select %p1051, %s1048, 5
        %s1053 = smul.addr %s1050, 6
        %s1054 = sadd.s32 %s1052, %s1053
        %s1055 = smul.addr %s1054, 8
        %s1056 = scalar_lea.vmem %s5, %s1055
        // Predicated region
        $region68: #{cnnlstm_forward.7} parent=58 // pred_check
          %p1057 = pneg %p168
        $region69: #{cnnlstm_forward.7} parent=58 // pred_check_branch
          %1059 = sbr.rel (%p1057) target = $region71
        $region70: #{cnnlstm_forward.7} parent=58 // pred_region
          %s1060 = smul.u32 2, %s21
        $region71: #{cnnlstm_forward.7} parent=58 // pred_fallthru
          _
      $region59: #{cnnlstm_forward.7} parent=5 // pred_fallthru
        _
      %p1061 = scmp.le.s32.totalorder 2, %s11
      // Predicated region
      $region72: #{cnnlstm_forward.7} parent=5 // pred_check
        %p1062 = pneg %p1061
      $region73: #{cnnlstm_forward.7} parent=5 // pred_check_branch
        %1064 = sbr.rel (%p1062) target = $region75
      $region74: #{cnnlstm_forward.7} parent=5 // pred_region
        %s1065 = ssub.s32 %s11, 2
        // Predicated region
        $region76: #{cnnlstm_forward.7} parent=74 // pred_check
          %p1066 = pneg %p174
        $region77: #{cnnlstm_forward.7} parent=74 // pred_check_branch
          %1068 = sbr.rel (%p1066) target = $region79
        $region78: #{cnnlstm_forward.7} parent=74 // pred_region
          %s1069 = smul.u32 2, %s23
          %p1070 = scmp.lt.s32.totalorder %s22, 0
          %s1071 = scalar_select %p1070, %s22, 0
          %p1072 = scmp.lt.s32.totalorder %s1069, 5
          %s1073 = scalar_select %p1072, %s1069, 5
          %s1074 = smul.addr %s1071, 6
          %s1075 = sadd.s32 %s1073, %s1074
          %s1076 = smul.addr %s1075, 8
          %s1077 = scalar_lea.vmem %s5, %s1076
        $region79: #{cnnlstm_forward.7} parent=74 // pred_fallthru
          _
      $region75: #{cnnlstm_forward.7} parent=5 // pred_fallthru
        _
    $region6: #{cnnlstm_forward.7} parent=1 // loop_footer
      %s15 = sadd.s32 1, %s11
    $region7: #{cnnlstm_forward.7} parent=1 // loop_footer_branch
      %10 = sbr.rel target = $region3
    $region8: #{cnnlstm_forward.7} parent=1 // loop_exit
      _

</llo_original>
